<compile_context>
chip_gen: v7x
topology: tpu7x:2x2x1
jax: 0.10.0
libtpu: 0.0.40
codegen_flags: <defaults>
</compile_context>

<pallas_src>
import functools

import jax
import jax.numpy as jnp
from jax.experimental import pallas as pl
from jax.experimental.pallas import tpu as pltpu


# ------------------------------ small helpers --------------------------------
def _round_up(x, m):
    return (x + m - 1) // m * m


def _choose_block_t(T, max_bt=32):
    """Largest of (32, 16, 8) that divides round_up(T, 8) -> padding confined to the last block."""
    t8 = _round_up(T, 8)
    for bt in (32, 16, 8):
        if bt <= max_bt and t8 % bt == 0:
            return bt
    return 8


def _pad_gates_last(w, H, H_pad):
    """Re-pack the last axis from [4*H] gate layout to [4*H_pad] (zero padded per gate)."""
    parts = []
    for g in range(4):
        blk = w[..., g * H:(g + 1) * H]
        pad = [(0, 0)] * (w.ndim - 1) + [(0, H_pad - H)]
        parts.append(jnp.pad(blk, pad))
    return jnp.concatenate(parts, axis=-1)


def _vmem_budget(block_t, b_shard, d_pad, h_pad):
    """Conservative VMEM need: resident weights + double-buffered blocks + scratch + gx live value."""
    x_blk = block_t * b_shard * d_pad * 2          # bf16 input block
    o_blk = block_t * b_shard * h_pad * 2          # bf16 output block (upper bound)
    w_ih = d_pad * 4 * h_pad * 2
    w_hh = h_pad * 4 * h_pad * 2
    bias = 4 * h_pad * 4
    scratch = b_shard * h_pad * (2 + 4)            # bf16 h + f32 c
    gx_live = block_t * b_shard * 4 * h_pad * 4    # f32 block gates held in VMEM/vregs
    need = 2 * (x_blk + o_blk + w_ih + w_hh + bias) + scratch + gx_live + (4 << 20)
    return int(min(100 << 20, max(need, 24 << 20)))


# ------------------------- fused projection + recurrence ----------------------
def _recurrence_block(x_ref, wih_ref, b_ref, whh_ref, h_ref, c_ref, emit, *,
                      hidden_pad, block_t, seq_len, n_tb):
    """One time-block: fused input projection + block_t unrolled LSTM steps."""
    t_blk = pl.program_id(1)

    @pl.when(t_blk == 0)
    def _():
        h_ref[...] = jnp.zeros_like(h_ref)
        c_ref[...] = jnp.zeros_like(c_ref)

    Hp = hidden_pad
    Bs = x_ref.shape[1]
    Dp = x_ref.shape[2]

    # Non-recurrent projection for the whole block (independent of h -> off the
    # serial chain). Collapsing the leading (block_t, Bs) dims is layout-preserving
    # since Bs is a multiple of 16 and Dp a multiple of 128.
    x2 = x_ref[...].reshape(block_t * Bs, Dp)
    gx = jnp.dot(x2, wih_ref[...], preferred_element_type=jnp.float32) + b_ref[...]

    w_hh = whh_ref[...]                         # bf16 [H_pad, 4*H_pad], block-resident
    # Padded time steps (t >= seq_len) exist only in the LAST block, at step
    # indices s >= rem (static), so masking code is emitted only for those steps.
    rem = seq_len - (n_tb - 1) * block_t

    for s in range(block_t):                    # fully unrolled, straight-line for LLO
        h_prev = h_ref[...]                     # bf16
        c_prev = c_ref[...]                     # f32
        gates = gx[s * Bs:(s + 1) * Bs, :] + jnp.dot(
            h_prev, w_hh, preferred_element_type=jnp.float32)
        # Lane-aligned gate slices: Hp is a multiple of 128.
        i = jax.nn.sigmoid(gates[:, 0 * Hp:1 * Hp])
        f = jax.nn.sigmoid(gates[:, 1 * Hp:2 * Hp])
        g = jnp.tanh(gates[:, 2 * Hp:3 * Hp])
        o = jax.nn.sigmoid(gates[:, 3 * Hp:4 * Hp])
        c_new = f * c_prev + i * g
        h_new = (o * jnp.tanh(c_new)).astype(jnp.bfloat16)
        if s >= rem:
            # Freeze the state on padded time steps (only reachable in the last block).
            valid = (t_blk * block_t + s) < seq_len
            h_new = jnp.where(valid, h_new, h_prev)
            c_new = jnp.where(valid, c_new, c_prev)
        h_ref[...] = h_new
        c_ref[...] = c_new
        emit(s, h_new)


def _lstm_seq_kernel(x_ref, wih_ref, b_ref, whh_ref, hseq_ref, h_ref, c_ref, *,
                     hidden_pad, block_t, seq_len, n_tb):
    """Non-last layer: emit the full hidden sequence (bf16) for the next layer."""
    def emit(s, h_new):
        hseq_ref[s] = h_new

    _recurrence_block(x_ref, wih_ref, b_ref, whh_ref, h_ref, c_ref, emit,
                      hidden_pad=hidden_pad, block_t=block_t,
                      seq_len=seq_len, n_tb=n_tb)


def _lstm_last_kernel(x_ref, wih_ref, b_ref, whh_ref, hlast_ref, h_ref, c_ref, *,
                      hidden_pad, block_t, seq_len, n_tb):
    """Last layer: only the final hidden state leaves the kernel."""
    _recurrence_block(x_ref, wih_ref, b_ref, whh_ref, h_ref, c_ref,
                      lambda s, h: None,
                      hidden_pad=hidden_pad, block_t=block_t,
                      seq_len=seq_len, n_tb=n_tb)
    hlast_ref[...] = h_ref[...]   # cheap VMEM store; flushed once per batch shard


def _lstm_layer(seq, w_ih, bias, w_hh, *, seq_len, block_t, n_shards, emit_seq):
    """seq: [T_pad, B_pad, D_pad] bf16 -> hseq [T_pad, B_pad, H_pad] bf16 (emit_seq)
    or final h [B_pad, H_pad] bf16 (last layer)."""
    T_pad, B_pad, D_pad = seq.shape
    H_pad = w_hh.shape[0]
    G = 4 * H_pad
    B_shard = B_pad // n_shards
    n_tb = T_pad // block_t

    kernel = functools.partial(
        _lstm_seq_kernel if emit_seq else _lstm_last_kernel,
        hidden_pad=H_pad, block_t=block_t, seq_len=seq_len, n_tb=n_tb)

    if emit_seq:
        out_shape = jax.ShapeDtypeStruct((T_pad, B_pad, H_pad), jnp.bfloat16)
        out_spec = pl.BlockSpec((block_t, B_shard, H_pad), lambda b, t: (t, b, 0))
    else:
        out_shape = jax.ShapeDtypeStruct((B_pad, H_pad), jnp.bfloat16)
        out_spec = pl.BlockSpec((B_shard, H_pad), lambda b, t: (b, 0))

    return pl.pallas_call(
        kernel,
        out_shape=out_shape,
        grid_spec=pltpu.PrefetchScalarGridSpec(
            num_scalar_prefetch=0,
            grid=(n_shards, n_tb),
            in_specs=[
                pl.BlockSpec((block_t, B_shard, D_pad), lambda b, t: (t, b, 0)),
                pl.BlockSpec((D_pad, G), lambda b, t: (0, 0)),
                pl.BlockSpec((1, G), lambda b, t: (0, 0)),
                pl.BlockSpec((H_pad, G), lambda b, t: (0, 0)),
            ],
            out_specs=out_spec,
            scratch_shapes=[
                pltpu.VMEM((B_shard, H_pad), jnp.bfloat16),   # h state (bf16)
                pltpu.VMEM((B_shard, H_pad), jnp.float32),    # c state (f32)
            ],
        ),
        compiler_params=pltpu.CompilerParams(
            # batch shards are independent (parallel); time recurrence is sequential.
            dimension_semantics=("parallel", "arbitrary"),
            vmem_limit_bytes=_vmem_budget(block_t, B_shard, D_pad, H_pad),
        ),
    )(seq, w_ih, bias, w_hh)


# ------------------------------- final Linear --------------------------------
def _fc_kernel(h_ref, w_ref, b_ref, o_ref):
    o_ref[...] = (jnp.dot(h_ref[...], w_ref[...], preferred_element_type=jnp.float32)
                  + b_ref[...])


def _fc(h, w, b):
    """h: [B_pad, H_pad] bf16, w: [H_pad, O_pad] bf16, b: [1, O_pad] f32 -> [B_pad, O_pad] f32."""
    B_pad, H_pad = h.shape
    O_pad = w.shape[1]
    # TODO(synk): tile over O_pad / H_pad if the head ever gets large; trivially small here.
    return pl.pallas_call(
        _fc_kernel,
        out_shape=jax.ShapeDtypeStruct((B_pad, O_pad), jnp.float32),
        grid_spec=pltpu.PrefetchScalarGridSpec(
            num_scalar_prefetch=0,
            grid=(1,),
            in_specs=[
                pl.BlockSpec((B_pad, H_pad), lambda i: (0, 0)),
                pl.BlockSpec((H_pad, O_pad), lambda i: (0, 0)),
                pl.BlockSpec((1, O_pad), lambda i: (0, 0)),
            ],
            out_specs=pl.BlockSpec((B_pad, O_pad), lambda i: (0, 0)),
        ),
    )(h, w, b)


# --------------------------------- parameters ---------------------------------
def init_params(key, input_dim, hidden_dim, num_layers, output_dim):
    """Unpadded f32 params mirroring PyTorch's uniform(-1/sqrt(H), 1/sqrt(H))."""
    params = {"layers": []}
    k = 1.0 / jnp.sqrt(hidden_dim)
    for layer in range(num_layers):
        in_dim = input_dim if layer == 0 else hidden_dim
        key, k1, k2, k3, k4 = jax.random.split(key, 5)
        w_ih = jax.random.uniform(k1, (in_dim, 4 * hidden_dim), jnp.float32, -k, k)
        w_hh = jax.random.uniform(k2, (hidden_dim, 4 * hidden_dim), jnp.float32, -k, k)
        b_ih = jax.random.uniform(k3, (4 * hidden_dim,), jnp.float32, -k, k)
        b_hh = jax.random.uniform(k4, (4 * hidden_dim,), jnp.float32, -k, k)
        params["layers"].append({"w_ih": w_ih, "w_hh": w_hh, "bias": b_ih + b_hh})
    key, k5, k6 = jax.random.split(key, 3)
    params["fc_w"] = jax.random.uniform(k5, (hidden_dim, output_dim), jnp.float32, -k, k)
    params["fc_b"] = jax.random.uniform(k6, (output_dim,), jnp.float32, -k, k)
    return params


def pad_params(raw, input_dim, hidden_dim, output_dim):
    """Pad H to a multiple of 128 (lane-aligned gates), pad EVERY w_ih's row axis to its
    layer's padded input width (fixes the OOB-read NaN bug), cast matmul weights to bf16."""
    H = hidden_dim
    H_pad = _round_up(H, 128)
    O_pad = _round_up(output_dim, 128)
    D0_pad = _round_up(input_dim, 128)
    padded = {"layers": []}
    for li, lp in enumerate(raw["layers"]):
        in_rows = input_dim if li == 0 else H
        in_rows_pad = D0_pad if li == 0 else H_pad
        w_ih = _pad_gates_last(lp["w_ih"], H, H_pad)               # [in_rows, 4*H_pad]
        w_ih = jnp.pad(w_ih, ((0, in_rows_pad - in_rows), (0, 0))) # [in_pad,  4*H_pad]
        w_hh = _pad_gates_last(lp["w_hh"], H, H_pad)               # [H,       4*H_pad]
        w_hh = jnp.pad(w_hh, ((0, H_pad - H), (0, 0)))             # [H_pad,   4*H_pad]
        bias = _pad_gates_last(lp["bias"][None, :], H, H_pad)      # [1,       4*H_pad]
        padded["layers"].append({
            "w_ih": w_ih.astype(jnp.bfloat16),
            "w_hh": w_hh.astype(jnp.bfloat16),
            "bias": bias.astype(jnp.float32),
        })
    fc_w = jnp.pad(raw["fc_w"], ((0, H_pad - H), (0, O_pad - output_dim)))
    fc_b = jnp.pad(raw["fc_b"], ((0, O_pad - output_dim),))[None, :]
    padded["fc_w"] = fc_w.astype(jnp.bfloat16)
    padded["fc_b"] = fc_b.astype(jnp.float32)
    return padded


# --------------------------------- full model ---------------------------------
@functools.partial(jax.jit, static_argnames=("output_dim",))
def lstm_model_forward(x_btd, padded_params, output_dim):
    """x_btd: [B, T, input_dim] (batch_first, as in the PyTorch module) -> [B, output_dim]."""
    B, T, D_in = x_btd.shape
    layers = padded_params["layers"]
    D0_pad = layers[0]["w_ih"].shape[0]
    H_pad = layers[0]["w_hh"].shape[0]

    B_pad = _round_up(B, 16)                      # bf16 sublane tile -> unmasked stores
    block_t = _choose_block_t(T)
    T_pad = _round_up(T, block_t)
    n_shards = 2 if (B_pad % 32 == 0) else 1      # v7x: batch-split the recurrence over 2 TCs

    # [B, T, D] -> time-major [T, B, D]; pad T/B and the layer-0 feature width; bf16 for MXU.
    x = jnp.transpose(x_btd, (1, 0, 2)).astype(jnp.float32)
    x = jnp.pad(x, ((0, T_pad - T), (0, B_pad - B), (0, D0_pad - D_in)))
    seq = x.astype(jnp.bfloat16)                  # [T_pad, B_pad, D0_pad]

    n_layers = len(layers)
    h_final = None
    for li, lp in enumerate(layers):
        last = (li == n_layers - 1)
        out = _lstm_layer(seq, lp["w_ih"], lp["bias"], lp["w_hh"],
                          seq_len=T, block_t=block_t, n_shards=n_shards,
                          emit_seq=not last)
        if not last:
            seq = out                             # [T_pad, B_pad, H_pad] bf16
        else:
            h_final = out                         # [B_pad, H_pad] bf16

    logits = _fc(h_final, padded_params["fc_w"], padded_params["fc_b"])
    return logits[:B, :output_dim]


# ------------------ pure-JAX reference (matched mixed precision) ---------------
def _reference_forward(x_btd, raw_params):
    """Same math as the kernels (bf16 matmul inputs, f32 accumulate, bf16 inter-layer h)."""
    seq = jnp.transpose(x_btd, (1, 0, 2)).astype(jnp.float32)   # [T, B, D]
    n_layers = len(raw_params["layers"])
    last_h = None
    for li, lp in enumerate(raw_params["layers"]):
        H = lp["w_hh"].shape[0]
        B = seq.shape[1]
        w_ih = lp["w_ih"].astype(jnp.bfloat16)
        w_hh = lp["w_hh"].astype(jnp.bfloat16)
        gx = (jnp.einsum("tbd,dg->tbg", seq.astype(jnp.bfloat16), w_ih,
                         preferred_element_type=jnp.float32)
              + lp["bias"][None, None, :])

        def step(carry, g_t, w_hh=w_hh, H=H):
            h, c = carry
            gates = g_t + jnp.dot(h.astype(jnp.bfloat16), w_hh,
                                  preferred_element_type=jnp.float32)
            i = jax.nn.sigmoid(gates[:, 0 * H:1 * H])
            f = jax.nn.sigmoid(gates[:, 1 * H:2 * H])
            g = jnp.tanh(gates[:, 2 * H:3 * H])
            o = jax.nn.sigmoid(gates[:, 3 * H:4 * H])
            c = f * c + i * g
            h = o * jnp.tanh(c)
            return (h, c), h

        (h_last, _), hs = jax.lax.scan(
            step, (jnp.zeros((B, H), jnp.float32), jnp.zeros((B, H), jnp.float32)), gx)
        if li < n_layers - 1:
            seq = hs.astype(jnp.bfloat16).astype(jnp.float32)   # mirror bf16 hand-off
        else:
            last_h = h_last
    return (jnp.dot(last_h.astype(jnp.bfloat16),
                    raw_params["fc_w"].astype(jnp.bfloat16),
                    preferred_element_type=jnp.float32)
            + raw_params["fc_b"][None, :])


if __name__ == "__main__":
    B, T, INPUT_DIM, HIDDEN_DIM, NUM_LAYERS, OUTPUT_DIM = 2, 8, 8, 32, 2, 4

    key = jax.random.PRNGKey(0)
    key, xkey = jax.random.split(key)
    x = jax.random.normal(xkey, (B, T, INPUT_DIM), dtype=jnp.float32)

    raw_params = init_params(key, INPUT_DIM, HIDDEN_DIM, NUM_LAYERS, OUTPUT_DIM)
    padded_params = pad_params(raw_params, INPUT_DIM, HIDDEN_DIM, OUTPUT_DIM)

    out = lstm_model_forward(x, padded_params, output_dim=OUTPUT_DIM)
    out = jax.block_until_ready(out)
    assert out.shape == (B, OUTPUT_DIM), out.shape

    ref = _reference_forward(x, raw_params)
    assert jnp.allclose(out, ref, atol=5e-3, rtol=5e-3), (out, ref)

    print("KERNEL_OK")
</pallas_src>

<mosaic_0001>
module attributes {stable_mosaic.version = 11 : i64} {
  func.func @_lstm_last_kernel(%arg0: i32, %arg1: i32, %arg2: memref<8x16x128xbf16, #tpu.memory_space<vmem>>, %arg3: memref<128x512xbf16, #tpu.memory_space<vmem>>, %arg4: memref<1x512xf32, #tpu.memory_space<vmem>>, %arg5: memref<128x512xbf16, #tpu.memory_space<vmem>>, %arg6: memref<16x128xbf16, #tpu.memory_space<vmem>>, %arg7: memref<16x128xbf16, #tpu.memory_space<vmem>>, %arg8: memref<16x128xf32, #tpu.memory_space<vmem>>) attributes {dimension_semantics = [#tpu.dimension_semantics<parallel>, #tpu.dimension_semantics<arbitrary>], iteration_bounds = array<i64: 1, 1>, scalar_prefetch = 0 : i64, scratch_operands = 2 : i64, tpu.core_type = #tpu.core_type<tc>, window_params = [{transform_indices = @transform_0, window_bounds = array<i64: 8, 16, 128>}, {pipeline_mode = #tpu.pipeline_mode<synchronous>, transform_indices = @transform_1, window_bounds = array<i64: 128, 512>}, {pipeline_mode = #tpu.pipeline_mode<synchronous>, transform_indices = @transform_2, window_bounds = array<i64: 1, 512>}, {pipeline_mode = #tpu.pipeline_mode<synchronous>, transform_indices = @transform_3, window_bounds = array<i64: 128, 512>}, {transform_indices = @transform_4, window_bounds = array<i64: 16, 128>}]} {
    %c0_i32 = arith.constant 0 : i32
    %0 = arith.cmpi eq, %arg1, %c0_i32 : i32
    %1 = arith.extui %0 : i1 to i32
    %c0_i32_0 = arith.constant 0 : i32
    %2 = arith.cmpi ne, %1, %c0_i32_0 : i32
    scf.if %2 {
      %cst_109 = arith.constant 0.000000e+00 : bf16
      %277 = vector.broadcast %cst_109 : bf16 to vector<16x128xbf16>
      %c0_110 = arith.constant 0 : index
      %c0_111 = arith.constant 0 : index
      %278 = vector.load %arg7[%c0_110, %c0_111] : memref<16x128xbf16, #tpu.memory_space<vmem>>, vector<16x128xbf16>
      tpu.vector_store %arg7[%c0_110, %c0_111], %277 {strides = array<i32>} : memref<16x128xbf16, #tpu.memory_space<vmem>>, vector<16x128xbf16>,
      %cst_112 = arith.constant 0.000000e+00 : f32
      %279 = vector.broadcast %cst_112 : f32 to vector<16x128xf32>
      %c0_113 = arith.constant 0 : index
      %c0_114 = arith.constant 0 : index
      %280 = vector.load %arg8[%c0_113, %c0_114] : memref<16x128xf32, #tpu.memory_space<vmem>>, vector<16x128xf32>
      tpu.vector_store %arg8[%c0_113, %c0_114], %279 {strides = array<i32>} : memref<16x128xf32, #tpu.memory_space<vmem>>, vector<16x128xf32>,
    } else {
    }
    %c0 = arith.constant 0 : index
    %c0_1 = arith.constant 0 : index
    %c0_2 = arith.constant 0 : index
    %3 = vector.load %arg2[%c0, %c0_1, %c0_2] : memref<8x16x128xbf16, #tpu.memory_space<vmem>>, vector<8x16x128xbf16>
    %4 = vector.shape_cast %3 : vector<8x16x128xbf16> to vector<128x128xbf16>
    %c0_3 = arith.constant 0 : index
    %c0_4 = arith.constant 0 : index
    %5 = vector.load %arg3[%c0_3, %c0_4] : memref<128x512xbf16, #tpu.memory_space<vmem>>, vector<128x512xbf16>
    %cst = arith.constant dense<0.000000e+00> : vector<128x512xf32>
    %6 = tpu.matmul %4, %5, %cst {dimension_numbers = #tpu.dot_dimension_numbers<[1], [0], [0], [1], [0, 0, 1, 1], [], []>} : vector<128x128xbf16>, vector<128x512xbf16>, vector<128x512xf32> -> vector<128x512xf32>
    %c0_5 = arith.constant 0 : index
    %c0_6 = arith.constant 0 : index
    %7 = vector.load %arg4[%c0_5, %c0_6] : memref<1x512xf32, #tpu.memory_space<vmem>>, vector<1x512xf32>
    %8 = vector.broadcast %7 : vector<1x512xf32> to vector<128x512xf32>
    %9 = arith.addf %6, %8 : vector<128x512xf32>
    %c0_7 = arith.constant 0 : index
    %c0_8 = arith.constant 0 : index
    %10 = vector.load %arg5[%c0_7, %c0_8] : memref<128x512xbf16, #tpu.memory_space<vmem>>, vector<128x512xbf16>
    %c0_9 = arith.constant 0 : index
    %c0_10 = arith.constant 0 : index
    %11 = vector.load %arg7[%c0_9, %c0_10] : memref<16x128xbf16, #tpu.memory_space<vmem>>, vector<16x128xbf16>
    %c0_11 = arith.constant 0 : index
    %c0_12 = arith.constant 0 : index
    %12 = vector.load %arg8[%c0_11, %c0_12] : memref<16x128xf32, #tpu.memory_space<vmem>>, vector<16x128xf32>
    %13 = vector.extract_strided_slice %9 {offsets = [0, 0], sizes = [16, 512], strides = [1, 1]} : vector<128x512xf32> to vector<16x512xf32>
    %cst_13 = arith.constant dense<0.000000e+00> : vector<16x512xf32>
    %14 = tpu.matmul %11, %10, %cst_13 {dimension_numbers = #tpu.dot_dimension_numbers<[1], [0], [0], [1], [0, 0, 1, 1], [], []>} : vector<16x128xbf16>, vector<128x512xbf16>, vector<16x512xf32> -> vector<16x512xf32>
    %15 = arith.addf %13, %14 : vector<16x512xf32>
    %16 = vector.extract_strided_slice %15 {offsets = [0, 0], sizes = [16, 128], strides = [1, 1]} : vector<16x512xf32> to vector<16x128xf32>
    %17 = arith.negf %16 : vector<16x128xf32>
    %18 = math.exp %17 : vector<16x128xf32>
    %cst_14 = arith.constant 1.000000e+00 : f32
    %19 = vector.broadcast %cst_14 : f32 to vector<16x128xf32>
    %20 = arith.addf %19, %18 : vector<16x128xf32>
    %21 = arith.divf %19, %20 : vector<16x128xf32>
    %22 = vector.extract_strided_slice %15 {offsets = [0, 128], sizes = [16, 128], strides = [1, 1]} : vector<16x512xf32> to vector<16x128xf32>
    %23 = arith.negf %22 : vector<16x128xf32>
    %24 = math.exp %23 : vector<16x128xf32>
    %cst_15 = arith.constant 1.000000e+00 : f32
    %25 = vector.broadcast %cst_15 : f32 to vector<16x128xf32>
    %26 = arith.addf %25, %24 : vector<16x128xf32>
    %27 = arith.divf %25, %26 : vector<16x128xf32>
    %28 = vector.extract_strided_slice %15 {offsets = [0, 256], sizes = [16, 128], strides = [1, 1]} : vector<16x512xf32> to vector<16x128xf32>
    %29 = math.tanh %28 : vector<16x128xf32>
    %30 = vector.extract_strided_slice %15 {offsets = [0, 384], sizes = [16, 128], strides = [1, 1]} : vector<16x512xf32> to vector<16x128xf32>
    %31 = arith.negf %30 : vector<16x128xf32>
    %32 = math.exp %31 : vector<16x128xf32>
    %cst_16 = arith.constant 1.000000e+00 : f32
    %33 = vector.broadcast %cst_16 : f32 to vector<16x128xf32>
    %34 = arith.addf %33, %32 : vector<16x128xf32>
    %35 = arith.divf %33, %34 : vector<16x128xf32>
    %36 = arith.mulf %27, %12 : vector<16x128xf32>
    %37 = arith.mulf %21, %29 : vector<16x128xf32>
    %38 = arith.addf %36, %37 : vector<16x128xf32>
    %39 = math.tanh %38 : vector<16x128xf32>
    %40 = arith.mulf %35, %39 : vector<16x128xf32>
    %41 = arith.truncf %40 : vector<16x128xf32> to vector<16x128xbf16>
    %c0_17 = arith.constant 0 : index
    %c0_18 = arith.constant 0 : index
    %42 = vector.load %arg7[%c0_17, %c0_18] : memref<16x128xbf16, #tpu.memory_space<vmem>>, vector<16x128xbf16>
    tpu.vector_store %arg7[%c0_17, %c0_18], %41 {strides = array<i32>} : memref<16x128xbf16, #tpu.memory_space<vmem>>, vector<16x128xbf16>,
    %c0_19 = arith.constant 0 : index
    %c0_20 = arith.constant 0 : index
    %43 = vector.load %arg8[%c0_19, %c0_20] : memref<16x128xf32, #tpu.memory_space<vmem>>, vector<16x128xf32>
    tpu.vector_store %arg8[%c0_19, %c0_20], %38 {strides = array<i32>} : memref<16x128xf32, #tpu.memory_space<vmem>>, vector<16x128xf32>,
    %c0_21 = arith.constant 0 : index
    %c0_22 = arith.constant 0 : index
    %44 = vector.load %arg7[%c0_21, %c0_22] : memref<16x128xbf16, #tpu.memory_space<vmem>>, vector<16x128xbf16>
    %c0_23 = arith.constant 0 : index
    %c0_24 = arith.constant 0 : index
    %45 = vector.load %arg8[%c0_23, %c0_24] : memref<16x128xf32, #tpu.memory_space<vmem>>, vector<16x128xf32>
    %46 = vector.extract_strided_slice %9 {offsets = [16, 0], sizes = [16, 512], strides = [1, 1]} : vector<128x512xf32> to vector<16x512xf32>
    %cst_25 = arith.constant dense<0.000000e+00> : vector<16x512xf32>
    %47 = tpu.matmul %44, %10, %cst_25 {dimension_numbers = #tpu.dot_dimension_numbers<[1], [0], [0], [1], [0, 0, 1, 1], [], []>} : vector<16x128xbf16>, vector<128x512xbf16>, vector<16x512xf32> -> vector<16x512xf32>
    %48 = arith.addf %46, %47 : vector<16x512xf32>
    %49 = vector.extract_strided_slice %48 {offsets = [0, 0], sizes = [16, 128], strides = [1, 1]} : vector<16x512xf32> to vector<16x128xf32>
    %50 = arith.negf %49 : vector<16x128xf32>
    %51 = math.exp %50 : vector<16x128xf32>
    %cst_26 = arith.constant 1.000000e+00 : f32
    %52 = vector.broadcast %cst_26 : f32 to vector<16x128xf32>
    %53 = arith.addf %52, %51 : vector<16x128xf32>
    %54 = arith.divf %52, %53 : vector<16x128xf32>
    %55 = vector.extract_strided_slice %48 {offsets = [0, 128], sizes = [16, 128], strides = [1, 1]} : vector<16x512xf32> to vector<16x128xf32>
    %56 = arith.negf %55 : vector<16x128xf32>
    %57 = math.exp %56 : vector<16x128xf32>
    %cst_27 = arith.constant 1.000000e+00 : f32
    %58 = vector.broadcast %cst_27 : f32 to vector<16x128xf32>
    %59 = arith.addf %58, %57 : vector<16x128xf32>
    %60 = arith.divf %58, %59 : vector<16x128xf32>
    %61 = vector.extract_strided_slice %48 {offsets = [0, 256], sizes = [16, 128], strides = [1, 1]} : vector<16x512xf32> to vector<16x128xf32>
    %62 = math.tanh %61 : vector<16x128xf32>
    %63 = vector.extract_strided_slice %48 {offsets = [0, 384], sizes = [16, 128], strides = [1, 1]} : vector<16x512xf32> to vector<16x128xf32>
    %64 = arith.negf %63 : vector<16x128xf32>
    %65 = math.exp %64 : vector<16x128xf32>
    %cst_28 = arith.constant 1.000000e+00 : f32
    %66 = vector.broadcast %cst_28 : f32 to vector<16x128xf32>
    %67 = arith.addf %66, %65 : vector<16x128xf32>
    %68 = arith.divf %66, %67 : vector<16x128xf32>
    %69 = arith.mulf %60, %45 : vector<16x128xf32>
    %70 = arith.mulf %54, %62 : vector<16x128xf32>
    %71 = arith.addf %69, %70 : vector<16x128xf32>
    %72 = math.tanh %71 : vector<16x128xf32>
    %73 = arith.mulf %68, %72 : vector<16x128xf32>
    %74 = arith.truncf %73 : vector<16x128xf32> to vector<16x128xbf16>
    %c0_29 = arith.constant 0 : index
    %c0_30 = arith.constant 0 : index
    %75 = vector.load %arg7[%c0_29, %c0_30] : memref<16x128xbf16, #tpu.memory_space<vmem>>, vector<16x128xbf16>
    tpu.vector_store %arg7[%c0_29, %c0_30], %74 {strides = array<i32>} : memref<16x128xbf16, #tpu.memory_space<vmem>>, vector<16x128xbf16>,
    %c0_31 = arith.constant 0 : index
    %c0_32 = arith.constant 0 : index
    %76 = vector.load %arg8[%c0_31, %c0_32] : memref<16x128xf32, #tpu.memory_space<vmem>>, vector<16x128xf32>
    tpu.vector_store %arg8[%c0_31, %c0_32], %71 {strides = array<i32>} : memref<16x128xf32, #tpu.memory_space<vmem>>, vector<16x128xf32>,
    %c0_33 = arith.constant 0 : index
    %c0_34 = arith.constant 0 : index
    %77 = vector.load %arg7[%c0_33, %c0_34] : memref<16x128xbf16, #tpu.memory_space<vmem>>, vector<16x128xbf16>
    %c0_35 = arith.constant 0 : index
    %c0_36 = arith.constant 0 : index
    %78 = vector.load %arg8[%c0_35, %c0_36] : memref<16x128xf32, #tpu.memory_space<vmem>>, vector<16x128xf32>
    %79 = vector.extract_strided_slice %9 {offsets = [32, 0], sizes = [16, 512], strides = [1, 1]} : vector<128x512xf32> to vector<16x512xf32>
    %cst_37 = arith.constant dense<0.000000e+00> : vector<16x512xf32>
    %80 = tpu.matmul %77, %10, %cst_37 {dimension_numbers = #tpu.dot_dimension_numbers<[1], [0], [0], [1], [0, 0, 1, 1], [], []>} : vector<16x128xbf16>, vector<128x512xbf16>, vector<16x512xf32> -> vector<16x512xf32>
    %81 = arith.addf %79, %80 : vector<16x512xf32>
    %82 = vector.extract_strided_slice %81 {offsets = [0, 0], sizes = [16, 128], strides = [1, 1]} : vector<16x512xf32> to vector<16x128xf32>
    %83 = arith.negf %82 : vector<16x128xf32>
    %84 = math.exp %83 : vector<16x128xf32>
    %cst_38 = arith.constant 1.000000e+00 : f32
    %85 = vector.broadcast %cst_38 : f32 to vector<16x128xf32>
    %86 = arith.addf %85, %84 : vector<16x128xf32>
    %87 = arith.divf %85, %86 : vector<16x128xf32>
    %88 = vector.extract_strided_slice %81 {offsets = [0, 128], sizes = [16, 128], strides = [1, 1]} : vector<16x512xf32> to vector<16x128xf32>
    %89 = arith.negf %88 : vector<16x128xf32>
    %90 = math.exp %89 : vector<16x128xf32>
    %cst_39 = arith.constant 1.000000e+00 : f32
    %91 = vector.broadcast %cst_39 : f32 to vector<16x128xf32>
    %92 = arith.addf %91, %90 : vector<16x128xf32>
    %93 = arith.divf %91, %92 : vector<16x128xf32>
    %94 = vector.extract_strided_slice %81 {offsets = [0, 256], sizes = [16, 128], strides = [1, 1]} : vector<16x512xf32> to vector<16x128xf32>
    %95 = math.tanh %94 : vector<16x128xf32>
    %96 = vector.extract_strided_slice %81 {offsets = [0, 384], sizes = [16, 128], strides = [1, 1]} : vector<16x512xf32> to vector<16x128xf32>
    %97 = arith.negf %96 : vector<16x128xf32>
    %98 = math.exp %97 : vector<16x128xf32>
    %cst_40 = arith.constant 1.000000e+00 : f32
    %99 = vector.broadcast %cst_40 : f32 to vector<16x128xf32>
    %100 = arith.addf %99, %98 : vector<16x128xf32>
    %101 = arith.divf %99, %100 : vector<16x128xf32>
    %102 = arith.mulf %93, %78 : vector<16x128xf32>
    %103 = arith.mulf %87, %95 : vector<16x128xf32>
    %104 = arith.addf %102, %103 : vector<16x128xf32>
    %105 = math.tanh %104 : vector<16x128xf32>
    %106 = arith.mulf %101, %105 : vector<16x128xf32>
    %107 = arith.truncf %106 : vector<16x128xf32> to vector<16x128xbf16>
    %c0_41 = arith.constant 0 : index
    %c0_42 = arith.constant 0 : index
    %108 = vector.load %arg7[%c0_41, %c0_42] : memref<16x128xbf16, #tpu.memory_space<vmem>>, vector<16x128xbf16>
    tpu.vector_store %arg7[%c0_41, %c0_42], %107 {strides = array<i32>} : memref<16x128xbf16, #tpu.memory_space<vmem>>, vector<16x128xbf16>,
    %c0_43 = arith.constant 0 : index
    %c0_44 = arith.constant 0 : index
    %109 = vector.load %arg8[%c0_43, %c0_44] : memref<16x128xf32, #tpu.memory_space<vmem>>, vector<16x128xf32>
    tpu.vector_store %arg8[%c0_43, %c0_44], %104 {strides = array<i32>} : memref<16x128xf32, #tpu.memory_space<vmem>>, vector<16x128xf32>,
    %c0_45 = arith.constant 0 : index
    %c0_46 = arith.constant 0 : index
    %110 = vector.load %arg7[%c0_45, %c0_46] : memref<16x128xbf16, #tpu.memory_space<vmem>>, vector<16x128xbf16>
    %c0_47 = arith.constant 0 : index
    %c0_48 = arith.constant 0 : index
    %111 = vector.load %arg8[%c0_47, %c0_48] : memref<16x128xf32, #tpu.memory_space<vmem>>, vector<16x128xf32>
    %112 = vector.extract_strided_slice %9 {offsets = [48, 0], sizes = [16, 512], strides = [1, 1]} : vector<128x512xf32> to vector<16x512xf32>
    %cst_49 = arith.constant dense<0.000000e+00> : vector<16x512xf32>
    %113 = tpu.matmul %110, %10, %cst_49 {dimension_numbers = #tpu.dot_dimension_numbers<[1], [0], [0], [1], [0, 0, 1, 1], [], []>} : vector<16x128xbf16>, vector<128x512xbf16>, vector<16x512xf32> -> vector<16x512xf32>
    %114 = arith.addf %112, %113 : vector<16x512xf32>
    %115 = vector.extract_strided_slice %114 {offsets = [0, 0], sizes = [16, 128], strides = [1, 1]} : vector<16x512xf32> to vector<16x128xf32>
    %116 = arith.negf %115 : vector<16x128xf32>
    %117 = math.exp %116 : vector<16x128xf32>
    %cst_50 = arith.constant 1.000000e+00 : f32
    %118 = vector.broadcast %cst_50 : f32 to vector<16x128xf32>
    %119 = arith.addf %118, %117 : vector<16x128xf32>
    %120 = arith.divf %118, %119 : vector<16x128xf32>
    %121 = vector.extract_strided_slice %114 {offsets = [0, 128], sizes = [16, 128], strides = [1, 1]} : vector<16x512xf32> to vector<16x128xf32>
    %122 = arith.negf %121 : vector<16x128xf32>
    %123 = math.exp %122 : vector<16x128xf32>
    %cst_51 = arith.constant 1.000000e+00 : f32
    %124 = vector.broadcast %cst_51 : f32 to vector<16x128xf32>
    %125 = arith.addf %124, %123 : vector<16x128xf32>
    %126 = arith.divf %124, %125 : vector<16x128xf32>
    %127 = vector.extract_strided_slice %114 {offsets = [0, 256], sizes = [16, 128], strides = [1, 1]} : vector<16x512xf32> to vector<16x128xf32>
    %128 = math.tanh %127 : vector<16x128xf32>
    %129 = vector.extract_strided_slice %114 {offsets = [0, 384], sizes = [16, 128], strides = [1, 1]} : vector<16x512xf32> to vector<16x128xf32>
    %130 = arith.negf %129 : vector<16x128xf32>
    %131 = math.exp %130 : vector<16x128xf32>
    %cst_52 = arith.constant 1.000000e+00 : f32
    %132 = vector.broadcast %cst_52 : f32 to vector<16x128xf32>
    %133 = arith.addf %132, %131 : vector<16x128xf32>
    %134 = arith.divf %132, %133 : vector<16x128xf32>
    %135 = arith.mulf %126, %111 : vector<16x128xf32>
    %136 = arith.mulf %120, %128 : vector<16x128xf32>
    %137 = arith.addf %135, %136 : vector<16x128xf32>
    %138 = math.tanh %137 : vector<16x128xf32>
    %139 = arith.mulf %134, %138 : vector<16x128xf32>
    %140 = arith.truncf %139 : vector<16x128xf32> to vector<16x128xbf16>
    %c0_53 = arith.constant 0 : index
    %c0_54 = arith.constant 0 : index
    %141 = vector.load %arg7[%c0_53, %c0_54] : memref<16x128xbf16, #tpu.memory_space<vmem>>, vector<16x128xbf16>
    tpu.vector_store %arg7[%c0_53, %c0_54], %140 {strides = array<i32>} : memref<16x128xbf16, #tpu.memory_space<vmem>>, vector<16x128xbf16>,
    %c0_55 = arith.constant 0 : index
    %c0_56 = arith.constant 0 : index
    %142 = vector.load %arg8[%c0_55, %c0_56] : memref<16x128xf32, #tpu.memory_space<vmem>>, vector<16x128xf32>
    tpu.vector_store %arg8[%c0_55, %c0_56], %137 {strides = array<i32>} : memref<16x128xf32, #tpu.memory_space<vmem>>, vector<16x128xf32>,
    %c0_57 = arith.constant 0 : index
    %c0_58 = arith.constant 0 : index
    %143 = vector.load %arg7[%c0_57, %c0_58] : memref<16x128xbf16, #tpu.memory_space<vmem>>, vector<16x128xbf16>
    %c0_59 = arith.constant 0 : index
    %c0_60 = arith.constant 0 : index
    %144 = vector.load %arg8[%c0_59, %c0_60] : memref<16x128xf32, #tpu.memory_space<vmem>>, vector<16x128xf32>
    %145 = vector.extract_strided_slice %9 {offsets = [64, 0], sizes = [16, 512], strides = [1, 1]} : vector<128x512xf32> to vector<16x512xf32>
    %cst_61 = arith.constant dense<0.000000e+00> : vector<16x512xf32>
    %146 = tpu.matmul %143, %10, %cst_61 {dimension_numbers = #tpu.dot_dimension_numbers<[1], [0], [0], [1], [0, 0, 1, 1], [], []>} : vector<16x128xbf16>, vector<128x512xbf16>, vector<16x512xf32> -> vector<16x512xf32>
    %147 = arith.addf %145, %146 : vector<16x512xf32>
    %148 = vector.extract_strided_slice %147 {offsets = [0, 0], sizes = [16, 128], strides = [1, 1]} : vector<16x512xf32> to vector<16x128xf32>
    %149 = arith.negf %148 : vector<16x128xf32>
    %150 = math.exp %149 : vector<16x128xf32>
    %cst_62 = arith.constant 1.000000e+00 : f32
    %151 = vector.broadcast %cst_62 : f32 to vector<16x128xf32>
    %152 = arith.addf %151, %150 : vector<16x128xf32>
    %153 = arith.divf %151, %152 : vector<16x128xf32>
    %154 = vector.extract_strided_slice %147 {offsets = [0, 128], sizes = [16, 128], strides = [1, 1]} : vector<16x512xf32> to vector<16x128xf32>
    %155 = arith.negf %154 : vector<16x128xf32>
    %156 = math.exp %155 : vector<16x128xf32>
    %cst_63 = arith.constant 1.000000e+00 : f32
    %157 = vector.broadcast %cst_63 : f32 to vector<16x128xf32>
    %158 = arith.addf %157, %156 : vector<16x128xf32>
    %159 = arith.divf %157, %158 : vector<16x128xf32>
    %160 = vector.extract_strided_slice %147 {offsets = [0, 256], sizes = [16, 128], strides = [1, 1]} : vector<16x512xf32> to vector<16x128xf32>
    %161 = math.tanh %160 : vector<16x128xf32>
    %162 = vector.extract_strided_slice %147 {offsets = [0, 384], sizes = [16, 128], strides = [1, 1]} : vector<16x512xf32> to vector<16x128xf32>
    %163 = arith.negf %162 : vector<16x128xf32>
    %164 = math.exp %163 : vector<16x128xf32>
    %cst_64 = arith.constant 1.000000e+00 : f32
    %165 = vector.broadcast %cst_64 : f32 to vector<16x128xf32>
    %166 = arith.addf %165, %164 : vector<16x128xf32>
    %167 = arith.divf %165, %166 : vector<16x128xf32>
    %168 = arith.mulf %159, %144 : vector<16x128xf32>
    %169 = arith.mulf %153, %161 : vector<16x128xf32>
    %170 = arith.addf %168, %169 : vector<16x128xf32>
    %171 = math.tanh %170 : vector<16x128xf32>
    %172 = arith.mulf %167, %171 : vector<16x128xf32>
    %173 = arith.truncf %172 : vector<16x128xf32> to vector<16x128xbf16>
    %c0_65 = arith.constant 0 : index
    %c0_66 = arith.constant 0 : index
    %174 = vector.load %arg7[%c0_65, %c0_66] : memref<16x128xbf16, #tpu.memory_space<vmem>>, vector<16x128xbf16>
    tpu.vector_store %arg7[%c0_65, %c0_66], %173 {strides = array<i32>} : memref<16x128xbf16, #tpu.memory_space<vmem>>, vector<16x128xbf16>,
    %c0_67 = arith.constant 0 : index
    %c0_68 = arith.constant 0 : index
    %175 = vector.load %arg8[%c0_67, %c0_68] : memref<16x128xf32, #tpu.memory_space<vmem>>, vector<16x128xf32>
    tpu.vector_store %arg8[%c0_67, %c0_68], %170 {strides = array<i32>} : memref<16x128xf32, #tpu.memory_space<vmem>>, vector<16x128xf32>,
    %c0_69 = arith.constant 0 : index
    %c0_70 = arith.constant 0 : index
    %176 = vector.load %arg7[%c0_69, %c0_70] : memref<16x128xbf16, #tpu.memory_space<vmem>>, vector<16x128xbf16>
    %c0_71 = arith.constant 0 : index
    %c0_72 = arith.constant 0 : index
    %177 = vector.load %arg8[%c0_71, %c0_72] : memref<16x128xf32, #tpu.memory_space<vmem>>, vector<16x128xf32>
    %178 = vector.extract_strided_slice %9 {offsets = [80, 0], sizes = [16, 512], strides = [1, 1]} : vector<128x512xf32> to vector<16x512xf32>
    %cst_73 = arith.constant dense<0.000000e+00> : vector<16x512xf32>
    %179 = tpu.matmul %176, %10, %cst_73 {dimension_numbers = #tpu.dot_dimension_numbers<[1], [0], [0], [1], [0, 0, 1, 1], [], []>} : vector<16x128xbf16>, vector<128x512xbf16>, vector<16x512xf32> -> vector<16x512xf32>
    %180 = arith.addf %178, %179 : vector<16x512xf32>
    %181 = vector.extract_strided_slice %180 {offsets = [0, 0], sizes = [16, 128], strides = [1, 1]} : vector<16x512xf32> to vector<16x128xf32>
    %182 = arith.negf %181 : vector<16x128xf32>
    %183 = math.exp %182 : vector<16x128xf32>
    %cst_74 = arith.constant 1.000000e+00 : f32
    %184 = vector.broadcast %cst_74 : f32 to vector<16x128xf32>
    %185 = arith.addf %184, %183 : vector<16x128xf32>
    %186 = arith.divf %184, %185 : vector<16x128xf32>
    %187 = vector.extract_strided_slice %180 {offsets = [0, 128], sizes = [16, 128], strides = [1, 1]} : vector<16x512xf32> to vector<16x128xf32>
    %188 = arith.negf %187 : vector<16x128xf32>
    %189 = math.exp %188 : vector<16x128xf32>
    %cst_75 = arith.constant 1.000000e+00 : f32
    %190 = vector.broadcast %cst_75 : f32 to vector<16x128xf32>
    %191 = arith.addf %190, %189 : vector<16x128xf32>
    %192 = arith.divf %190, %191 : vector<16x128xf32>
    %193 = vector.extract_strided_slice %180 {offsets = [0, 256], sizes = [16, 128], strides = [1, 1]} : vector<16x512xf32> to vector<16x128xf32>
    %194 = math.tanh %193 : vector<16x128xf32>
    %195 = vector.extract_strided_slice %180 {offsets = [0, 384], sizes = [16, 128], strides = [1, 1]} : vector<16x512xf32> to vector<16x128xf32>
    %196 = arith.negf %195 : vector<16x128xf32>
    %197 = math.exp %196 : vector<16x128xf32>
    %cst_76 = arith.constant 1.000000e+00 : f32
    %198 = vector.broadcast %cst_76 : f32 to vector<16x128xf32>
    %199 = arith.addf %198, %197 : vector<16x128xf32>
    %200 = arith.divf %198, %199 : vector<16x128xf32>
    %201 = arith.mulf %192, %177 : vector<16x128xf32>
    %202 = arith.mulf %186, %194 : vector<16x128xf32>
    %203 = arith.addf %201, %202 : vector<16x128xf32>
    %204 = math.tanh %203 : vector<16x128xf32>
    %205 = arith.mulf %200, %204 : vector<16x128xf32>
    %206 = arith.truncf %205 : vector<16x128xf32> to vector<16x128xbf16>
    %c0_77 = arith.constant 0 : index
    %c0_78 = arith.constant 0 : index
    %207 = vector.load %arg7[%c0_77, %c0_78] : memref<16x128xbf16, #tpu.memory_space<vmem>>, vector<16x128xbf16>
    tpu.vector_store %arg7[%c0_77, %c0_78], %206 {strides = array<i32>} : memref<16x128xbf16, #tpu.memory_space<vmem>>, vector<16x128xbf16>,
    %c0_79 = arith.constant 0 : index
    %c0_80 = arith.constant 0 : index
    %208 = vector.load %arg8[%c0_79, %c0_80] : memref<16x128xf32, #tpu.memory_space<vmem>>, vector<16x128xf32>
    tpu.vector_store %arg8[%c0_79, %c0_80], %203 {strides = array<i32>} : memref<16x128xf32, #tpu.memory_space<vmem>>, vector<16x128xf32>,
    %c0_81 = arith.constant 0 : index
    %c0_82 = arith.constant 0 : index
    %209 = vector.load %arg7[%c0_81, %c0_82] : memref<16x128xbf16, #tpu.memory_space<vmem>>, vector<16x128xbf16>
    %c0_83 = arith.constant 0 : index
    %c0_84 = arith.constant 0 : index
    %210 = vector.load %arg8[%c0_83, %c0_84] : memref<16x128xf32, #tpu.memory_space<vmem>>, vector<16x128xf32>
    %211 = vector.extract_strided_slice %9 {offsets = [96, 0], sizes = [16, 512], strides = [1, 1]} : vector<128x512xf32> to vector<16x512xf32>
    %cst_85 = arith.constant dense<0.000000e+00> : vector<16x512xf32>
    %212 = tpu.matmul %209, %10, %cst_85 {dimension_numbers = #tpu.dot_dimension_numbers<[1], [0], [0], [1], [0, 0, 1, 1], [], []>} : vector<16x128xbf16>, vector<128x512xbf16>, vector<16x512xf32> -> vector<16x512xf32>
    %213 = arith.addf %211, %212 : vector<16x512xf32>
    %214 = vector.extract_strided_slice %213 {offsets = [0, 0], sizes = [16, 128], strides = [1, 1]} : vector<16x512xf32> to vector<16x128xf32>
    %215 = arith.negf %214 : vector<16x128xf32>
    %216 = math.exp %215 : vector<16x128xf32>
    %cst_86 = arith.constant 1.000000e+00 : f32
    %217 = vector.broadcast %cst_86 : f32 to vector<16x128xf32>
    %218 = arith.addf %217, %216 : vector<16x128xf32>
    %219 = arith.divf %217, %218 : vector<16x128xf32>
    %220 = vector.extract_strided_slice %213 {offsets = [0, 128], sizes = [16, 128], strides = [1, 1]} : vector<16x512xf32> to vector<16x128xf32>
    %221 = arith.negf %220 : vector<16x128xf32>
    %222 = math.exp %221 : vector<16x128xf32>
    %cst_87 = arith.constant 1.000000e+00 : f32
    %223 = vector.broadcast %cst_87 : f32 to vector<16x128xf32>
    %224 = arith.addf %223, %222 : vector<16x128xf32>
    %225 = arith.divf %223, %224 : vector<16x128xf32>
    %226 = vector.extract_strided_slice %213 {offsets = [0, 256], sizes = [16, 128], strides = [1, 1]} : vector<16x512xf32> to vector<16x128xf32>
    %227 = math.tanh %226 : vector<16x128xf32>
    %228 = vector.extract_strided_slice %213 {offsets = [0, 384], sizes = [16, 128], strides = [1, 1]} : vector<16x512xf32> to vector<16x128xf32>
    %229 = arith.negf %228 : vector<16x128xf32>
    %230 = math.exp %229 : vector<16x128xf32>
    %cst_88 = arith.constant 1.000000e+00 : f32
    %231 = vector.broadcast %cst_88 : f32 to vector<16x128xf32>
    %232 = arith.addf %231, %230 : vector<16x128xf32>
    %233 = arith.divf %231, %232 : vector<16x128xf32>
    %234 = arith.mulf %225, %210 : vector<16x128xf32>
    %235 = arith.mulf %219, %227 : vector<16x128xf32>
    %236 = arith.addf %234, %235 : vector<16x128xf32>
    %237 = math.tanh %236 : vector<16x128xf32>
    %238 = arith.mulf %233, %237 : vector<16x128xf32>
    %239 = arith.truncf %238 : vector<16x128xf32> to vector<16x128xbf16>
    %c0_89 = arith.constant 0 : index
    %c0_90 = arith.constant 0 : index
    %240 = vector.load %arg7[%c0_89, %c0_90] : memref<16x128xbf16, #tpu.memory_space<vmem>>, vector<16x128xbf16>
    tpu.vector_store %arg7[%c0_89, %c0_90], %239 {strides = array<i32>} : memref<16x128xbf16, #tpu.memory_space<vmem>>, vector<16x128xbf16>,
    %c0_91 = arith.constant 0 : index
    %c0_92 = arith.constant 0 : index
    %241 = vector.load %arg8[%c0_91, %c0_92] : memref<16x128xf32, #tpu.memory_space<vmem>>, vector<16x128xf32>
    tpu.vector_store %arg8[%c0_91, %c0_92], %236 {strides = array<i32>} : memref<16x128xf32, #tpu.memory_space<vmem>>, vector<16x128xf32>,
    %c0_93 = arith.constant 0 : index
    %c0_94 = arith.constant 0 : index
    %242 = vector.load %arg7[%c0_93, %c0_94] : memref<16x128xbf16, #tpu.memory_space<vmem>>, vector<16x128xbf16>
    %c0_95 = arith.constant 0 : index
    %c0_96 = arith.constant 0 : index
    %243 = vector.load %arg8[%c0_95, %c0_96] : memref<16x128xf32, #tpu.memory_space<vmem>>, vector<16x128xf32>
    %244 = vector.extract_strided_slice %9 {offsets = [112, 0], sizes = [16, 512], strides = [1, 1]} : vector<128x512xf32> to vector<16x512xf32>
    %cst_97 = arith.constant dense<0.000000e+00> : vector<16x512xf32>
    %245 = tpu.matmul %242, %10, %cst_97 {dimension_numbers = #tpu.dot_dimension_numbers<[1], [0], [0], [1], [0, 0, 1, 1], [], []>} : vector<16x128xbf16>, vector<128x512xbf16>, vector<16x512xf32> -> vector<16x512xf32>
    %246 = arith.addf %244, %245 : vector<16x512xf32>
    %247 = vector.extract_strided_slice %246 {offsets = [0, 0], sizes = [16, 128], strides = [1, 1]} : vector<16x512xf32> to vector<16x128xf32>
    %248 = arith.negf %247 : vector<16x128xf32>
    %249 = math.exp %248 : vector<16x128xf32>
    %cst_98 = arith.constant 1.000000e+00 : f32
    %250 = vector.broadcast %cst_98 : f32 to vector<16x128xf32>
    %251 = arith.addf %250, %249 : vector<16x128xf32>
    %252 = arith.divf %250, %251 : vector<16x128xf32>
    %253 = vector.extract_strided_slice %246 {offsets = [0, 128], sizes = [16, 128], strides = [1, 1]} : vector<16x512xf32> to vector<16x128xf32>
    %254 = arith.negf %253 : vector<16x128xf32>
    %255 = math.exp %254 : vector<16x128xf32>
    %cst_99 = arith.constant 1.000000e+00 : f32
    %256 = vector.broadcast %cst_99 : f32 to vector<16x128xf32>
    %257 = arith.addf %256, %255 : vector<16x128xf32>
    %258 = arith.divf %256, %257 : vector<16x128xf32>
    %259 = vector.extract_strided_slice %246 {offsets = [0, 256], sizes = [16, 128], strides = [1, 1]} : vector<16x512xf32> to vector<16x128xf32>
    %260 = math.tanh %259 : vector<16x128xf32>
    %261 = vector.extract_strided_slice %246 {offsets = [0, 384], sizes = [16, 128], strides = [1, 1]} : vector<16x512xf32> to vector<16x128xf32>
    %262 = arith.negf %261 : vector<16x128xf32>
    %263 = math.exp %262 : vector<16x128xf32>
    %cst_100 = arith.constant 1.000000e+00 : f32
    %264 = vector.broadcast %cst_100 : f32 to vector<16x128xf32>
    %265 = arith.addf %264, %263 : vector<16x128xf32>
    %266 = arith.divf %264, %265 : vector<16x128xf32>
    %267 = arith.mulf %258, %243 : vector<16x128xf32>
    %268 = arith.mulf %252, %260 : vector<16x128xf32>
    %269 = arith.addf %267, %268 : vector<16x128xf32>
    %270 = math.tanh %269 : vector<16x128xf32>
    %271 = arith.mulf %266, %270 : vector<16x128xf32>
    %272 = arith.truncf %271 : vector<16x128xf32> to vector<16x128xbf16>
    %c0_101 = arith.constant 0 : index
    %c0_102 = arith.constant 0 : index
    %273 = vector.load %arg7[%c0_101, %c0_102] : memref<16x128xbf16, #tpu.memory_space<vmem>>, vector<16x128xbf16>
    tpu.vector_store %arg7[%c0_101, %c0_102], %272 {strides = array<i32>} : memref<16x128xbf16, #tpu.memory_space<vmem>>, vector<16x128xbf16>,
    %c0_103 = arith.constant 0 : index
    %c0_104 = arith.constant 0 : index
    %274 = vector.load %arg8[%c0_103, %c0_104] : memref<16x128xf32, #tpu.memory_space<vmem>>, vector<16x128xf32>
    tpu.vector_store %arg8[%c0_103, %c0_104], %269 {strides = array<i32>} : memref<16x128xf32, #tpu.memory_space<vmem>>, vector<16x128xf32>,
    %c0_105 = arith.constant 0 : index
    %c0_106 = arith.constant 0 : index
    %275 = vector.load %arg7[%c0_105, %c0_106] : memref<16x128xbf16, #tpu.memory_space<vmem>>, vector<16x128xbf16>
    %c0_107 = arith.constant 0 : index
    %c0_108 = arith.constant 0 : index
    %276 = vector.load %arg6[%c0_107, %c0_108] : memref<16x128xbf16, #tpu.memory_space<vmem>>, vector<16x128xbf16>
    tpu.vector_store %arg6[%c0_107, %c0_108], %275 {strides = array<i32>} : memref<16x128xbf16, #tpu.memory_space<vmem>>, vector<16x128xbf16>,
    return
  }
  func.func @transform_0(%arg0: i32, %arg1: i32) -> (i32, i32, i32) {
    %c0_i32 = arith.constant 0 : i32
    %c0_i32_0 = arith.constant 0 : i32
    return %arg1, %arg0, %c0_i32 : i32, i32, i32
  }
  func.func @transform_1(%arg0: i32, %arg1: i32) -> (i32, i32) {
    %c0_i32 = arith.constant 0 : i32
    %c0_i32_0 = arith.constant 0 : i32
    %c0_i32_1 = arith.constant 0 : i32
    return %c0_i32, %c0_i32_0 : i32, i32
  }
  func.func @transform_2(%arg0: i32, %arg1: i32) -> (i32, i32) {
    %c0_i32 = arith.constant 0 : i32
    %c0_i32_0 = arith.constant 0 : i32
    %c0_i32_1 = arith.constant 0 : i32
    return %c0_i32, %c0_i32_0 : i32, i32
  }
  func.func @transform_3(%arg0: i32, %arg1: i32) -> (i32, i32) {
    %c0_i32 = arith.constant 0 : i32
    %c0_i32_0 = arith.constant 0 : i32
    %c0_i32_1 = arith.constant 0 : i32
    return %c0_i32, %c0_i32_0 : i32, i32
  }
  func.func @transform_4(%arg0: i32, %arg1: i32) -> (i32, i32) {
    %c0_i32 = arith.constant 0 : i32
    %c0_i32_0 = arith.constant 0 : i32
    return %arg0, %c0_i32 : i32, i32
  }
}

module attributes {stable_mosaic.version = 11 : i64} {
  func.func @_lstm_seq_kernel(%arg0: i32, %arg1: i32, %arg2: memref<8x16x128xbf16, #tpu.memory_space<vmem>>, %arg3: memref<128x512xbf16, #tpu.memory_space<vmem>>, %arg4: memref<1x512xf32, #tpu.memory_space<vmem>>, %arg5: memref<128x512xbf16, #tpu.memory_space<vmem>>, %arg6: memref<8x16x128xbf16, #tpu.memory_space<vmem>>, %arg7: memref<16x128xbf16, #tpu.memory_space<vmem>>, %arg8: memref<16x128xf32, #tpu.memory_space<vmem>>) attributes {dimension_semantics = [#tpu.dimension_semantics<parallel>, #tpu.dimension_semantics<arbitrary>], iteration_bounds = array<i64: 1, 1>, scalar_prefetch = 0 : i64, scratch_operands = 2 : i64, tpu.core_type = #tpu.core_type<tc>, window_params = [{transform_indices = @transform_0, window_bounds = array<i64: 8, 16, 128>}, {pipeline_mode = #tpu.pipeline_mode<synchronous>, transform_indices = @transform_1, window_bounds = array<i64: 128, 512>}, {pipeline_mode = #tpu.pipeline_mode<synchronous>, transform_indices = @transform_2, window_bounds = array<i64: 1, 512>}, {pipeline_mode = #tpu.pipeline_mode<synchronous>, transform_indices = @transform_3, window_bounds = array<i64: 128, 512>}, {transform_indices = @transform_4, window_bounds = array<i64: 8, 16, 128>}]} {
    %c0_i32 = arith.constant 0 : i32
    %0 = arith.cmpi eq, %arg1, %c0_i32 : i32
    %1 = arith.extui %0 : i1 to i32
    %c0_i32_0 = arith.constant 0 : i32
    %2 = arith.cmpi ne, %1, %c0_i32_0 : i32
    scf.if %2 {
      %cst_122 = arith.constant 0.000000e+00 : bf16
      %299 = vector.broadcast %cst_122 : bf16 to vector<16x128xbf16>
      %c0_123 = arith.constant 0 : index
      %c0_124 = arith.constant 0 : index
      %300 = vector.load %arg7[%c0_123, %c0_124] : memref<16x128xbf16, #tpu.memory_space<vmem>>, vector<16x128xbf16>
      tpu.vector_store %arg7[%c0_123, %c0_124], %299 {strides = array<i32>} : memref<16x128xbf16, #tpu.memory_space<vmem>>, vector<16x128xbf16>,
      %cst_125 = arith.constant 0.000000e+00 : f32
      %301 = vector.broadcast %cst_125 : f32 to vector<16x128xf32>
      %c0_126 = arith.constant 0 : index
      %c0_127 = arith.constant 0 : index
      %302 = vector.load %arg8[%c0_126, %c0_127] : memref<16x128xf32, #tpu.memory_space<vmem>>, vector<16x128xf32>
      tpu.vector_store %arg8[%c0_126, %c0_127], %301 {strides = array<i32>} : memref<16x128xf32, #tpu.memory_space<vmem>>, vector<16x128xf32>,
    } else {
    }
    %c0 = arith.constant 0 : index
    %c0_1 = arith.constant 0 : index
    %c0_2 = arith.constant 0 : index
    %3 = vector.load %arg2[%c0, %c0_1, %c0_2] : memref<8x16x128xbf16, #tpu.memory_space<vmem>>, vector<8x16x128xbf16>
    %4 = vector.shape_cast %3 : vector<8x16x128xbf16> to vector<128x128xbf16>
    %c0_3 = arith.constant 0 : index
    %c0_4 = arith.constant 0 : index
    %5 = vector.load %arg3[%c0_3, %c0_4] : memref<128x512xbf16, #tpu.memory_space<vmem>>, vector<128x512xbf16>
    %cst = arith.constant dense<0.000000e+00> : vector<128x512xf32>
    %6 = tpu.matmul %4, %5, %cst {dimension_numbers = #tpu.dot_dimension_numbers<[1], [0], [0], [1], [0, 0, 1, 1], [], []>} : vector<128x128xbf16>, vector<128x512xbf16>, vector<128x512xf32> -> vector<128x512xf32>
    %c0_5 = arith.constant 0 : index
    %c0_6 = arith.constant 0 : index
    %7 = vector.load %arg4[%c0_5, %c0_6] : memref<1x512xf32, #tpu.memory_space<vmem>>, vector<1x512xf32>
    %8 = vector.broadcast %7 : vector<1x512xf32> to vector<128x512xf32>
    %9 = arith.addf %6, %8 : vector<128x512xf32>
    %c0_7 = arith.constant 0 : index
    %c0_8 = arith.constant 0 : index
    %10 = vector.load %arg5[%c0_7, %c0_8] : memref<128x512xbf16, #tpu.memory_space<vmem>>, vector<128x512xbf16>
    %c0_9 = arith.constant 0 : index
    %c0_10 = arith.constant 0 : index
    %11 = vector.load %arg7[%c0_9, %c0_10] : memref<16x128xbf16, #tpu.memory_space<vmem>>, vector<16x128xbf16>
    %c0_11 = arith.constant 0 : index
    %c0_12 = arith.constant 0 : index
    %12 = vector.load %arg8[%c0_11, %c0_12] : memref<16x128xf32, #tpu.memory_space<vmem>>, vector<16x128xf32>
    %13 = vector.extract_strided_slice %9 {offsets = [0, 0], sizes = [16, 512], strides = [1, 1]} : vector<128x512xf32> to vector<16x512xf32>
    %cst_13 = arith.constant dense<0.000000e+00> : vector<16x512xf32>
    %14 = tpu.matmul %11, %10, %cst_13 {dimension_numbers = #tpu.dot_dimension_numbers<[1], [0], [0], [1], [0, 0, 1, 1], [], []>} : vector<16x128xbf16>, vector<128x512xbf16>, vector<16x512xf32> -> vector<16x512xf32>
    %15 = arith.addf %13, %14 : vector<16x512xf32>
    %16 = vector.extract_strided_slice %15 {offsets = [0, 0], sizes = [16, 128], strides = [1, 1]} : vector<16x512xf32> to vector<16x128xf32>
    %17 = arith.negf %16 : vector<16x128xf32>
    %18 = math.exp %17 : vector<16x128xf32>
    %cst_14 = arith.constant 1.000000e+00 : f32
    %19 = vector.broadcast %cst_14 : f32 to vector<16x128xf32>
    %20 = arith.addf %19, %18 : vector<16x128xf32>
    %21 = arith.divf %19, %20 : vector<16x128xf32>
    %22 = vector.extract_strided_slice %15 {offsets = [0, 128], sizes = [16, 128], strides = [1, 1]} : vector<16x512xf32> to vector<16x128xf32>
    %23 = arith.negf %22 : vector<16x128xf32>
    %24 = math.exp %23 : vector<16x128xf32>
    %cst_15 = arith.constant 1.000000e+00 : f32
    %25 = vector.broadcast %cst_15 : f32 to vector<16x128xf32>
    %26 = arith.addf %25, %24 : vector<16x128xf32>
    %27 = arith.divf %25, %26 : vector<16x128xf32>
    %28 = vector.extract_strided_slice %15 {offsets = [0, 256], sizes = [16, 128], strides = [1, 1]} : vector<16x512xf32> to vector<16x128xf32>
    %29 = math.tanh %28 : vector<16x128xf32>
    %30 = vector.extract_strided_slice %15 {offsets = [0, 384], sizes = [16, 128], strides = [1, 1]} : vector<16x512xf32> to vector<16x128xf32>
    %31 = arith.negf %30 : vector<16x128xf32>
    %32 = math.exp %31 : vector<16x128xf32>
    %cst_16 = arith.constant 1.000000e+00 : f32
    %33 = vector.broadcast %cst_16 : f32 to vector<16x128xf32>
    %34 = arith.addf %33, %32 : vector<16x128xf32>
    %35 = arith.divf %33, %34 : vector<16x128xf32>
    %36 = arith.mulf %27, %12 : vector<16x128xf32>
    %37 = arith.mulf %21, %29 : vector<16x128xf32>
    %38 = arith.addf %36, %37 : vector<16x128xf32>
    %39 = math.tanh %38 : vector<16x128xf32>
    %40 = arith.mulf %35, %39 : vector<16x128xf32>
    %41 = arith.truncf %40 : vector<16x128xf32> to vector<16x128xbf16>
    %c0_17 = arith.constant 0 : index
    %c0_18 = arith.constant 0 : index
    %42 = vector.load %arg7[%c0_17, %c0_18] : memref<16x128xbf16, #tpu.memory_space<vmem>>, vector<16x128xbf16>
    tpu.vector_store %arg7[%c0_17, %c0_18], %41 {strides = array<i32>} : memref<16x128xbf16, #tpu.memory_space<vmem>>, vector<16x128xbf16>,
    %c0_19 = arith.constant 0 : index
    %c0_20 = arith.constant 0 : index
    %43 = vector.load %arg8[%c0_19, %c0_20] : memref<16x128xf32, #tpu.memory_space<vmem>>, vector<16x128xf32>
    tpu.vector_store %arg8[%c0_19, %c0_20], %38 {strides = array<i32>} : memref<16x128xf32, #tpu.memory_space<vmem>>, vector<16x128xf32>,
    %c0_21 = arith.constant 0 : index
    %c0_22 = arith.constant 0 : index
    %c0_23 = arith.constant 0 : index
    %44 = vector.load %arg6[%c0_21, %c0_22, %c0_23] : memref<8x16x128xbf16, #tpu.memory_space<vmem>>, vector<1x16x128xbf16>
    %45 = vector.shape_cast %44 : vector<1x16x128xbf16> to vector<16x128xbf16>
    %46 = vector.shape_cast %41 : vector<16x128xbf16> to vector<1x16x128xbf16>
    tpu.vector_store %arg6[%c0_21, %c0_22, %c0_23], %46 {strides = array<i32>} : memref<8x16x128xbf16, #tpu.memory_space<vmem>>, vector<1x16x128xbf16>,
    %c0_24 = arith.constant 0 : index
    %c0_25 = arith.constant 0 : index
    %47 = vector.load %arg7[%c0_24, %c0_25] : memref<16x128xbf16, #tpu.memory_space<vmem>>, vector<16x128xbf16>
    %c0_26 = arith.constant 0 : index
    %c0_27 = arith.constant 0 : index
    %48 = vector.load %arg8[%c0_26, %c0_27] : memref<16x128xf32, #tpu.memory_space<vmem>>, vector<16x128xf32>
    %49 = vector.extract_strided_slice %9 {offsets = [16, 0], sizes = [16, 512], strides = [1, 1]} : vector<128x512xf32> to vector<16x512xf32>
    %cst_28 = arith.constant dense<0.000000e+00> : vector<16x512xf32>
    %50 = tpu.matmul %47, %10, %cst_28 {dimension_numbers = #tpu.dot_dimension_numbers<[1], [0], [0], [1], [0, 0, 1, 1], [], []>} : vector<16x128xbf16>, vector<128x512xbf16>, vector<16x512xf32> -> vector<16x512xf32>
    %51 = arith.addf %49, %50 : vector<16x512xf32>
    %52 = vector.extract_strided_slice %51 {offsets = [0, 0], sizes = [16, 128], strides = [1, 1]} : vector<16x512xf32> to vector<16x128xf32>
    %53 = arith.negf %52 : vector<16x128xf32>
    %54 = math.exp %53 : vector<16x128xf32>
    %cst_29 = arith.constant 1.000000e+00 : f32
    %55 = vector.broadcast %cst_29 : f32 to vector<16x128xf32>
    %56 = arith.addf %55, %54 : vector<16x128xf32>
    %57 = arith.divf %55, %56 : vector<16x128xf32>
    %58 = vector.extract_strided_slice %51 {offsets = [0, 128], sizes = [16, 128], strides = [1, 1]} : vector<16x512xf32> to vector<16x128xf32>
    %59 = arith.negf %58 : vector<16x128xf32>
    %60 = math.exp %59 : vector<16x128xf32>
    %cst_30 = arith.constant 1.000000e+00 : f32
    %61 = vector.broadcast %cst_30 : f32 to vector<16x128xf32>
    %62 = arith.addf %61, %60 : vector<16x128xf32>
    %63 = arith.divf %61, %62 : vector<16x128xf32>
    %64 = vector.extract_strided_slice %51 {offsets = [0, 256], sizes = [16, 128], strides = [1, 1]} : vector<16x512xf32> to vector<16x128xf32>
    %65 = math.tanh %64 : vector<16x128xf32>
    %66 = vector.extract_strided_slice %51 {offsets = [0, 384], sizes = [16, 128], strides = [1, 1]} : vector<16x512xf32> to vector<16x128xf32>
    %67 = arith.negf %66 : vector<16x128xf32>
    %68 = math.exp %67 : vector<16x128xf32>
    %cst_31 = arith.constant 1.000000e+00 : f32
    %69 = vector.broadcast %cst_31 : f32 to vector<16x128xf32>
    %70 = arith.addf %69, %68 : vector<16x128xf32>
    %71 = arith.divf %69, %70 : vector<16x128xf32>
    %72 = arith.mulf %63, %48 : vector<16x128xf32>
    %73 = arith.mulf %57, %65 : vector<16x128xf32>
    %74 = arith.addf %72, %73 : vector<16x128xf32>
    %75 = math.tanh %74 : vector<16x128xf32>
    %76 = arith.mulf %71, %75 : vector<16x128xf32>
    %77 = arith.truncf %76 : vector<16x128xf32> to vector<16x128xbf16>
    %c0_32 = arith.constant 0 : index
    %c0_33 = arith.constant 0 : index
    %78 = vector.load %arg7[%c0_32, %c0_33] : memref<16x128xbf16, #tpu.memory_space<vmem>>, vector<16x128xbf16>
    tpu.vector_store %arg7[%c0_32, %c0_33], %77 {strides = array<i32>} : memref<16x128xbf16, #tpu.memory_space<vmem>>, vector<16x128xbf16>,
    %c0_34 = arith.constant 0 : index
    %c0_35 = arith.constant 0 : index
    %79 = vector.load %arg8[%c0_34, %c0_35] : memref<16x128xf32, #tpu.memory_space<vmem>>, vector<16x128xf32>
    tpu.vector_store %arg8[%c0_34, %c0_35], %74 {strides = array<i32>} : memref<16x128xf32, #tpu.memory_space<vmem>>, vector<16x128xf32>,
    %c1 = arith.constant 1 : index
    %c0_36 = arith.constant 0 : index
    %c0_37 = arith.constant 0 : index
    %80 = vector.load %arg6[%c1, %c0_36, %c0_37] : memref<8x16x128xbf16, #tpu.memory_space<vmem>>, vector<1x16x128xbf16>
    %81 = vector.shape_cast %80 : vector<1x16x128xbf16> to vector<16x128xbf16>
    %82 = vector.shape_cast %77 : vector<16x128xbf16> to vector<1x16x128xbf16>
    tpu.vector_store %arg6[%c1, %c0_36, %c0_37], %82 {strides = array<i32>} : memref<8x16x128xbf16, #tpu.memory_space<vmem>>, vector<1x16x128xbf16>,
    %c0_38 = arith.constant 0 : index
    %c0_39 = arith.constant 0 : index
    %83 = vector.load %arg7[%c0_38, %c0_39] : memref<16x128xbf16, #tpu.memory_space<vmem>>, vector<16x128xbf16>
    %c0_40 = arith.constant 0 : index
    %c0_41 = arith.constant 0 : index
    %84 = vector.load %arg8[%c0_40, %c0_41] : memref<16x128xf32, #tpu.memory_space<vmem>>, vector<16x128xf32>
    %85 = vector.extract_strided_slice %9 {offsets = [32, 0], sizes = [16, 512], strides = [1, 1]} : vector<128x512xf32> to vector<16x512xf32>
    %cst_42 = arith.constant dense<0.000000e+00> : vector<16x512xf32>
    %86 = tpu.matmul %83, %10, %cst_42 {dimension_numbers = #tpu.dot_dimension_numbers<[1], [0], [0], [1], [0, 0, 1, 1], [], []>} : vector<16x128xbf16>, vector<128x512xbf16>, vector<16x512xf32> -> vector<16x512xf32>
    %87 = arith.addf %85, %86 : vector<16x512xf32>
    %88 = vector.extract_strided_slice %87 {offsets = [0, 0], sizes = [16, 128], strides = [1, 1]} : vector<16x512xf32> to vector<16x128xf32>
    %89 = arith.negf %88 : vector<16x128xf32>
    %90 = math.exp %89 : vector<16x128xf32>
    %cst_43 = arith.constant 1.000000e+00 : f32
    %91 = vector.broadcast %cst_43 : f32 to vector<16x128xf32>
    %92 = arith.addf %91, %90 : vector<16x128xf32>
    %93 = arith.divf %91, %92 : vector<16x128xf32>
    %94 = vector.extract_strided_slice %87 {offsets = [0, 128], sizes = [16, 128], strides = [1, 1]} : vector<16x512xf32> to vector<16x128xf32>
    %95 = arith.negf %94 : vector<16x128xf32>
    %96 = math.exp %95 : vector<16x128xf32>
    %cst_44 = arith.constant 1.000000e+00 : f32
    %97 = vector.broadcast %cst_44 : f32 to vector<16x128xf32>
    %98 = arith.addf %97, %96 : vector<16x128xf32>
    %99 = arith.divf %97, %98 : vector<16x128xf32>
    %100 = vector.extract_strided_slice %87 {offsets = [0, 256], sizes = [16, 128], strides = [1, 1]} : vector<16x512xf32> to vector<16x128xf32>
    %101 = math.tanh %100 : vector<16x128xf32>
    %102 = vector.extract_strided_slice %87 {offsets = [0, 384], sizes = [16, 128], strides = [1, 1]} : vector<16x512xf32> to vector<16x128xf32>
    %103 = arith.negf %102 : vector<16x128xf32>
    %104 = math.exp %103 : vector<16x128xf32>
    %cst_45 = arith.constant 1.000000e+00 : f32
    %105 = vector.broadcast %cst_45 : f32 to vector<16x128xf32>
    %106 = arith.addf %105, %104 : vector<16x128xf32>
    %107 = arith.divf %105, %106 : vector<16x128xf32>
    %108 = arith.mulf %99, %84 : vector<16x128xf32>
    %109 = arith.mulf %93, %101 : vector<16x128xf32>
    %110 = arith.addf %108, %109 : vector<16x128xf32>
    %111 = math.tanh %110 : vector<16x128xf32>
    %112 = arith.mulf %107, %111 : vector<16x128xf32>
    %113 = arith.truncf %112 : vector<16x128xf32> to vector<16x128xbf16>
    %c0_46 = arith.constant 0 : index
    %c0_47 = arith.constant 0 : index
    %114 = vector.load %arg7[%c0_46, %c0_47] : memref<16x128xbf16, #tpu.memory_space<vmem>>, vector<16x128xbf16>
    tpu.vector_store %arg7[%c0_46, %c0_47], %113 {strides = array<i32>} : memref<16x128xbf16, #tpu.memory_space<vmem>>, vector<16x128xbf16>,
    %c0_48 = arith.constant 0 : index
    %c0_49 = arith.constant 0 : index
    %115 = vector.load %arg8[%c0_48, %c0_49] : memref<16x128xf32, #tpu.memory_space<vmem>>, vector<16x128xf32>
    tpu.vector_store %arg8[%c0_48, %c0_49], %110 {strides = array<i32>} : memref<16x128xf32, #tpu.memory_space<vmem>>, vector<16x128xf32>,
    %c2 = arith.constant 2 : index
    %c0_50 = arith.constant 0 : index
    %c0_51 = arith.constant 0 : index
    %116 = vector.load %arg6[%c2, %c0_50, %c0_51] : memref<8x16x128xbf16, #tpu.memory_space<vmem>>, vector<1x16x128xbf16>
    %117 = vector.shape_cast %116 : vector<1x16x128xbf16> to vector<16x128xbf16>
    %118 = vector.shape_cast %113 : vector<16x128xbf16> to vector<1x16x128xbf16>
    tpu.vector_store %arg6[%c2, %c0_50, %c0_51], %118 {strides = array<i32>} : memref<8x16x128xbf16, #tpu.memory_space<vmem>>, vector<1x16x128xbf16>,
    %c0_52 = arith.constant 0 : index
    %c0_53 = arith.constant 0 : index
    %119 = vector.load %arg7[%c0_52, %c0_53] : memref<16x128xbf16, #tpu.memory_space<vmem>>, vector<16x128xbf16>
    %c0_54 = arith.constant 0 : index
    %c0_55 = arith.constant 0 : index
    %120 = vector.load %arg8[%c0_54, %c0_55] : memref<16x128xf32, #tpu.memory_space<vmem>>, vector<16x128xf32>
    %121 = vector.extract_strided_slice %9 {offsets = [48, 0], sizes = [16, 512], strides = [1, 1]} : vector<128x512xf32> to vector<16x512xf32>
    %cst_56 = arith.constant dense<0.000000e+00> : vector<16x512xf32>
    %122 = tpu.matmul %119, %10, %cst_56 {dimension_numbers = #tpu.dot_dimension_numbers<[1], [0], [0], [1], [0, 0, 1, 1], [], []>} : vector<16x128xbf16>, vector<128x512xbf16>, vector<16x512xf32> -> vector<16x512xf32>
    %123 = arith.addf %121, %122 : vector<16x512xf32>
    %124 = vector.extract_strided_slice %123 {offsets = [0, 0], sizes = [16, 128], strides = [1, 1]} : vector<16x512xf32> to vector<16x128xf32>
    %125 = arith.negf %124 : vector<16x128xf32>
    %126 = math.exp %125 : vector<16x128xf32>
    %cst_57 = arith.constant 1.000000e+00 : f32
    %127 = vector.broadcast %cst_57 : f32 to vector<16x128xf32>
    %128 = arith.addf %127, %126 : vector<16x128xf32>
    %129 = arith.divf %127, %128 : vector<16x128xf32>
    %130 = vector.extract_strided_slice %123 {offsets = [0, 128], sizes = [16, 128], strides = [1, 1]} : vector<16x512xf32> to vector<16x128xf32>
    %131 = arith.negf %130 : vector<16x128xf32>
    %132 = math.exp %131 : vector<16x128xf32>
    %cst_58 = arith.constant 1.000000e+00 : f32
    %133 = vector.broadcast %cst_58 : f32 to vector<16x128xf32>
    %134 = arith.addf %133, %132 : vector<16x128xf32>
    %135 = arith.divf %133, %134 : vector<16x128xf32>
    %136 = vector.extract_strided_slice %123 {offsets = [0, 256], sizes = [16, 128], strides = [1, 1]} : vector<16x512xf32> to vector<16x128xf32>
    %137 = math.tanh %136 : vector<16x128xf32>
    %138 = vector.extract_strided_slice %123 {offsets = [0, 384], sizes = [16, 128], strides = [1, 1]} : vector<16x512xf32> to vector<16x128xf32>
    %139 = arith.negf %138 : vector<16x128xf32>
    %140 = math.exp %139 : vector<16x128xf32>
    %cst_59 = arith.constant 1.000000e+00 : f32
    %141 = vector.broadcast %cst_59 : f32 to vector<16x128xf32>
    %142 = arith.addf %141, %140 : vector<16x128xf32>
    %143 = arith.divf %141, %142 : vector<16x128xf32>
    %144 = arith.mulf %135, %120 : vector<16x128xf32>
    %145 = arith.mulf %129, %137 : vector<16x128xf32>
    %146 = arith.addf %144, %145 : vector<16x128xf32>
    %147 = math.tanh %146 : vector<16x128xf32>
    %148 = arith.mulf %143, %147 : vector<16x128xf32>
    %149 = arith.truncf %148 : vector<16x128xf32> to vector<16x128xbf16>
    %c0_60 = arith.constant 0 : index
    %c0_61 = arith.constant 0 : index
    %150 = vector.load %arg7[%c0_60, %c0_61] : memref<16x128xbf16, #tpu.memory_space<vmem>>, vector<16x128xbf16>
    tpu.vector_store %arg7[%c0_60, %c0_61], %149 {strides = array<i32>} : memref<16x128xbf16, #tpu.memory_space<vmem>>, vector<16x128xbf16>,
    %c0_62 = arith.constant 0 : index
    %c0_63 = arith.constant 0 : index
    %151 = vector.load %arg8[%c0_62, %c0_63] : memref<16x128xf32, #tpu.memory_space<vmem>>, vector<16x128xf32>
    tpu.vector_store %arg8[%c0_62, %c0_63], %146 {strides = array<i32>} : memref<16x128xf32, #tpu.memory_space<vmem>>, vector<16x128xf32>,
    %c3 = arith.constant 3 : index
    %c0_64 = arith.constant 0 : index
    %c0_65 = arith.constant 0 : index
    %152 = vector.load %arg6[%c3, %c0_64, %c0_65] : memref<8x16x128xbf16, #tpu.memory_space<vmem>>, vector<1x16x128xbf16>
    %153 = vector.shape_cast %152 : vector<1x16x128xbf16> to vector<16x128xbf16>
    %154 = vector.shape_cast %149 : vector<16x128xbf16> to vector<1x16x128xbf16>
    tpu.vector_store %arg6[%c3, %c0_64, %c0_65], %154 {strides = array<i32>} : memref<8x16x128xbf16, #tpu.memory_space<vmem>>, vector<1x16x128xbf16>,
    %c0_66 = arith.constant 0 : index
    %c0_67 = arith.constant 0 : index
    %155 = vector.load %arg7[%c0_66, %c0_67] : memref<16x128xbf16, #tpu.memory_space<vmem>>, vector<16x128xbf16>
    %c0_68 = arith.constant 0 : index
    %c0_69 = arith.constant 0 : index
    %156 = vector.load %arg8[%c0_68, %c0_69] : memref<16x128xf32, #tpu.memory_space<vmem>>, vector<16x128xf32>
    %157 = vector.extract_strided_slice %9 {offsets = [64, 0], sizes = [16, 512], strides = [1, 1]} : vector<128x512xf32> to vector<16x512xf32>
    %cst_70 = arith.constant dense<0.000000e+00> : vector<16x512xf32>
    %158 = tpu.matmul %155, %10, %cst_70 {dimension_numbers = #tpu.dot_dimension_numbers<[1], [0], [0], [1], [0, 0, 1, 1], [], []>} : vector<16x128xbf16>, vector<128x512xbf16>, vector<16x512xf32> -> vector<16x512xf32>
    %159 = arith.addf %157, %158 : vector<16x512xf32>
    %160 = vector.extract_strided_slice %159 {offsets = [0, 0], sizes = [16, 128], strides = [1, 1]} : vector<16x512xf32> to vector<16x128xf32>
    %161 = arith.negf %160 : vector<16x128xf32>
    %162 = math.exp %161 : vector<16x128xf32>
    %cst_71 = arith.constant 1.000000e+00 : f32
    %163 = vector.broadcast %cst_71 : f32 to vector<16x128xf32>
    %164 = arith.addf %163, %162 : vector<16x128xf32>
    %165 = arith.divf %163, %164 : vector<16x128xf32>
    %166 = vector.extract_strided_slice %159 {offsets = [0, 128], sizes = [16, 128], strides = [1, 1]} : vector<16x512xf32> to vector<16x128xf32>
    %167 = arith.negf %166 : vector<16x128xf32>
    %168 = math.exp %167 : vector<16x128xf32>
    %cst_72 = arith.constant 1.000000e+00 : f32
    %169 = vector.broadcast %cst_72 : f32 to vector<16x128xf32>
    %170 = arith.addf %169, %168 : vector<16x128xf32>
    %171 = arith.divf %169, %170 : vector<16x128xf32>
    %172 = vector.extract_strided_slice %159 {offsets = [0, 256], sizes = [16, 128], strides = [1, 1]} : vector<16x512xf32> to vector<16x128xf32>
    %173 = math.tanh %172 : vector<16x128xf32>
    %174 = vector.extract_strided_slice %159 {offsets = [0, 384], sizes = [16, 128], strides = [1, 1]} : vector<16x512xf32> to vector<16x128xf32>
    %175 = arith.negf %174 : vector<16x128xf32>
    %176 = math.exp %175 : vector<16x128xf32>
    %cst_73 = arith.constant 1.000000e+00 : f32
    %177 = vector.broadcast %cst_73 : f32 to vector<16x128xf32>
    %178 = arith.addf %177, %176 : vector<16x128xf32>
    %179 = arith.divf %177, %178 : vector<16x128xf32>
    %180 = arith.mulf %171, %156 : vector<16x128xf32>
    %181 = arith.mulf %165, %173 : vector<16x128xf32>
    %182 = arith.addf %180, %181 : vector<16x128xf32>
    %183 = math.tanh %182 : vector<16x128xf32>
    %184 = arith.mulf %179, %183 : vector<16x128xf32>
    %185 = arith.truncf %184 : vector<16x128xf32> to vector<16x128xbf16>
    %c0_74 = arith.constant 0 : index
    %c0_75 = arith.constant 0 : index
    %186 = vector.load %arg7[%c0_74, %c0_75] : memref<16x128xbf16, #tpu.memory_space<vmem>>, vector<16x128xbf16>
    tpu.vector_store %arg7[%c0_74, %c0_75], %185 {strides = array<i32>} : memref<16x128xbf16, #tpu.memory_space<vmem>>, vector<16x128xbf16>,
    %c0_76 = arith.constant 0 : index
    %c0_77 = arith.constant 0 : index
    %187 = vector.load %arg8[%c0_76, %c0_77] : memref<16x128xf32, #tpu.memory_space<vmem>>, vector<16x128xf32>
    tpu.vector_store %arg8[%c0_76, %c0_77], %182 {strides = array<i32>} : memref<16x128xf32, #tpu.memory_space<vmem>>, vector<16x128xf32>,
    %c4 = arith.constant 4 : index
    %c0_78 = arith.constant 0 : index
    %c0_79 = arith.constant 0 : index
    %188 = vector.load %arg6[%c4, %c0_78, %c0_79] : memref<8x16x128xbf16, #tpu.memory_space<vmem>>, vector<1x16x128xbf16>
    %189 = vector.shape_cast %188 : vector<1x16x128xbf16> to vector<16x128xbf16>
    %190 = vector.shape_cast %185 : vector<16x128xbf16> to vector<1x16x128xbf16>
    tpu.vector_store %arg6[%c4, %c0_78, %c0_79], %190 {strides = array<i32>} : memref<8x16x128xbf16, #tpu.memory_space<vmem>>, vector<1x16x128xbf16>,
    %c0_80 = arith.constant 0 : index
    %c0_81 = arith.constant 0 : index
    %191 = vector.load %arg7[%c0_80, %c0_81] : memref<16x128xbf16, #tpu.memory_space<vmem>>, vector<16x128xbf16>
    %c0_82 = arith.constant 0 : index
    %c0_83 = arith.constant 0 : index
    %192 = vector.load %arg8[%c0_82, %c0_83] : memref<16x128xf32, #tpu.memory_space<vmem>>, vector<16x128xf32>
    %193 = vector.extract_strided_slice %9 {offsets = [80, 0], sizes = [16, 512], strides = [1, 1]} : vector<128x512xf32> to vector<16x512xf32>
    %cst_84 = arith.constant dense<0.000000e+00> : vector<16x512xf32>
    %194 = tpu.matmul %191, %10, %cst_84 {dimension_numbers = #tpu.dot_dimension_numbers<[1], [0], [0], [1], [0, 0, 1, 1], [], []>} : vector<16x128xbf16>, vector<128x512xbf16>, vector<16x512xf32> -> vector<16x512xf32>
    %195 = arith.addf %193, %194 : vector<16x512xf32>
    %196 = vector.extract_strided_slice %195 {offsets = [0, 0], sizes = [16, 128], strides = [1, 1]} : vector<16x512xf32> to vector<16x128xf32>
    %197 = arith.negf %196 : vector<16x128xf32>
    %198 = math.exp %197 : vector<16x128xf32>
    %cst_85 = arith.constant 1.000000e+00 : f32
    %199 = vector.broadcast %cst_85 : f32 to vector<16x128xf32>
    %200 = arith.addf %199, %198 : vector<16x128xf32>
    %201 = arith.divf %199, %200 : vector<16x128xf32>
    %202 = vector.extract_strided_slice %195 {offsets = [0, 128], sizes = [16, 128], strides = [1, 1]} : vector<16x512xf32> to vector<16x128xf32>
    %203 = arith.negf %202 : vector<16x128xf32>
    %204 = math.exp %203 : vector<16x128xf32>
    %cst_86 = arith.constant 1.000000e+00 : f32
    %205 = vector.broadcast %cst_86 : f32 to vector<16x128xf32>
    %206 = arith.addf %205, %204 : vector<16x128xf32>
    %207 = arith.divf %205, %206 : vector<16x128xf32>
    %208 = vector.extract_strided_slice %195 {offsets = [0, 256], sizes = [16, 128], strides = [1, 1]} : vector<16x512xf32> to vector<16x128xf32>
    %209 = math.tanh %208 : vector<16x128xf32>
    %210 = vector.extract_strided_slice %195 {offsets = [0, 384], sizes = [16, 128], strides = [1, 1]} : vector<16x512xf32> to vector<16x128xf32>
    %211 = arith.negf %210 : vector<16x128xf32>
    %212 = math.exp %211 : vector<16x128xf32>
    %cst_87 = arith.constant 1.000000e+00 : f32
    %213 = vector.broadcast %cst_87 : f32 to vector<16x128xf32>
    %214 = arith.addf %213, %212 : vector<16x128xf32>
    %215 = arith.divf %213, %214 : vector<16x128xf32>
    %216 = arith.mulf %207, %192 : vector<16x128xf32>
    %217 = arith.mulf %201, %209 : vector<16x128xf32>
    %218 = arith.addf %216, %217 : vector<16x128xf32>
    %219 = math.tanh %218 : vector<16x128xf32>
    %220 = arith.mulf %215, %219 : vector<16x128xf32>
    %221 = arith.truncf %220 : vector<16x128xf32> to vector<16x128xbf16>
    %c0_88 = arith.constant 0 : index
    %c0_89 = arith.constant 0 : index
    %222 = vector.load %arg7[%c0_88, %c0_89] : memref<16x128xbf16, #tpu.memory_space<vmem>>, vector<16x128xbf16>
    tpu.vector_store %arg7[%c0_88, %c0_89], %221 {strides = array<i32>} : memref<16x128xbf16, #tpu.memory_space<vmem>>, vector<16x128xbf16>,
    %c0_90 = arith.constant 0 : index
    %c0_91 = arith.constant 0 : index
    %223 = vector.load %arg8[%c0_90, %c0_91] : memref<16x128xf32, #tpu.memory_space<vmem>>, vector<16x128xf32>
    tpu.vector_store %arg8[%c0_90, %c0_91], %218 {strides = array<i32>} : memref<16x128xf32, #tpu.memory_space<vmem>>, vector<16x128xf32>,
    %c5 = arith.constant 5 : index
    %c0_92 = arith.constant 0 : index
    %c0_93 = arith.constant 0 : index
    %224 = vector.load %arg6[%c5, %c0_92, %c0_93] : memref<8x16x128xbf16, #tpu.memory_space<vmem>>, vector<1x16x128xbf16>
    %225 = vector.shape_cast %224 : vector<1x16x128xbf16> to vector<16x128xbf16>
    %226 = vector.shape_cast %221 : vector<16x128xbf16> to vector<1x16x128xbf16>
    tpu.vector_store %arg6[%c5, %c0_92, %c0_93], %226 {strides = array<i32>} : memref<8x16x128xbf16, #tpu.memory_space<vmem>>, vector<1x16x128xbf16>,
    %c0_94 = arith.constant 0 : index
    %c0_95 = arith.constant 0 : index
    %227 = vector.load %arg7[%c0_94, %c0_95] : memref<16x128xbf16, #tpu.memory_space<vmem>>, vector<16x128xbf16>
    %c0_96 = arith.constant 0 : index
    %c0_97 = arith.constant 0 : index
    %228 = vector.load %arg8[%c0_96, %c0_97] : memref<16x128xf32, #tpu.memory_space<vmem>>, vector<16x128xf32>
    %229 = vector.extract_strided_slice %9 {offsets = [96, 0], sizes = [16, 512], strides = [1, 1]} : vector<128x512xf32> to vector<16x512xf32>
    %cst_98 = arith.constant dense<0.000000e+00> : vector<16x512xf32>
    %230 = tpu.matmul %227, %10, %cst_98 {dimension_numbers = #tpu.dot_dimension_numbers<[1], [0], [0], [1], [0, 0, 1, 1], [], []>} : vector<16x128xbf16>, vector<128x512xbf16>, vector<16x512xf32> -> vector<16x512xf32>
    %231 = arith.addf %229, %230 : vector<16x512xf32>
    %232 = vector.extract_strided_slice %231 {offsets = [0, 0], sizes = [16, 128], strides = [1, 1]} : vector<16x512xf32> to vector<16x128xf32>
    %233 = arith.negf %232 : vector<16x128xf32>
    %234 = math.exp %233 : vector<16x128xf32>
    %cst_99 = arith.constant 1.000000e+00 : f32
    %235 = vector.broadcast %cst_99 : f32 to vector<16x128xf32>
    %236 = arith.addf %235, %234 : vector<16x128xf32>
    %237 = arith.divf %235, %236 : vector<16x128xf32>
    %238 = vector.extract_strided_slice %231 {offsets = [0, 128], sizes = [16, 128], strides = [1, 1]} : vector<16x512xf32> to vector<16x128xf32>
    %239 = arith.negf %238 : vector<16x128xf32>
    %240 = math.exp %239 : vector<16x128xf32>
    %cst_100 = arith.constant 1.000000e+00 : f32
    %241 = vector.broadcast %cst_100 : f32 to vector<16x128xf32>
    %242 = arith.addf %241, %240 : vector<16x128xf32>
    %243 = arith.divf %241, %242 : vector<16x128xf32>
    %244 = vector.extract_strided_slice %231 {offsets = [0, 256], sizes = [16, 128], strides = [1, 1]} : vector<16x512xf32> to vector<16x128xf32>
    %245 = math.tanh %244 : vector<16x128xf32>
    %246 = vector.extract_strided_slice %231 {offsets = [0, 384], sizes = [16, 128], strides = [1, 1]} : vector<16x512xf32> to vector<16x128xf32>
    %247 = arith.negf %246 : vector<16x128xf32>
    %248 = math.exp %247 : vector<16x128xf32>
    %cst_101 = arith.constant 1.000000e+00 : f32
    %249 = vector.broadcast %cst_101 : f32 to vector<16x128xf32>
    %250 = arith.addf %249, %248 : vector<16x128xf32>
    %251 = arith.divf %249, %250 : vector<16x128xf32>
    %252 = arith.mulf %243, %228 : vector<16x128xf32>
    %253 = arith.mulf %237, %245 : vector<16x128xf32>
    %254 = arith.addf %252, %253 : vector<16x128xf32>
    %255 = math.tanh %254 : vector<16x128xf32>
    %256 = arith.mulf %251, %255 : vector<16x128xf32>
    %257 = arith.truncf %256 : vector<16x128xf32> to vector<16x128xbf16>
    %c0_102 = arith.constant 0 : index
    %c0_103 = arith.constant 0 : index
    %258 = vector.load %arg7[%c0_102, %c0_103] : memref<16x128xbf16, #tpu.memory_space<vmem>>, vector<16x128xbf16>
    tpu.vector_store %arg7[%c0_102, %c0_103], %257 {strides = array<i32>} : memref<16x128xbf16, #tpu.memory_space<vmem>>, vector<16x128xbf16>,
    %c0_104 = arith.constant 0 : index
    %c0_105 = arith.constant 0 : index
    %259 = vector.load %arg8[%c0_104, %c0_105] : memref<16x128xf32, #tpu.memory_space<vmem>>, vector<16x128xf32>
    tpu.vector_store %arg8[%c0_104, %c0_105], %254 {strides = array<i32>} : memref<16x128xf32, #tpu.memory_space<vmem>>, vector<16x128xf32>,
    %c6 = arith.constant 6 : index
    %c0_106 = arith.constant 0 : index
    %c0_107 = arith.constant 0 : index
    %260 = vector.load %arg6[%c6, %c0_106, %c0_107] : memref<8x16x128xbf16, #tpu.memory_space<vmem>>, vector<1x16x128xbf16>
    %261 = vector.shape_cast %260 : vector<1x16x128xbf16> to vector<16x128xbf16>
    %262 = vector.shape_cast %257 : vector<16x128xbf16> to vector<1x16x128xbf16>
    tpu.vector_store %arg6[%c6, %c0_106, %c0_107], %262 {strides = array<i32>} : memref<8x16x128xbf16, #tpu.memory_space<vmem>>, vector<1x16x128xbf16>,
    %c0_108 = arith.constant 0 : index
    %c0_109 = arith.constant 0 : index
    %263 = vector.load %arg7[%c0_108, %c0_109] : memref<16x128xbf16, #tpu.memory_space<vmem>>, vector<16x128xbf16>
    %c0_110 = arith.constant 0 : index
    %c0_111 = arith.constant 0 : index
    %264 = vector.load %arg8[%c0_110, %c0_111] : memref<16x128xf32, #tpu.memory_space<vmem>>, vector<16x128xf32>
    %265 = vector.extract_strided_slice %9 {offsets = [112, 0], sizes = [16, 512], strides = [1, 1]} : vector<128x512xf32> to vector<16x512xf32>
    %cst_112 = arith.constant dense<0.000000e+00> : vector<16x512xf32>
    %266 = tpu.matmul %263, %10, %cst_112 {dimension_numbers = #tpu.dot_dimension_numbers<[1], [0], [0], [1], [0, 0, 1, 1], [], []>} : vector<16x128xbf16>, vector<128x512xbf16>, vector<16x512xf32> -> vector<16x512xf32>
    %267 = arith.addf %265, %266 : vector<16x512xf32>
    %268 = vector.extract_strided_slice %267 {offsets = [0, 0], sizes = [16, 128], strides = [1, 1]} : vector<16x512xf32> to vector<16x128xf32>
    %269 = arith.negf %268 : vector<16x128xf32>
    %270 = math.exp %269 : vector<16x128xf32>
    %cst_113 = arith.constant 1.000000e+00 : f32
    %271 = vector.broadcast %cst_113 : f32 to vector<16x128xf32>
    %272 = arith.addf %271, %270 : vector<16x128xf32>
    %273 = arith.divf %271, %272 : vector<16x128xf32>
    %274 = vector.extract_strided_slice %267 {offsets = [0, 128], sizes = [16, 128], strides = [1, 1]} : vector<16x512xf32> to vector<16x128xf32>
    %275 = arith.negf %274 : vector<16x128xf32>
    %276 = math.exp %275 : vector<16x128xf32>
    %cst_114 = arith.constant 1.000000e+00 : f32
    %277 = vector.broadcast %cst_114 : f32 to vector<16x128xf32>
    %278 = arith.addf %277, %276 : vector<16x128xf32>
    %279 = arith.divf %277, %278 : vector<16x128xf32>
    %280 = vector.extract_strided_slice %267 {offsets = [0, 256], sizes = [16, 128], strides = [1, 1]} : vector<16x512xf32> to vector<16x128xf32>
    %281 = math.tanh %280 : vector<16x128xf32>
    %282 = vector.extract_strided_slice %267 {offsets = [0, 384], sizes = [16, 128], strides = [1, 1]} : vector<16x512xf32> to vector<16x128xf32>
    %283 = arith.negf %282 : vector<16x128xf32>
    %284 = math.exp %283 : vector<16x128xf32>
    %cst_115 = arith.constant 1.000000e+00 : f32
    %285 = vector.broadcast %cst_115 : f32 to vector<16x128xf32>
    %286 = arith.addf %285, %284 : vector<16x128xf32>
    %287 = arith.divf %285, %286 : vector<16x128xf32>
    %288 = arith.mulf %279, %264 : vector<16x128xf32>
    %289 = arith.mulf %273, %281 : vector<16x128xf32>
    %290 = arith.addf %288, %289 : vector<16x128xf32>
    %291 = math.tanh %290 : vector<16x128xf32>
    %292 = arith.mulf %287, %291 : vector<16x128xf32>
    %293 = arith.truncf %292 : vector<16x128xf32> to vector<16x128xbf16>
    %c0_116 = arith.constant 0 : index
    %c0_117 = arith.constant 0 : index
    %294 = vector.load %arg7[%c0_116, %c0_117] : memref<16x128xbf16, #tpu.memory_space<vmem>>, vector<16x128xbf16>
    tpu.vector_store %arg7[%c0_116, %c0_117], %293 {strides = array<i32>} : memref<16x128xbf16, #tpu.memory_space<vmem>>, vector<16x128xbf16>,
    %c0_118 = arith.constant 0 : index
    %c0_119 = arith.constant 0 : index
    %295 = vector.load %arg8[%c0_118, %c0_119] : memref<16x128xf32, #tpu.memory_space<vmem>>, vector<16x128xf32>
    tpu.vector_store %arg8[%c0_118, %c0_119], %290 {strides = array<i32>} : memref<16x128xf32, #tpu.memory_space<vmem>>, vector<16x128xf32>,
    %c7 = arith.constant 7 : index
    %c0_120 = arith.constant 0 : index
    %c0_121 = arith.constant 0 : index
    %296 = vector.load %arg6[%c7, %c0_120, %c0_121] : memref<8x16x128xbf16, #tpu.memory_space<vmem>>, vector<1x16x128xbf16>
    %297 = vector.shape_cast %296 : vector<1x16x128xbf16> to vector<16x128xbf16>
    %298 = vector.shape_cast %293 : vector<16x128xbf16> to vector<1x16x128xbf16>
    tpu.vector_store %arg6[%c7, %c0_120, %c0_121], %298 {strides = array<i32>} : memref<8x16x128xbf16, #tpu.memory_space<vmem>>, vector<1x16x128xbf16>,
    return
  }
  func.func @transform_0(%arg0: i32, %arg1: i32) -> (i32, i32, i32) {
    %c0_i32 = arith.constant 0 : i32
    %c0_i32_0 = arith.constant 0 : i32
    return %arg1, %arg0, %c0_i32 : i32, i32, i32
  }
  func.func @transform_1(%arg0: i32, %arg1: i32) -> (i32, i32) {
    %c0_i32 = arith.constant 0 : i32
    %c0_i32_0 = arith.constant 0 : i32
    %c0_i32_1 = arith.constant 0 : i32
    return %c0_i32, %c0_i32_0 : i32, i32
  }
  func.func @transform_2(%arg0: i32, %arg1: i32) -> (i32, i32) {
    %c0_i32 = arith.constant 0 : i32
    %c0_i32_0 = arith.constant 0 : i32
    %c0_i32_1 = arith.constant 0 : i32
    return %c0_i32, %c0_i32_0 : i32, i32
  }
  func.func @transform_3(%arg0: i32, %arg1: i32) -> (i32, i32) {
    %c0_i32 = arith.constant 0 : i32
    %c0_i32_0 = arith.constant 0 : i32
    %c0_i32_1 = arith.constant 0 : i32
    return %c0_i32, %c0_i32_0 : i32, i32
  }
  func.func @transform_4(%arg0: i32, %arg1: i32) -> (i32, i32, i32) {
    %c0_i32 = arith.constant 0 : i32
    %c0_i32_0 = arith.constant 0 : i32
    return %arg1, %arg0, %c0_i32 : i32, i32, i32
  }
}

module attributes {stable_mosaic.version = 11 : i64} {
  func.func @_fc_kernel(%arg0: i32, %arg1: memref<16x128xbf16, #tpu.memory_space<vmem>>, %arg2: memref<128x128xbf16, #tpu.memory_space<vmem>>, %arg3: memref<1x128xf32, #tpu.memory_space<vmem>>, %arg4: memref<16x128xf32, #tpu.memory_space<vmem>>) attributes {dimension_semantics = [#tpu.dimension_semantics<arbitrary>], iteration_bounds = array<i64: 1>, scalar_prefetch = 0 : i64, scratch_operands = 0 : i64, tpu.core_type = #tpu.core_type<tc>, window_params = [{pipeline_mode = #tpu.pipeline_mode<synchronous>, transform_indices = @transform_0, window_bounds = array<i64: 16, 128>}, {pipeline_mode = #tpu.pipeline_mode<synchronous>, transform_indices = @transform_1, window_bounds = array<i64: 128, 128>}, {pipeline_mode = #tpu.pipeline_mode<synchronous>, transform_indices = @transform_2, window_bounds = array<i64: 1, 128>}, {pipeline_mode = #tpu.pipeline_mode<synchronous>, transform_indices = @transform_3, window_bounds = array<i64: 16, 128>}]} {
    %c0 = arith.constant 0 : index
    %c0_0 = arith.constant 0 : index
    %0 = vector.load %arg1[%c0, %c0_0] : memref<16x128xbf16, #tpu.memory_space<vmem>>, vector<16x128xbf16>
    %c0_1 = arith.constant 0 : index
    %c0_2 = arith.constant 0 : index
    %1 = vector.load %arg2[%c0_1, %c0_2] : memref<128x128xbf16, #tpu.memory_space<vmem>>, vector<128x128xbf16>
    %cst = arith.constant dense<0.000000e+00> : vector<16x128xf32>
    %2 = tpu.matmul %0, %1, %cst {dimension_numbers = #tpu.dot_dimension_numbers<[1], [0], [0], [1], [0, 0, 1, 1], [], []>} : vector<16x128xbf16>, vector<128x128xbf16>, vector<16x128xf32> -> vector<16x128xf32>
    %c0_3 = arith.constant 0 : index
    %c0_4 = arith.constant 0 : index
    %3 = vector.load %arg3[%c0_3, %c0_4] : memref<1x128xf32, #tpu.memory_space<vmem>>, vector<1x128xf32>
    %4 = vector.broadcast %3 : vector<1x128xf32> to vector<16x128xf32>
    %5 = arith.addf %2, %4 : vector<16x128xf32>
    %c0_5 = arith.constant 0 : index
    %c0_6 = arith.constant 0 : index
    %6 = vector.load %arg4[%c0_5, %c0_6] : memref<16x128xf32, #tpu.memory_space<vmem>>, vector<16x128xf32>
    tpu.vector_store %arg4[%c0_5, %c0_6], %5 {strides = array<i32>} : memref<16x128xf32, #tpu.memory_space<vmem>>, vector<16x128xf32>,
    return
  }
  func.func @transform_0(%arg0: i32) -> (i32, i32) {
    %c0_i32 = arith.constant 0 : i32
    %c0_i32_0 = arith.constant 0 : i32
    %c0_i32_1 = arith.constant 0 : i32
    return %c0_i32, %c0_i32_0 : i32, i32
  }
  func.func @transform_1(%arg0: i32) -> (i32, i32) {
    %c0_i32 = arith.constant 0 : i32
    %c0_i32_0 = arith.constant 0 : i32
    %c0_i32_1 = arith.constant 0 : i32
    return %c0_i32, %c0_i32_0 : i32, i32
  }
  func.func @transform_2(%arg0: i32) -> (i32, i32) {
    %c0_i32 = arith.constant 0 : i32
    %c0_i32_0 = arith.constant 0 : i32
    %c0_i32_1 = arith.constant 0 : i32
    return %c0_i32, %c0_i32_0 : i32, i32
  }
  func.func @transform_3(%arg0: i32) -> (i32, i32) {
    %c0_i32 = arith.constant 0 : i32
    %c0_i32_0 = arith.constant 0 : i32
    %c0_i32_1 = arith.constant 0 : i32
    return %c0_i32, %c0_i32_0 : i32, i32
  }
}

</mosaic_0001>

<llo_original>
// kernel: lstm_model_forward.5
$region0: #{lstm_model_forward.5}
  #allocation0 [shape = 'u32[]', space=smem, size = 0x4, offset = 0x4, fixed_abs, tag = 'smem constant byte address 0x4 - core index']
  #allocation1 [shape = 'u32[144,128]{1,0:T(1,128)}', space=vmem, size = 0x12000, scoped, tag = 'internal scratch']
  %s0 = inlined_call_operand.vmem [shape: bf16[16,128], index: 0, kind: input, shape index: {}]
  %s1 = inlined_call_operand.vmem [shape: bf16[128,128], index: 1, kind: input, shape index: {}]
  %s2 = inlined_call_operand.vmem [shape: f32[1,128], index: 2, kind: input, shape index: {}]
  %s3 = inlined_call_operand.vmem [shape: f32[16,128], index: 3, kind: output, shape index: {}]
  %s4 = sld [smem:[#allocation0]]
  $region22: #{lstm_model_forward.5} parent=0
    _
  %s6 = ssub.s32 1, %s4
  %s7 = scalar_select 0, %s6, %s4
  // Predicated region
  $region2: #{lstm_model_forward.5} parent=0 // pred_check
    _
  $region3: #{lstm_model_forward.5} parent=0 // pred_check_branch
    %9 = sbr.rel (0) target = $region5
  $region4: #{lstm_model_forward.5} parent=0 // pred_region
    _
  $region5: #{lstm_model_forward.5} parent=0 // pred_fallthru
    _
  // Predicated region
  $region6: #{lstm_model_forward.5} parent=0 // pred_check
    _
  $region7: #{lstm_model_forward.5} parent=0 // pred_check_branch
    %11 = sbr.rel (0) target = $region9
  $region8: #{lstm_model_forward.5} parent=0 // pred_region
    _
  $region9: #{lstm_model_forward.5} parent=0 // pred_fallthru
    _
  // Predicated region
  $region10: #{lstm_model_forward.5} parent=0 // pred_check
    _
  $region11: #{lstm_model_forward.5} parent=0 // pred_check_branch
    %13 = sbr.rel (0) target = $region13
  $region12: #{lstm_model_forward.5} parent=0 // pred_region
    _
  $region13: #{lstm_model_forward.5} parent=0 // pred_fallthru
    _
  %v15 = vld [vmem:[%s0] sm:$0xf]
  %v16 = vld [vmem:[%s0 + $0x4] sm:$0xf]
  %v17 = vld [vmem:[%s1] sm:$0xf]
  %v18 = vld [vmem:[%s1 + $0x4] sm:$0xf]
  %v19 = vld [vmem:[%s1 + $0x8] sm:$0xf]
  %v20 = vld [vmem:[%s1 + $0xc] sm:$0xf]
  %v21 = vld [vmem:[%s1 + $0x10] sm:$0xf]
  %v22 = vld [vmem:[%s1 + $0x14] sm:$0xf]
  %v23 = vld [vmem:[%s1 + $0x18] sm:$0xf]
  %v24 = vld [vmem:[%s1 + $0x1c] sm:$0xf]
  %v25 = vld [vmem:[%s1 + $0x20] sm:$0xf]
  %v26 = vld [vmem:[%s1 + $0x24] sm:$0xf]
  %v27 = vld [vmem:[%s1 + $0x28] sm:$0xf]
  %v28 = vld [vmem:[%s1 + $0x2c] sm:$0xf]
  %v29 = vld [vmem:[%s1 + $0x30] sm:$0xf]
  %v30 = vld [vmem:[%s1 + $0x34] sm:$0xf]
  %v31 = vld [vmem:[%s1 + $0x38] sm:$0xf]
  %v32 = vld [vmem:[%s1 + $0x3c] sm:$0xf]
  %v33 = vld [vmem:[%s2] sm:$0x1]
  %v35 = vlaneseq
  %v36 = vshrl.u32 %v35, 7
  %v37 = vsub.s32 0, %v36
  %v38 = vrot.slane %v33, %v37
  %v42 = vunpack.c.l.b16 %v15
  %v43 = vunpack.c.l.b16 %v16
  %v44 = vpack.c.b16 %v43, %v42
  %v62 = vunpack.c.l.b16 %v17
  %v63 = vunpack.c.l.b16 %v18
  %v64 = vunpack.c.l.b16 %v19
  %v65 = vunpack.c.l.b16 %v20
  %v66 = vunpack.c.l.b16 %v21
  %v67 = vunpack.c.l.b16 %v22
  %v68 = vunpack.c.l.b16 %v23
  %v69 = vunpack.c.l.b16 %v24
  %v70 = vunpack.c.l.b16 %v25
  %v71 = vunpack.c.l.b16 %v26
  %v72 = vunpack.c.l.b16 %v27
  %v73 = vunpack.c.l.b16 %v28
  %v74 = vunpack.c.l.b16 %v29
  %v75 = vunpack.c.l.b16 %v30
  %v76 = vunpack.c.l.b16 %v31
  %v77 = vunpack.c.l.b16 %v32
  %v78 = vpack.c.b16 %v63, %v62
  %v79 = vpack.c.b16 %v65, %v64
  %v80 = vpack.c.b16 %v67, %v66
  %v81 = vpack.c.b16 %v69, %v68
  %v82 = vpack.c.b16 %v71, %v70
  %v83 = vpack.c.b16 %v73, %v72
  %v84 = vpack.c.b16 %v75, %v74
  %v85 = vpack.c.b16 %v77, %v76
  %94 = vmatprep.subr.bf16.mxu0 0
  %95 = vmatpush1.bf16.msra.mxu0 %v78
  %96 = vmatprep.subr.bf16.mxu0 0
  %97 = vmatpush1.bf16.msra.mxu0 %v79
  %98 = vmatprep.subr.bf16.mxu0 0
  %99 = vmatpush1.bf16.msra.mxu0 %v80
  %100 = vmatprep.subr.bf16.mxu0 0
  %101 = vmatpush1.bf16.msra.mxu0 %v81
  %102 = vmatprep.subr.bf16.mxu0 0
  %103 = vmatpush1.bf16.msra.mxu0 %v82
  %104 = vmatprep.subr.bf16.mxu0 0
  %105 = vmatpush1.bf16.msra.mxu0 %v83
  %106 = vmatprep.subr.bf16.mxu0 0
  %107 = vmatpush1.bf16.msra.mxu0 %v84
  %108 = vmatprep.subr.bf16.mxu0 0
  %109 = vmatpush1.bf16.msra.mxu0 %v85
  %110 = vmatprep.subr.bf16.mxu0 0
  %111 = vmatpush1.bf16.msra.mxu0 0
  %112 = vmatprep.subr.bf16.mxu0 0
  %113 = vmatpush1.bf16.msra.mxu0 0
  %114 = vmatprep.subr.bf16.mxu0 0
  %115 = vmatpush1.bf16.msra.mxu0 0
  %116 = vmatprep.subr.bf16.mxu0 0
  %117 = vmatpush1.bf16.msra.mxu0 0
  %118 = vmatprep.subr.bf16.mxu0 0
  %119 = vmatpush1.bf16.msra.mxu0 0
  %120 = vmatprep.subr.bf16.mxu0 0
  %121 = vmatpush1.bf16.msra.mxu0 0
  %122 = vmatprep.subr.bf16.mxu0 0
  %123 = vmatpush1.bf16.msra.mxu0 0
  %124 = vmatprep.subr.bf16.mxu0 0
  %125 = vmatpush1.bf16.msra.mxu0 0
  %126 = vmatprep.mubr.bf16.mxu0 0
  %127 = vmatmul.mubr.bf16.gmra.mrb[0].mxu0 %v44
  %v128 = vpop.f32.mrb[0].mxu0
  %v129 = vadd.f32 %v38, %v128
  %v130 = vpop.f32.mrb[0].mxu0
  %v131 = vpop.f32.mrb[0].mxu0
  %v132 = vadd.f32 %v38, %v131
  %v133 = vpop.f32.mrb[0].mxu0
  %134 = vdwg.mxu0
  %135 = vst [vmem:[%s3] sm:$0xff] %v129
  %136 = vst [vmem:[%s3 + $0x8] sm:$0xff] %v132
  // Predicated region
  $region14: #{lstm_model_forward.5} parent=0 // pred_check
    _
  $region15: #{lstm_model_forward.5} parent=0 // pred_check_branch
    %138 = sbr.rel (0) target = $region17
  $region16: #{lstm_model_forward.5} parent=0 // pred_region
    _
  $region17: #{lstm_model_forward.5} parent=0 // pred_fallthru
    _
  // Predicated region
  $region18: #{lstm_model_forward.5} parent=0 // pred_check
    _
  $region19: #{lstm_model_forward.5} parent=0 // pred_check_branch
    %140 = sbr.rel (0) target = $region21
  $region20: #{lstm_model_forward.5} parent=0 // pred_region
    _
  $region21: #{lstm_model_forward.5} parent=0 // pred_fallthru
    _

// kernel: lstm_model_forward.3
$region0: #{lstm_model_forward.3}
  #allocation0 [shape = 'u32[]', space=smem, size = 0x4, offset = 0x4, fixed_abs, tag = 'smem constant byte address 0x4 - core index']
  #allocation1 [shape = 'u32[144,128]{1,0:T(1,128)}', space=vmem, size = 0x12000, scoped, tag = 'internal scratch']
  #allocation2 [shape = 'bf16[16,128]{1,0:T(16,128)(2,1)}', space=vmem, size = 0x1000, scoped, tag = 'scratch operand']
  #allocation3 [shape = 'f32[16,128]{1,0:T(8,128)}', space=vmem, size = 0x2000, scoped, tag = 'scratch operand']
  %s0 = inlined_call_operand.vmem [shape: bf16[8,16,128], index: 0, kind: input, shape index: {}]
  %s1 = inlined_call_operand.hbm [shape: bf16[128,512], index: 1, kind: input, shape index: {}]
  %s2 = inlined_call_operand.vmem [shape: f32[1,512], index: 2, kind: input, shape index: {}]
  %s3 = inlined_call_operand.hbm [shape: bf16[128,512], index: 3, kind: input, shape index: {}]
  %s4 = inlined_call_operand.vmem [shape: bf16[8,16,128], index: 4, kind: output, shape index: {}]
  %s5 = sld [smem:[#allocation0]]
  $region38: #{lstm_model_forward.3} parent=0
    _
  %s7 = ssub.s32 1, %s5
  %s8 = scalar_select 0, %s7, %s5
  $region1: #{lstm_model_forward.3} parent=0
    #allocation4 [shape = 'u8[131072]{0}', space=vmem, size = 0x20000, scoped, tag = 'input window, operand 1, single buffered']
    #allocation5 [shape = 's32[1]{0}', space=sflag, size = 0x4, scoped, tag = 'scoped memory for lstm_model_forward.3']
    #allocation6 [shape = 'u8[131072]{0}', space=vmem, size = 0x20000, scoped, tag = 'input window, operand 3, single buffered']
    #allocation7 [shape = 's32[1]{0}', space=sflag, size = 0x4, scoped, tag = 'scoped memory for lstm_model_forward.3']
    %9 = vsyncpa [#allocation5], 0
    %10 = vsyncpa [#allocation7], 0
    // Predicated region
    $region2: #{lstm_model_forward.3} parent=1 // pred_check
      _
    $region3: #{lstm_model_forward.3} parent=1 // pred_check_branch
      %12 = sbr.rel (0) target = $region5
    $region4: #{lstm_model_forward.3} parent=1 // pred_region
      _
    $region5: #{lstm_model_forward.3} parent=1 // pred_fallthru
      _
    // Predicated region
    $region6: #{lstm_model_forward.3} parent=1 // pred_check
      _
    $region7: #{lstm_model_forward.3} parent=1 // pred_check_branch
      %14 = sbr.rel (0) target = $region9
    $region8: #{lstm_model_forward.3} parent=1 // pred_region
      %s16 = ssub.s32 4096, 4096
      %17 = vsyncadd [#allocation5], %s16
      %s18 = sshll.u32 [#allocation4], 4
      %s19 = int_to_ptr.vmem [resolvable:$true] %s18
      %24 = dma.hbm_to_vmem [thread:$0]  %s1, 4096, %s19, [#allocation5], 256, 256, 16
    $region9: #{lstm_model_forward.3} parent=1 // pred_fallthru
      _
    // Predicated region
    $region10: #{lstm_model_forward.3} parent=1 // pred_check
      _
    $region11: #{lstm_model_forward.3} parent=1 // pred_check_branch
      %26 = sbr.rel (0) target = $region13
    $region12: #{lstm_model_forward.3} parent=1 // pred_region
      _
    $region13: #{lstm_model_forward.3} parent=1 // pred_fallthru
      _
    // Predicated region
    $region14: #{lstm_model_forward.3} parent=1 // pred_check
      _
    $region15: #{lstm_model_forward.3} parent=1 // pred_check_branch
      %28 = sbr.rel (0) target = $region17
    $region16: #{lstm_model_forward.3} parent=1 // pred_region
      %s30 = ssub.s32 4096, 4096
      %31 = vsyncadd [#allocation7], %s30
      %s32 = sshll.u32 [#allocation6], 4
      %s33 = int_to_ptr.vmem [resolvable:$true] %s32
      %38 = dma.hbm_to_vmem [thread:$0]  %s3, 4096, %s33, [#allocation7], 256, 256, 16
    $region17: #{lstm_model_forward.3} parent=1 // pred_fallthru
      _
    // Predicated region
    $region18: #{lstm_model_forward.3} parent=1 // pred_check
      _
    $region19: #{lstm_model_forward.3} parent=1 // pred_check_branch
      %40 = sbr.rel (0) target = $region21
    $region20: #{lstm_model_forward.3} parent=1 // pred_region
      %41 = dma.done [#allocation5], 4096
    $region21: #{lstm_model_forward.3} parent=1 // pred_fallthru
      _
    // Predicated region
    $region22: #{lstm_model_forward.3} parent=1 // pred_check
      _
    $region23: #{lstm_model_forward.3} parent=1 // pred_check_branch
      %43 = sbr.rel (0) target = $region25
    $region24: #{lstm_model_forward.3} parent=1 // pred_region
      %44 = dma.done [#allocation7], 4096
    $region25: #{lstm_model_forward.3} parent=1 // pred_fallthru
      _
    %p46 = scmp.eq.s32.totalorder 0, 0
    // Predicated region
    $region26: #{lstm_model_forward.3} parent=1 // pred_check
      %p47 = pneg %p46
    $region27: #{lstm_model_forward.3} parent=1 // pred_check_branch
      %49 = sbr.rel (%p47) target = $region29
    $region28: #{lstm_model_forward.3} parent=1 // pred_region
      %50 = vst [vmem:[#allocation2] sm:$0xff] 0
      %51 = vst [vmem:[#allocation3] sm:$0xff] 0.0
      %52 = vst [vmem:[#allocation3 + $0x8] sm:$0xff] 0.0
    $region29: #{lstm_model_forward.3} parent=1 // pred_fallthru
      _
    %v53 = vld [vmem:[%s0] sm:$0xf]
    %v54 = vld [vmem:[%s0 + $0x4] sm:$0xf]
    %v55 = vld [vmem:[%s0 + $0x8] sm:$0xf]
    %v56 = vld [vmem:[%s0 + $0xc] sm:$0xf]
    %v57 = vld [vmem:[%s0 + $0x10] sm:$0xf]
    %v58 = vld [vmem:[%s0 + $0x14] sm:$0xf]
    %v59 = vld [vmem:[%s0 + $0x18] sm:$0xf]
    %v60 = vld [vmem:[%s0 + $0x1c] sm:$0xf]
    %v61 = vld [vmem:[%s0 + $0x20] sm:$0xf]
    %v62 = vld [vmem:[%s0 + $0x24] sm:$0xf]
    %v63 = vld [vmem:[%s0 + $0x28] sm:$0xf]
    %v64 = vld [vmem:[%s0 + $0x2c] sm:$0xf]
    %v65 = vld [vmem:[%s0 + $0x30] sm:$0xf]
    %v66 = vld [vmem:[%s0 + $0x34] sm:$0xf]
    %v67 = vld [vmem:[%s0 + $0x38] sm:$0xf]
    %v68 = vld [vmem:[%s0 + $0x3c] sm:$0xf]
    %v69 = vld [vmem:[#allocation4] sm:$0xff]
    %v70 = vld [vmem:[#allocation4 + $0x8] sm:$0xff]
    %v71 = vld [vmem:[#allocation4 + $0x10] sm:$0xff]
    %v72 = vld [vmem:[#allocation4 + $0x18] sm:$0xff]
    %v73 = vld [vmem:[#allocation4 + $0x20] sm:$0xff]
    %v74 = vld [vmem:[#allocation4 + $0x28] sm:$0xff]
    %v75 = vld [vmem:[#allocation4 + $0x30] sm:$0xff]
    %v76 = vld [vmem:[#allocation4 + $0x38] sm:$0xff]
    %v77 = vld [vmem:[#allocation4 + $0x40] sm:$0xff]
    %v78 = vld [vmem:[#allocation4 + $0x48] sm:$0xff]
    %v79 = vld [vmem:[#allocation4 + $0x50] sm:$0xff]
    %v80 = vld [vmem:[#allocation4 + $0x58] sm:$0xff]
    %v81 = vld [vmem:[#allocation4 + $0x60] sm:$0xff]
    %v82 = vld [vmem:[#allocation4 + $0x68] sm:$0xff]
    %v83 = vld [vmem:[#allocation4 + $0x70] sm:$0xff]
    %v84 = vld [vmem:[#allocation4 + $0x78] sm:$0xff]
    %v85 = vld [vmem:[#allocation4 + $0x80] sm:$0xff]
    %v86 = vld [vmem:[#allocation4 + $0x88] sm:$0xff]
    %v87 = vld [vmem:[#allocation4 + $0x90] sm:$0xff]
    %v88 = vld [vmem:[#allocation4 + $0x98] sm:$0xff]
    %v89 = vld [vmem:[#allocation4 + $0xa0] sm:$0xff]
    %v90 = vld [vmem:[#allocation4 + $0xa8] sm:$0xff]
    %v91 = vld [vmem:[#allocation4 + $0xb0] sm:$0xff]
    %v92 = vld [vmem:[#allocation4 + $0xb8] sm:$0xff]
    %v93 = vld [vmem:[#allocation4 + $0xc0] sm:$0xff]
    %v94 = vld [vmem:[#allocation4 + $0xc8] sm:$0xff]
    %v95 = vld [vmem:[#allocation4 + $0xd0] sm:$0xff]
    %v96 = vld [vmem:[#allocation4 + $0xd8] sm:$0xff]
    %v97 = vld [vmem:[#allocation4 + $0xe0] sm:$0xff]
    %v98 = vld [vmem:[#allocation4 + $0xe8] sm:$0xff]
    %v99 = vld [vmem:[#allocation4 + $0xf0] sm:$0xff]
    %v100 = vld [vmem:[#allocation4 + $0xf8] sm:$0xff]
    %v101 = vld [vmem:[%s2] sm:$0xf]
    %v103 = vlaneseq
    %v104 = vshrl.u32 %v103, 7
    %v105 = vsub.s32 0, %v104
    %v106 = vrot.slane %v101, %v105
    %v107 = vlaneseq
    %v108 = vshrl.u32 %v107, 7
    %v109 = vsub.s32 1, %v108
    %v110 = vrot.slane %v101, %v109
    %v111 = vlaneseq
    %v112 = vshrl.u32 %v111, 7
    %v113 = vsub.s32 2, %v112
    %v114 = vrot.slane %v101, %v113
    %v115 = vlaneseq
    %v116 = vshrl.u32 %v115, 7
    %v117 = vsub.s32 3, %v116
    %v118 = vrot.slane %v101, %v117
    %v139 = vunpack.c.l.b16 %v53
    %v140 = vunpack.c.l.b16 %v54
    %v141 = vunpack.c.l.b16 %v55
    %v142 = vunpack.c.l.b16 %v56
    %v143 = vunpack.c.l.b16 %v57
    %v144 = vunpack.c.l.b16 %v58
    %v145 = vunpack.c.l.b16 %v59
    %v146 = vunpack.c.l.b16 %v60
    %v147 = vunpack.c.l.b16 %v61
    %v148 = vunpack.c.l.b16 %v62
    %v149 = vunpack.c.l.b16 %v63
    %v150 = vunpack.c.l.b16 %v64
    %v151 = vunpack.c.l.b16 %v65
    %v152 = vunpack.c.l.b16 %v66
    %v153 = vunpack.c.l.b16 %v67
    %v154 = vunpack.c.l.b16 %v68
    %v155 = vpack.c.b16 %v140, %v139
    %v156 = vpack.c.b16 %v142, %v141
    %v157 = vpack.c.b16 %v144, %v143
    %v158 = vpack.c.b16 %v146, %v145
    %v159 = vpack.c.b16 %v148, %v147
    %v160 = vpack.c.b16 %v150, %v149
    %v161 = vpack.c.b16 %v152, %v151
    %v162 = vpack.c.b16 %v154, %v153
    %v203 = vunpack.c.l.b16 %v69
    %v204 = vunpack.c.h.b16 %v69
    %v205 = vunpack.c.l.b16 %v70
    %v206 = vunpack.c.h.b16 %v70
    %v207 = vunpack.c.l.b16 %v71
    %v208 = vunpack.c.h.b16 %v71
    %v209 = vunpack.c.l.b16 %v72
    %v210 = vunpack.c.h.b16 %v72
    %v211 = vunpack.c.l.b16 %v73
    %v212 = vunpack.c.h.b16 %v73
    %v213 = vunpack.c.l.b16 %v74
    %v214 = vunpack.c.h.b16 %v74
    %v215 = vunpack.c.l.b16 %v75
    %v216 = vunpack.c.h.b16 %v75
    %v217 = vunpack.c.l.b16 %v76
    %v218 = vunpack.c.h.b16 %v76
    %v219 = vunpack.c.l.b16 %v77
    %v220 = vunpack.c.h.b16 %v77
    %v221 = vunpack.c.l.b16 %v78
    %v222 = vunpack.c.h.b16 %v78
    %v223 = vunpack.c.l.b16 %v79
    %v224 = vunpack.c.h.b16 %v79
    %v225 = vunpack.c.l.b16 %v80
    %v226 = vunpack.c.h.b16 %v80
    %v227 = vunpack.c.l.b16 %v81
    %v228 = vunpack.c.h.b16 %v81
    %v229 = vunpack.c.l.b16 %v82
    %v230 = vunpack.c.h.b16 %v82
    %v231 = vunpack.c.l.b16 %v83
    %v232 = vunpack.c.h.b16 %v83
    %v233 = vunpack.c.l.b16 %v84
    %v234 = vunpack.c.h.b16 %v84
    %v235 = vunpack.c.l.b16 %v85
    %v236 = vunpack.c.h.b16 %v85
    %v237 = vunpack.c.l.b16 %v86
    %v238 = vunpack.c.h.b16 %v86
    %v239 = vunpack.c.l.b16 %v87
    %v240 = vunpack.c.h.b16 %v87
    %v241 = vunpack.c.l.b16 %v88
    %v242 = vunpack.c.h.b16 %v88
    %v243 = vunpack.c.l.b16 %v89
    %v244 = vunpack.c.h.b16 %v89
    %v245 = vunpack.c.l.b16 %v90
    %v246 = vunpack.c.h.b16 %v90
    %v247 = vunpack.c.l.b16 %v91
    %v248 = vunpack.c.h.b16 %v91
    %v249 = vunpack.c.l.b16 %v92
    %v250 = vunpack.c.h.b16 %v92
    %v251 = vunpack.c.l.b16 %v93
    %v252 = vunpack.c.h.b16 %v93
    %v253 = vunpack.c.l.b16 %v94
    %v254 = vunpack.c.h.b16 %v94
    %v255 = vunpack.c.l.b16 %v95
    %v256 = vunpack.c.h.b16 %v95
    %v257 = vunpack.c.l.b16 %v96
    %v258 = vunpack.c.h.b16 %v96
    %v259 = vunpack.c.l.b16 %v97
    %v260 = vunpack.c.h.b16 %v97
    %v261 = vunpack.c.l.b16 %v98
    %v262 = vunpack.c.h.b16 %v98
    %v263 = vunpack.c.l.b16 %v99
    %v264 = vunpack.c.h.b16 %v99
    %v265 = vunpack.c.l.b16 %v100
    %v266 = vunpack.c.h.b16 %v100
    %v267 = vpack.c.b16 %v207, %v203
    %v268 = vpack.c.b16 %v208, %v204
    %v269 = vpack.c.b16 %v209, %v205
    %v270 = vpack.c.b16 %v210, %v206
    %v271 = vpack.c.b16 %v215, %v211
    %v272 = vpack.c.b16 %v216, %v212
    %v273 = vpack.c.b16 %v217, %v213
    %v274 = vpack.c.b16 %v218, %v214
    %v275 = vpack.c.b16 %v223, %v219
    %v276 = vpack.c.b16 %v224, %v220
    %v277 = vpack.c.b16 %v225, %v221
    %v278 = vpack.c.b16 %v226, %v222
    %v279 = vpack.c.b16 %v231, %v227
    %v280 = vpack.c.b16 %v232, %v228
    %v281 = vpack.c.b16 %v233, %v229
    %v282 = vpack.c.b16 %v234, %v230
    %v283 = vpack.c.b16 %v239, %v235
    %v284 = vpack.c.b16 %v240, %v236
    %v285 = vpack.c.b16 %v241, %v237
    %v286 = vpack.c.b16 %v242, %v238
    %v287 = vpack.c.b16 %v247, %v243
    %v288 = vpack.c.b16 %v248, %v244
    %v289 = vpack.c.b16 %v249, %v245
    %v290 = vpack.c.b16 %v250, %v246
    %v291 = vpack.c.b16 %v255, %v251
    %v292 = vpack.c.b16 %v256, %v252
    %v293 = vpack.c.b16 %v257, %v253
    %v294 = vpack.c.b16 %v258, %v254
    %v295 = vpack.c.b16 %v263, %v259
    %v296 = vpack.c.b16 %v264, %v260
    %v297 = vpack.c.b16 %v265, %v261
    %v298 = vpack.c.b16 %v266, %v262
    %331 = vmatprep.subr.bf16.mxu0 %v268
    %332 = vmatpush1.bf16.msra.mxu0 %v267
    %333 = vmatprep.subr.bf16.mxu0 %v272
    %334 = vmatpush1.bf16.msra.mxu0 %v271
    %335 = vmatprep.subr.bf16.mxu0 %v276
    %336 = vmatpush1.bf16.msra.mxu0 %v275
    %337 = vmatprep.subr.bf16.mxu0 %v280
    %338 = vmatpush1.bf16.msra.mxu0 %v279
    %339 = vmatprep.subr.bf16.mxu0 %v284
    %340 = vmatpush1.bf16.msra.mxu0 %v283
    %341 = vmatprep.subr.bf16.mxu0 %v288
    %342 = vmatpush1.bf16.msra.mxu0 %v287
    %343 = vmatprep.subr.bf16.mxu0 %v292
    %344 = vmatpush1.bf16.msra.mxu0 %v291
    %345 = vmatprep.subr.bf16.mxu0 %v296
    %346 = vmatpush1.bf16.msra.mxu0 %v295
    %347 = vmatprep.subr.bf16.mxu0 0
    %348 = vmatpush1.bf16.msra.mxu0 0
    %349 = vmatprep.subr.bf16.mxu0 0
    %350 = vmatpush1.bf16.msra.mxu0 0
    %351 = vmatprep.subr.bf16.mxu0 0
    %352 = vmatpush1.bf16.msra.mxu0 0
    %353 = vmatprep.subr.bf16.mxu0 0
    %354 = vmatpush1.bf16.msra.mxu0 0
    %355 = vmatprep.subr.bf16.mxu0 0
    %356 = vmatpush1.bf16.msra.mxu0 0
    %357 = vmatprep.subr.bf16.mxu0 0
    %358 = vmatpush1.bf16.msra.mxu0 0
    %359 = vmatprep.subr.bf16.mxu0 0
    %360 = vmatpush1.bf16.msra.mxu0 0
    %361 = vmatprep.subr.bf16.mxu0 0
    %362 = vmatpush1.bf16.msra.mxu0 0
    %363 = vmatprep.mubr.bf16.mxu0 0
    %364 = vmatmul.mubr.bf16.gmra.mrb[0].mxu0 %v155
    %v365 = vpop.f32.mrb[0].mxu0
    %v366 = vadd.f32 %v106, %v365
    %v367 = vpop.f32.mrb[0].mxu0
    %v368 = vadd.f32 %v110, %v367
    %v369 = vpop.f32.mrb[0].mxu0
    %v370 = vadd.f32 %v106, %v369
    %v371 = vpop.f32.mrb[0].mxu0
    %v372 = vadd.f32 %v110, %v371
    %373 = vmatprep.mubr.bf16.mxu0 0
    %374 = vmatmul.mubr.bf16.gmra.mrb[0].mxu0 %v156
    %v375 = vpop.f32.mrb[0].mxu0
    %v376 = vadd.f32 %v106, %v375
    %v377 = vpop.f32.mrb[0].mxu0
    %v378 = vadd.f32 %v110, %v377
    %v379 = vpop.f32.mrb[0].mxu0
    %v380 = vadd.f32 %v106, %v379
    %v381 = vpop.f32.mrb[0].mxu0
    %v382 = vadd.f32 %v110, %v381
    %383 = vmatprep.mubr.bf16.mxu0 0
    %384 = vmatmul.mubr.bf16.gmra.mrb[0].mxu0 %v157
    %v385 = vpop.f32.mrb[0].mxu0
    %v386 = vadd.f32 %v106, %v385
    %v387 = vpop.f32.mrb[0].mxu0
    %v388 = vadd.f32 %v110, %v387
    %v389 = vpop.f32.mrb[0].mxu0
    %v390 = vadd.f32 %v106, %v389
    %v391 = vpop.f32.mrb[0].mxu0
    %v392 = vadd.f32 %v110, %v391
    %393 = vmatprep.mubr.bf16.mxu0 0
    %394 = vmatmul.mubr.bf16.gmra.mrb[0].mxu0 %v158
    %v395 = vpop.f32.mrb[0].mxu0
    %v396 = vadd.f32 %v106, %v395
    %v397 = vpop.f32.mrb[0].mxu0
    %v398 = vadd.f32 %v110, %v397
    %v399 = vpop.f32.mrb[0].mxu0
    %v400 = vadd.f32 %v106, %v399
    %v401 = vpop.f32.mrb[0].mxu0
    %v402 = vadd.f32 %v110, %v401
    %403 = vmatprep.mubr.bf16.mxu0 0
    %404 = vmatmul.mubr.bf16.gmra.mrb[0].mxu0 %v159
    %v405 = vpop.f32.mrb[0].mxu0
    %v406 = vadd.f32 %v106, %v405
    %v407 = vpop.f32.mrb[0].mxu0
    %v408 = vadd.f32 %v110, %v407
    %v409 = vpop.f32.mrb[0].mxu0
    %v410 = vadd.f32 %v106, %v409
    %v411 = vpop.f32.mrb[0].mxu0
    %v412 = vadd.f32 %v110, %v411
    %413 = vmatprep.mubr.bf16.mxu0 0
    %414 = vmatmul.mubr.bf16.gmra.mrb[0].mxu0 %v160
    %v415 = vpop.f32.mrb[0].mxu0
    %v416 = vadd.f32 %v106, %v415
    %v417 = vpop.f32.mrb[0].mxu0
    %v418 = vadd.f32 %v110, %v417
    %v419 = vpop.f32.mrb[0].mxu0
    %v420 = vadd.f32 %v106, %v419
    %v421 = vpop.f32.mrb[0].mxu0
    %v422 = vadd.f32 %v110, %v421
    %423 = vmatprep.mubr.bf16.mxu0 0
    %424 = vmatmul.mubr.bf16.gmra.mrb[0].mxu0 %v161
    %v425 = vpop.f32.mrb[0].mxu0
    %v426 = vadd.f32 %v106, %v425
    %v427 = vpop.f32.mrb[0].mxu0
    %v428 = vadd.f32 %v110, %v427
    %v429 = vpop.f32.mrb[0].mxu0
    %v430 = vadd.f32 %v106, %v429
    %v431 = vpop.f32.mrb[0].mxu0
    %v432 = vadd.f32 %v110, %v431
    %433 = vmatprep.mubr.bf16.mxu0 0
    %434 = vmatmul.mubr.bf16.gmra.mrb[0].mxu0 %v162
    %v435 = vpop.f32.mrb[0].mxu0
    %v436 = vadd.f32 %v106, %v435
    %v437 = vpop.f32.mrb[0].mxu0
    %v438 = vadd.f32 %v110, %v437
    %v439 = vpop.f32.mrb[0].mxu0
    %v440 = vadd.f32 %v106, %v439
    %v441 = vpop.f32.mrb[0].mxu0
    %v442 = vadd.f32 %v110, %v441
    %443 = vdwg.mxu0
    %444 = vmatprep.subr.bf16.mxu0 %v270
    %445 = vmatpush1.bf16.msra.mxu0 %v269
    %446 = vmatprep.subr.bf16.mxu0 %v274
    %447 = vmatpush1.bf16.msra.mxu0 %v273
    %448 = vmatprep.subr.bf16.mxu0 %v278
    %449 = vmatpush1.bf16.msra.mxu0 %v277
    %450 = vmatprep.subr.bf16.mxu0 %v282
    %451 = vmatpush1.bf16.msra.mxu0 %v281
    %452 = vmatprep.subr.bf16.mxu0 %v286
    %453 = vmatpush1.bf16.msra.mxu0 %v285
    %454 = vmatprep.subr.bf16.mxu0 %v290
    %455 = vmatpush1.bf16.msra.mxu0 %v289
    %456 = vmatprep.subr.bf16.mxu0 %v294
    %457 = vmatpush1.bf16.msra.mxu0 %v293
    %458 = vmatprep.subr.bf16.mxu0 %v298
    %459 = vmatpush1.bf16.msra.mxu0 %v297
    %460 = vmatprep.subr.bf16.mxu0 0
    %461 = vmatpush1.bf16.msra.mxu0 0
    %462 = vmatprep.subr.bf16.mxu0 0
    %463 = vmatpush1.bf16.msra.mxu0 0
    %464 = vmatprep.subr.bf16.mxu0 0
    %465 = vmatpush1.bf16.msra.mxu0 0
    %466 = vmatprep.subr.bf16.mxu0 0
    %467 = vmatpush1.bf16.msra.mxu0 0
    %468 = vmatprep.subr.bf16.mxu0 0
    %469 = vmatpush1.bf16.msra.mxu0 0
    %470 = vmatprep.subr.bf16.mxu0 0
    %471 = vmatpush1.bf16.msra.mxu0 0
    %472 = vmatprep.subr.bf16.mxu0 0
    %473 = vmatpush1.bf16.msra.mxu0 0
    %474 = vmatprep.subr.bf16.mxu0 0
    %475 = vmatpush1.bf16.msra.mxu0 0
    %476 = vmatprep.mubr.bf16.mxu0 0
    %477 = vmatmul.mubr.bf16.gmra.mrb[0].mxu0 %v155
    %v478 = vpop.f32.mrb[0].mxu0
    %v479 = vadd.f32 %v114, %v478
    %v480 = vpop.f32.mrb[0].mxu0
    %v481 = vadd.f32 %v118, %v480
    %v482 = vpop.f32.mrb[0].mxu0
    %v483 = vadd.f32 %v114, %v482
    %v484 = vpop.f32.mrb[0].mxu0
    %v485 = vadd.f32 %v118, %v484
    %486 = vmatprep.mubr.bf16.mxu0 0
    %487 = vmatmul.mubr.bf16.gmra.mrb[0].mxu0 %v156
    %v488 = vpop.f32.mrb[0].mxu0
    %v489 = vadd.f32 %v114, %v488
    %v490 = vpop.f32.mrb[0].mxu0
    %v491 = vadd.f32 %v118, %v490
    %v492 = vpop.f32.mrb[0].mxu0
    %v493 = vadd.f32 %v114, %v492
    %v494 = vpop.f32.mrb[0].mxu0
    %v495 = vadd.f32 %v118, %v494
    %496 = vmatprep.mubr.bf16.mxu0 0
    %497 = vmatmul.mubr.bf16.gmra.mrb[0].mxu0 %v157
    %v498 = vpop.f32.mrb[0].mxu0
    %v499 = vadd.f32 %v114, %v498
    %v500 = vpop.f32.mrb[0].mxu0
    %v501 = vadd.f32 %v118, %v500
    %v502 = vpop.f32.mrb[0].mxu0
    %v503 = vadd.f32 %v114, %v502
    %v504 = vpop.f32.mrb[0].mxu0
    %v505 = vadd.f32 %v118, %v504
    %506 = vmatprep.mubr.bf16.mxu0 0
    %507 = vmatmul.mubr.bf16.gmra.mrb[0].mxu0 %v158
    %v508 = vpop.f32.mrb[0].mxu0
    %v509 = vadd.f32 %v114, %v508
    %v510 = vpop.f32.mrb[0].mxu0
    %v511 = vadd.f32 %v118, %v510
    %v512 = vpop.f32.mrb[0].mxu0
    %v513 = vadd.f32 %v114, %v512
    %v514 = vpop.f32.mrb[0].mxu0
    %v515 = vadd.f32 %v118, %v514
    %516 = vmatprep.mubr.bf16.mxu0 0
    %517 = vmatmul.mubr.bf16.gmra.mrb[0].mxu0 %v159
    %v518 = vpop.f32.mrb[0].mxu0
    %v519 = vadd.f32 %v114, %v518
    %v520 = vpop.f32.mrb[0].mxu0
    %v521 = vadd.f32 %v118, %v520
    %v522 = vpop.f32.mrb[0].mxu0
    %v523 = vadd.f32 %v114, %v522
    %v524 = vpop.f32.mrb[0].mxu0
    %v525 = vadd.f32 %v118, %v524
    %526 = vmatprep.mubr.bf16.mxu0 0
    %527 = vmatmul.mubr.bf16.gmra.mrb[0].mxu0 %v160
    %v528 = vpop.f32.mrb[0].mxu0
    %v529 = vadd.f32 %v114, %v528
    %v530 = vpop.f32.mrb[0].mxu0
    %v531 = vadd.f32 %v118, %v530
    %v532 = vpop.f32.mrb[0].mxu0
    %v533 = vadd.f32 %v114, %v532
    %v534 = vpop.f32.mrb[0].mxu0
    %v535 = vadd.f32 %v118, %v534
    %536 = vmatprep.mubr.bf16.mxu0 0
    %537 = vmatmul.mubr.bf16.gmra.mrb[0].mxu0 %v161
    %v538 = vpop.f32.mrb[0].mxu0
    %v539 = vadd.f32 %v114, %v538
    %v540 = vpop.f32.mrb[0].mxu0
    %v541 = vadd.f32 %v118, %v540
    %v542 = vpop.f32.mrb[0].mxu0
    %v543 = vadd.f32 %v114, %v542
    %v544 = vpop.f32.mrb[0].mxu0
    %v545 = vadd.f32 %v118, %v544
    %546 = vmatprep.mubr.bf16.mxu0 0
    %547 = vmatmul.mubr.bf16.gmra.mrb[0].mxu0 %v162
    %v548 = vpop.f32.mrb[0].mxu0
    %v549 = vadd.f32 %v114, %v548
    %v550 = vpop.f32.mrb[0].mxu0
    %v551 = vadd.f32 %v118, %v550
    %v552 = vpop.f32.mrb[0].mxu0
    %v553 = vadd.f32 %v114, %v552
    %v554 = vpop.f32.mrb[0].mxu0
    %v555 = vadd.f32 %v118, %v554
    %556 = vdwg.mxu0
    %v557 = vld [vmem:[#allocation6] sm:$0xff]
    %v558 = vld [vmem:[#allocation6 + $0x8] sm:$0xff]
    %v559 = vld [vmem:[#allocation6 + $0x10] sm:$0xff]
    %v560 = vld [vmem:[#allocation6 + $0x18] sm:$0xff]
    %v561 = vld [vmem:[#allocation6 + $0x20] sm:$0xff]
    %v562 = vld [vmem:[#allocation6 + $0x28] sm:$0xff]
    %v563 = vld [vmem:[#allocation6 + $0x30] sm:$0xff]
    %v564 = vld [vmem:[#allocation6 + $0x38] sm:$0xff]
    %v565 = vld [vmem:[#allocation6 + $0x40] sm:$0xff]
    %v566 = vld [vmem:[#allocation6 + $0x48] sm:$0xff]
    %v567 = vld [vmem:[#allocation6 + $0x50] sm:$0xff]
    %v568 = vld [vmem:[#allocation6 + $0x58] sm:$0xff]
    %v569 = vld [vmem:[#allocation6 + $0x60] sm:$0xff]
    %v570 = vld [vmem:[#allocation6 + $0x68] sm:$0xff]
    %v571 = vld [vmem:[#allocation6 + $0x70] sm:$0xff]
    %v572 = vld [vmem:[#allocation6 + $0x78] sm:$0xff]
    %v573 = vld [vmem:[#allocation6 + $0x80] sm:$0xff]
    %v574 = vld [vmem:[#allocation6 + $0x88] sm:$0xff]
    %v575 = vld [vmem:[#allocation6 + $0x90] sm:$0xff]
    %v576 = vld [vmem:[#allocation6 + $0x98] sm:$0xff]
    %v577 = vld [vmem:[#allocation6 + $0xa0] sm:$0xff]
    %v578 = vld [vmem:[#allocation6 + $0xa8] sm:$0xff]
    %v579 = vld [vmem:[#allocation6 + $0xb0] sm:$0xff]
    %v580 = vld [vmem:[#allocation6 + $0xb8] sm:$0xff]
    %v581 = vld [vmem:[#allocation6 + $0xc0] sm:$0xff]
    %v582 = vld [vmem:[#allocation6 + $0xc8] sm:$0xff]
    %v583 = vld [vmem:[#allocation6 + $0xd0] sm:$0xff]
    %v584 = vld [vmem:[#allocation6 + $0xd8] sm:$0xff]
    %v585 = vld [vmem:[#allocation6 + $0xe0] sm:$0xff]
    %v586 = vld [vmem:[#allocation6 + $0xe8] sm:$0xff]
    %v587 = vld [vmem:[#allocation6 + $0xf0] sm:$0xff]
    %v588 = vld [vmem:[#allocation6 + $0xf8] sm:$0xff]
    %v589 = vld [vmem:[#allocation2] sm:$0xff]
    %v590 = vld [vmem:[#allocation3] sm:$0xff]
    %v591 = vld [vmem:[#allocation3 + $0x8] sm:$0xff]
    %v624 = vunpack.c.l.b16 %v557
    %v625 = vunpack.c.h.b16 %v557
    %v626 = vunpack.c.l.b16 %v558
    %v627 = vunpack.c.h.b16 %v558
    %v628 = vunpack.c.l.b16 %v559
    %v629 = vunpack.c.h.b16 %v559
    %v630 = vunpack.c.l.b16 %v560
    %v631 = vunpack.c.h.b16 %v560
    %v632 = vunpack.c.l.b16 %v561
    %v633 = vunpack.c.h.b16 %v561
    %v634 = vunpack.c.l.b16 %v562
    %v635 = vunpack.c.h.b16 %v562
    %v636 = vunpack.c.l.b16 %v563
    %v637 = vunpack.c.h.b16 %v563
    %v638 = vunpack.c.l.b16 %v564
    %v639 = vunpack.c.h.b16 %v564
    %v640 = vunpack.c.l.b16 %v565
    %v641 = vunpack.c.h.b16 %v565
    %v642 = vunpack.c.l.b16 %v566
    %v643 = vunpack.c.h.b16 %v566
    %v644 = vunpack.c.l.b16 %v567
    %v645 = vunpack.c.h.b16 %v567
    %v646 = vunpack.c.l.b16 %v568
    %v647 = vunpack.c.h.b16 %v568
    %v648 = vunpack.c.l.b16 %v569
    %v649 = vunpack.c.h.b16 %v569
    %v650 = vunpack.c.l.b16 %v570
    %v651 = vunpack.c.h.b16 %v570
    %v652 = vunpack.c.l.b16 %v571
    %v653 = vunpack.c.h.b16 %v571
    %v654 = vunpack.c.l.b16 %v572
    %v655 = vunpack.c.h.b16 %v572
    %v656 = vunpack.c.l.b16 %v573
    %v657 = vunpack.c.h.b16 %v573
    %v658 = vunpack.c.l.b16 %v574
    %v659 = vunpack.c.h.b16 %v574
    %v660 = vunpack.c.l.b16 %v575
    %v661 = vunpack.c.h.b16 %v575
    %v662 = vunpack.c.l.b16 %v576
    %v663 = vunpack.c.h.b16 %v576
    %v664 = vunpack.c.l.b16 %v577
    %v665 = vunpack.c.h.b16 %v577
    %v666 = vunpack.c.l.b16 %v578
    %v667 = vunpack.c.h.b16 %v578
    %v668 = vunpack.c.l.b16 %v579
    %v669 = vunpack.c.h.b16 %v579
    %v670 = vunpack.c.l.b16 %v580
    %v671 = vunpack.c.h.b16 %v580
    %v672 = vunpack.c.l.b16 %v581
    %v673 = vunpack.c.h.b16 %v581
    %v674 = vunpack.c.l.b16 %v582
    %v675 = vunpack.c.h.b16 %v582
    %v676 = vunpack.c.l.b16 %v583
    %v677 = vunpack.c.h.b16 %v583
    %v678 = vunpack.c.l.b16 %v584
    %v679 = vunpack.c.h.b16 %v584
    %v680 = vunpack.c.l.b16 %v585
    %v681 = vunpack.c.h.b16 %v585
    %v682 = vunpack.c.l.b16 %v586
    %v683 = vunpack.c.h.b16 %v586
    %v684 = vunpack.c.l.b16 %v587
    %v685 = vunpack.c.h.b16 %v587
    %v686 = vunpack.c.l.b16 %v588
    %v687 = vunpack.c.h.b16 %v588
    %v688 = vpack.c.b16 %v628, %v624
    %v689 = vpack.c.b16 %v629, %v625
    %v690 = vpack.c.b16 %v630, %v626
    %v691 = vpack.c.b16 %v631, %v627
    %v692 = vpack.c.b16 %v636, %v632
    %v693 = vpack.c.b16 %v637, %v633
    %v694 = vpack.c.b16 %v638, %v634
    %v695 = vpack.c.b16 %v639, %v635
    %v696 = vpack.c.b16 %v644, %v640
    %v697 = vpack.c.b16 %v645, %v641
    %v698 = vpack.c.b16 %v646, %v642
    %v699 = vpack.c.b16 %v647, %v643
    %v700 = vpack.c.b16 %v652, %v648
    %v701 = vpack.c.b16 %v653, %v649
    %v702 = vpack.c.b16 %v654, %v650
    %v703 = vpack.c.b16 %v655, %v651
    %v704 = vpack.c.b16 %v660, %v656
    %v705 = vpack.c.b16 %v661, %v657
    %v706 = vpack.c.b16 %v662, %v658
    %v707 = vpack.c.b16 %v663, %v659
    %v708 = vpack.c.b16 %v668, %v664
    %v709 = vpack.c.b16 %v669, %v665
    %v710 = vpack.c.b16 %v670, %v666
    %v711 = vpack.c.b16 %v671, %v667
    %v712 = vpack.c.b16 %v676, %v672
    %v713 = vpack.c.b16 %v677, %v673
    %v714 = vpack.c.b16 %v678, %v674
    %v715 = vpack.c.b16 %v679, %v675
    %v716 = vpack.c.b16 %v684, %v680
    %v717 = vpack.c.b16 %v685, %v681
    %v718 = vpack.c.b16 %v686, %v682
    %v719 = vpack.c.b16 %v687, %v683
    %752 = vmatprep.subr.bf16.mxu0 %v689
    %753 = vmatpush1.bf16.msra.mxu0 %v688
    %754 = vmatprep.subr.bf16.mxu0 %v693
    %755 = vmatpush1.bf16.msra.mxu0 %v692
    %756 = vmatprep.subr.bf16.mxu0 %v697
    %757 = vmatpush1.bf16.msra.mxu0 %v696
    %758 = vmatprep.subr.bf16.mxu0 %v701
    %759 = vmatpush1.bf16.msra.mxu0 %v700
    %760 = vmatprep.subr.bf16.mxu0 %v705
    %761 = vmatpush1.bf16.msra.mxu0 %v704
    %762 = vmatprep.subr.bf16.mxu0 %v709
    %763 = vmatpush1.bf16.msra.mxu0 %v708
    %764 = vmatprep.subr.bf16.mxu0 %v713
    %765 = vmatpush1.bf16.msra.mxu0 %v712
    %766 = vmatprep.subr.bf16.mxu0 %v717
    %767 = vmatpush1.bf16.msra.mxu0 %v716
    %768 = vmatprep.subr.bf16.mxu0 0
    %769 = vmatpush1.bf16.msra.mxu0 0
    %770 = vmatprep.subr.bf16.mxu0 0
    %771 = vmatpush1.bf16.msra.mxu0 0
    %772 = vmatprep.subr.bf16.mxu0 0
    %773 = vmatpush1.bf16.msra.mxu0 0
    %774 = vmatprep.subr.bf16.mxu0 0
    %775 = vmatpush1.bf16.msra.mxu0 0
    %776 = vmatprep.subr.bf16.mxu0 0
    %777 = vmatpush1.bf16.msra.mxu0 0
    %778 = vmatprep.subr.bf16.mxu0 0
    %779 = vmatpush1.bf16.msra.mxu0 0
    %780 = vmatprep.subr.bf16.mxu0 0
    %781 = vmatpush1.bf16.msra.mxu0 0
    %782 = vmatprep.subr.bf16.mxu0 0
    %783 = vmatpush1.bf16.msra.mxu0 0
    %784 = vmatprep.mubr.bf16.mxu0 0
    %785 = vmatmul.mubr.bf16.gmra.mrb[0].mxu0 %v589
    %v786 = vpop.f32.mrb[0].mxu0
    %v787 = vadd.f32 0.0, %v786
    %v788 = vpop.f32.mrb[0].mxu0
    %v789 = vadd.f32 0.0, %v788
    %v790 = vpop.f32.mrb[0].mxu0
    %v791 = vadd.f32 0.0, %v790
    %v792 = vpop.f32.mrb[0].mxu0
    %v793 = vadd.f32 0.0, %v792
    %794 = vdwg.mxu0
    %795 = vmatprep.subr.bf16.mxu0 %v691
    %796 = vmatpush1.bf16.msra.mxu0 %v690
    %797 = vmatprep.subr.bf16.mxu0 %v695
    %798 = vmatpush1.bf16.msra.mxu0 %v694
    %799 = vmatprep.subr.bf16.mxu0 %v699
    %800 = vmatpush1.bf16.msra.mxu0 %v698
    %801 = vmatprep.subr.bf16.mxu0 %v703
    %802 = vmatpush1.bf16.msra.mxu0 %v702
    %803 = vmatprep.subr.bf16.mxu0 %v707
    %804 = vmatpush1.bf16.msra.mxu0 %v706
    %805 = vmatprep.subr.bf16.mxu0 %v711
    %806 = vmatpush1.bf16.msra.mxu0 %v710
    %807 = vmatprep.subr.bf16.mxu0 %v715
    %808 = vmatpush1.bf16.msra.mxu0 %v714
    %809 = vmatprep.subr.bf16.mxu0 %v719
    %810 = vmatpush1.bf16.msra.mxu0 %v718
    %811 = vmatprep.subr.bf16.mxu0 0
    %812 = vmatpush1.bf16.msra.mxu0 0
    %813 = vmatprep.subr.bf16.mxu0 0
    %814 = vmatpush1.bf16.msra.mxu0 0
    %815 = vmatprep.subr.bf16.mxu0 0
    %816 = vmatpush1.bf16.msra.mxu0 0
    %817 = vmatprep.subr.bf16.mxu0 0
    %818 = vmatpush1.bf16.msra.mxu0 0
    %819 = vmatprep.subr.bf16.mxu0 0
    %820 = vmatpush1.bf16.msra.mxu0 0
    %821 = vmatprep.subr.bf16.mxu0 0
    %822 = vmatpush1.bf16.msra.mxu0 0
    %823 = vmatprep.subr.bf16.mxu0 0
    %824 = vmatpush1.bf16.msra.mxu0 0
    %825 = vmatprep.subr.bf16.mxu0 0
    %826 = vmatpush1.bf16.msra.mxu0 0
    %827 = vmatprep.mubr.bf16.mxu0 0
    %828 = vmatmul.mubr.bf16.gmra.mrb[0].mxu0 %v589
    %v829 = vpop.f32.mrb[0].mxu0
    %v830 = vadd.f32 0.0, %v829
    %v831 = vpop.f32.mrb[0].mxu0
    %v832 = vadd.f32 0.0, %v831
    %v833 = vpop.f32.mrb[0].mxu0
    %v834 = vadd.f32 0.0, %v833
    %v835 = vpop.f32.mrb[0].mxu0
    %v836 = vadd.f32 0.0, %v835
    %837 = vdwg.mxu0
    %v838 = vadd.f32 %v366, %v787
    %v839 = vadd.f32 %v368, %v789
    %v840 = vadd.f32 %v479, %v830
    %v841 = vadd.f32 %v481, %v832
    %v842 = vadd.f32 %v370, %v791
    %v843 = vadd.f32 %v372, %v793
    %v844 = vadd.f32 %v483, %v834
    %v845 = vadd.f32 %v485, %v836
    %v846 = vxor.u32 %v838, 2147483648
    %v847 = vxor.u32 %v842, 2147483648
    %v848 = vmul.f32 %v846, 1.442695
    %v849 = vpow.pop %v848
    %v850 = vmul.f32 %v847, 1.442695
    %v851 = vpow.pop %v850
    %v852 = vadd.f32 %v849, 1.0
    %v853 = vadd.f32 %v851, 1.0
    %v854 = vrcp.pop %v852
    %v855 = vmul.f32 1.0, %v854
    %v856 = vrcp.pop %v853
    %v857 = vmul.f32 1.0, %v856
    %v858 = vxor.u32 %v839, 2147483648
    %v859 = vxor.u32 %v843, 2147483648
    %v860 = vmul.f32 %v858, 1.442695
    %v861 = vpow.pop %v860
    %v862 = vmul.f32 %v859, 1.442695
    %v863 = vpow.pop %v862
    %v864 = vadd.f32 %v861, 1.0
    %v865 = vadd.f32 %v863, 1.0
    %v866 = vrcp.pop %v864
    %v867 = vmul.f32 1.0, %v866
    %v868 = vrcp.pop %v865
    %v869 = vmul.f32 1.0, %v868
    %v870 = vtanh.pop %v840
    %v871 = vtanh.pop %v844
    %v872 = vxor.u32 %v841, 2147483648
    %v873 = vxor.u32 %v845, 2147483648
    %v874 = vmul.f32 %v872, 1.442695
    %v875 = vpow.pop %v874
    %v876 = vmul.f32 %v873, 1.442695
    %v877 = vpow.pop %v876
    %v878 = vadd.f32 %v875, 1.0
    %v879 = vadd.f32 %v877, 1.0
    %v880 = vrcp.pop %v878
    %v881 = vmul.f32 1.0, %v880
    %v882 = vrcp.pop %v879
    %v883 = vmul.f32 1.0, %v882
    %v884 = vmul.f32 %v867, %v590
    %v885 = vmul.f32 %v869, %v591
    %v886 = vmul.f32 %v855, %v870
    %v887 = vmul.f32 %v857, %v871
    %v888 = vadd.f32 %v884, %v886
    %v889 = vadd.f32 %v885, %v887
    %v890 = vtanh.pop %v888
    %v891 = vtanh.pop %v889
    %v892 = vmul.f32 %v881, %v890
    %v893 = vmul.f32 %v883, %v891
    %v894 = vpack.c.bf16 %v893, %v892
    %895 = vst [vmem:[#allocation2] sm:$0xff] %v894
    %896 = vst [vmem:[#allocation3] sm:$0xff] %v888
    %897 = vst [vmem:[#allocation3 + $0x8] sm:$0xff] %v889
    %v899 = vunpack.c.l.b16 %v894
    %v900 = vunpack.c.h.b16 %v894
    %v901 = vpack.c.b16 %v899, %v899
    %v902 = vpack.c.b16 %v900, %v900
    %905 = vst [vmem:[%s4] sm:$0xf] %v901
    %906 = vst [vmem:[%s4 + $0x4] sm:$0xf] %v902
    %v907 = vld [vmem:[#allocation2] sm:$0xff]
    %v908 = vld [vmem:[#allocation3] sm:$0xff]
    %v909 = vld [vmem:[#allocation3 + $0x8] sm:$0xff]
    %910 = vmatprep.subr.bf16.mxu0 %v689
    %911 = vmatpush1.bf16.msra.mxu0 %v688
    %912 = vmatprep.subr.bf16.mxu0 %v693
    %913 = vmatpush1.bf16.msra.mxu0 %v692
    %914 = vmatprep.subr.bf16.mxu0 %v697
    %915 = vmatpush1.bf16.msra.mxu0 %v696
    %916 = vmatprep.subr.bf16.mxu0 %v701
    %917 = vmatpush1.bf16.msra.mxu0 %v700
    %918 = vmatprep.subr.bf16.mxu0 %v705
    %919 = vmatpush1.bf16.msra.mxu0 %v704
    %920 = vmatprep.subr.bf16.mxu0 %v709
    %921 = vmatpush1.bf16.msra.mxu0 %v708
    %922 = vmatprep.subr.bf16.mxu0 %v713
    %923 = vmatpush1.bf16.msra.mxu0 %v712
    %924 = vmatprep.subr.bf16.mxu0 %v717
    %925 = vmatpush1.bf16.msra.mxu0 %v716
    %926 = vmatprep.subr.bf16.mxu0 0
    %927 = vmatpush1.bf16.msra.mxu0 0
    %928 = vmatprep.subr.bf16.mxu0 0
    %929 = vmatpush1.bf16.msra.mxu0 0
    %930 = vmatprep.subr.bf16.mxu0 0
    %931 = vmatpush1.bf16.msra.mxu0 0
    %932 = vmatprep.subr.bf16.mxu0 0
    %933 = vmatpush1.bf16.msra.mxu0 0
    %934 = vmatprep.subr.bf16.mxu0 0
    %935 = vmatpush1.bf16.msra.mxu0 0
    %936 = vmatprep.subr.bf16.mxu0 0
    %937 = vmatpush1.bf16.msra.mxu0 0
    %938 = vmatprep.subr.bf16.mxu0 0
    %939 = vmatpush1.bf16.msra.mxu0 0
    %940 = vmatprep.subr.bf16.mxu0 0
    %941 = vmatpush1.bf16.msra.mxu0 0
    %942 = vmatprep.mubr.bf16.mxu0 0
    %943 = vmatmul.mubr.bf16.gmra.mrb[0].mxu0 %v907
    %v944 = vpop.f32.mrb[0].mxu0
    %v945 = vadd.f32 0.0, %v944
    %v946 = vpop.f32.mrb[0].mxu0
    %v947 = vadd.f32 0.0, %v946
    %v948 = vpop.f32.mrb[0].mxu0
    %v949 = vadd.f32 0.0, %v948
    %v950 = vpop.f32.mrb[0].mxu0
    %v951 = vadd.f32 0.0, %v950
    %952 = vdwg.mxu0
    %953 = vmatprep.subr.bf16.mxu0 %v691
    %954 = vmatpush1.bf16.msra.mxu0 %v690
    %955 = vmatprep.subr.bf16.mxu0 %v695
    %956 = vmatpush1.bf16.msra.mxu0 %v694
    %957 = vmatprep.subr.bf16.mxu0 %v699
    %958 = vmatpush1.bf16.msra.mxu0 %v698
    %959 = vmatprep.subr.bf16.mxu0 %v703
    %960 = vmatpush1.bf16.msra.mxu0 %v702
    %961 = vmatprep.subr.bf16.mxu0 %v707
    %962 = vmatpush1.bf16.msra.mxu0 %v706
    %963 = vmatprep.subr.bf16.mxu0 %v711
    %964 = vmatpush1.bf16.msra.mxu0 %v710
    %965 = vmatprep.subr.bf16.mxu0 %v715
    %966 = vmatpush1.bf16.msra.mxu0 %v714
    %967 = vmatprep.subr.bf16.mxu0 %v719
    %968 = vmatpush1.bf16.msra.mxu0 %v718
    %969 = vmatprep.subr.bf16.mxu0 0
    %970 = vmatpush1.bf16.msra.mxu0 0
    %971 = vmatprep.subr.bf16.mxu0 0
    %972 = vmatpush1.bf16.msra.mxu0 0
    %973 = vmatprep.subr.bf16.mxu0 0
    %974 = vmatpush1.bf16.msra.mxu0 0
    %975 = vmatprep.subr.bf16.mxu0 0
    %976 = vmatpush1.bf16.msra.mxu0 0
    %977 = vmatprep.subr.bf16.mxu0 0
    %978 = vmatpush1.bf16.msra.mxu0 0
    %979 = vmatprep.subr.bf16.mxu0 0
    %980 = vmatpush1.bf16.msra.mxu0 0
    %981 = vmatprep.subr.bf16.mxu0 0
    %982 = vmatpush1.bf16.msra.mxu0 0
    %983 = vmatprep.subr.bf16.mxu0 0
    %984 = vmatpush1.bf16.msra.mxu0 0
    %985 = vmatprep.mubr.bf16.mxu0 0
    %986 = vmatmul.mubr.bf16.gmra.mrb[0].mxu0 %v907
    %v987 = vpop.f32.mrb[0].mxu0
    %v988 = vadd.f32 0.0, %v987
    %v989 = vpop.f32.mrb[0].mxu0
    %v990 = vadd.f32 0.0, %v989
    %v991 = vpop.f32.mrb[0].mxu0
    %v992 = vadd.f32 0.0, %v991
    %v993 = vpop.f32.mrb[0].mxu0
    %v994 = vadd.f32 0.0, %v993
    %995 = vdwg.mxu0
    %v996 = vadd.f32 %v376, %v945
    %v997 = vadd.f32 %v378, %v947
    %v998 = vadd.f32 %v489, %v988
    %v999 = vadd.f32 %v491, %v990
    %v1000 = vadd.f32 %v380, %v949
    %v1001 = vadd.f32 %v382, %v951
    %v1002 = vadd.f32 %v493, %v992
    %v1003 = vadd.f32 %v495, %v994
    %v1004 = vxor.u32 %v996, 2147483648
    %v1005 = vxor.u32 %v1000, 2147483648
    %v1006 = vmul.f32 %v1004, 1.442695
    %v1007 = vpow.pop %v1006
    %v1008 = vmul.f32 %v1005, 1.442695
    %v1009 = vpow.pop %v1008
    %v1010 = vadd.f32 %v1007, 1.0
    %v1011 = vadd.f32 %v1009, 1.0
    %v1012 = vrcp.pop %v1010
    %v1013 = vmul.f32 1.0, %v1012
    %v1014 = vrcp.pop %v1011
    %v1015 = vmul.f32 1.0, %v1014
    %v1016 = vxor.u32 %v997, 2147483648
    %v1017 = vxor.u32 %v1001, 2147483648
    %v1018 = vmul.f32 %v1016, 1.442695
    %v1019 = vpow.pop %v1018
    %v1020 = vmul.f32 %v1017, 1.442695
    %v1021 = vpow.pop %v1020
    %v1022 = vadd.f32 %v1019, 1.0
    %v1023 = vadd.f32 %v1021, 1.0
    %v1024 = vrcp.pop %v1022
    %v1025 = vmul.f32 1.0, %v1024
    %v1026 = vrcp.pop %v1023
    %v1027 = vmul.f32 1.0, %v1026
    %v1028 = vtanh.pop %v998
    %v1029 = vtanh.pop %v1002
    %v1030 = vxor.u32 %v999, 2147483648
    %v1031 = vxor.u32 %v1003, 2147483648
    %v1032 = vmul.f32 %v1030, 1.442695
    %v1033 = vpow.pop %v1032
    %v1034 = vmul.f32 %v1031, 1.442695
    %v1035 = vpow.pop %v1034
    %v1036 = vadd.f32 %v1033, 1.0
    %v1037 = vadd.f32 %v1035, 1.0
    %v1038 = vrcp.pop %v1036
    %v1039 = vmul.f32 1.0, %v1038
    %v1040 = vrcp.pop %v1037
    %v1041 = vmul.f32 1.0, %v1040
    %v1042 = vmul.f32 %v1025, %v908
    %v1043 = vmul.f32 %v1027, %v909
    %v1044 = vmul.f32 %v1013, %v1028
    %v1045 = vmul.f32 %v1015, %v1029
    %v1046 = vadd.f32 %v1042, %v1044
    %v1047 = vadd.f32 %v1043, %v1045
    %v1048 = vtanh.pop %v1046
    %v1049 = vtanh.pop %v1047
    %v1050 = vmul.f32 %v1039, %v1048
    %v1051 = vmul.f32 %v1041, %v1049
    %v1052 = vpack.c.bf16 %v1051, %v1050
    %1053 = vst [vmem:[#allocation2] sm:$0xff] %v1052
    %1054 = vst [vmem:[#allocation3] sm:$0xff] %v1046
    %1055 = vst [vmem:[#allocation3 + $0x8] sm:$0xff] %v1047
    %v1057 = vunpack.c.l.b16 %v1052
    %v1058 = vunpack.c.h.b16 %v1052
    %v1059 = vpack.c.b16 %v1057, %v1057
    %v1060 = vpack.c.b16 %v1058, %v1058
    %s1063 = scalar_lea.vmem %s4, 8
    %1064 = vst [vmem:[%s1063] sm:$0xf] %v1059
    %1065 = vst [vmem:[%s1063 + $0x4] sm:$0xf] %v1060
    %v1066 = vld [vmem:[#allocation2] sm:$0xff]
    %v1067 = vld [vmem:[#allocation3] sm:$0xff]
    %v1068 = vld [vmem:[#allocation3 + $0x8] sm:$0xff]
    %1069 = vmatprep.subr.bf16.mxu0 %v689
    %1070 = vmatpush1.bf16.msra.mxu0 %v688
    %1071 = vmatprep.subr.bf16.mxu0 %v693
    %1072 = vmatpush1.bf16.msra.mxu0 %v692
    %1073 = vmatprep.subr.bf16.mxu0 %v697
    %1074 = vmatpush1.bf16.msra.mxu0 %v696
    %1075 = vmatprep.subr.bf16.mxu0 %v701
    %1076 = vmatpush1.bf16.msra.mxu0 %v700
    %1077 = vmatprep.subr.bf16.mxu0 %v705
    %1078 = vmatpush1.bf16.msra.mxu0 %v704
    %1079 = vmatprep.subr.bf16.mxu0 %v709
    %1080 = vmatpush1.bf16.msra.mxu0 %v708
    %1081 = vmatprep.subr.bf16.mxu0 %v713
    %1082 = vmatpush1.bf16.msra.mxu0 %v712
    %1083 = vmatprep.subr.bf16.mxu0 %v717
    %1084 = vmatpush1.bf16.msra.mxu0 %v716
    %1085 = vmatprep.subr.bf16.mxu0 0
    %1086 = vmatpush1.bf16.msra.mxu0 0
    %1087 = vmatprep.subr.bf16.mxu0 0
    %1088 = vmatpush1.bf16.msra.mxu0 0
    %1089 = vmatprep.subr.bf16.mxu0 0
    %1090 = vmatpush1.bf16.msra.mxu0 0
    %1091 = vmatprep.subr.bf16.mxu0 0
    %1092 = vmatpush1.bf16.msra.mxu0 0
    %1093 = vmatprep.subr.bf16.mxu0 0
    %1094 = vmatpush1.bf16.msra.mxu0 0
    %1095 = vmatprep.subr.bf16.mxu0 0
    %1096 = vmatpush1.bf16.msra.mxu0 0
    %1097 = vmatprep.subr.bf16.mxu0 0
    %1098 = vmatpush1.bf16.msra.mxu0 0
    %1099 = vmatprep.subr.bf16.mxu0 0
    %1100 = vmatpush1.bf16.msra.mxu0 0
    %1101 = vmatprep.mubr.bf16.mxu0 0
    %1102 = vmatmul.mubr.bf16.gmra.mrb[0].mxu0 %v1066
    %v1103 = vpop.f32.mrb[0].mxu0
    %v1104 = vadd.f32 0.0, %v1103
    %v1105 = vpop.f32.mrb[0].mxu0
    %v1106 = vadd.f32 0.0, %v1105
    %v1107 = vpop.f32.mrb[0].mxu0
    %v1108 = vadd.f32 0.0, %v1107
    %v1109 = vpop.f32.mrb[0].mxu0
    %v1110 = vadd.f32 0.0, %v1109
    %1111 = vdwg.mxu0
    %1112 = vmatprep.subr.bf16.mxu0 %v691
    %1113 = vmatpush1.bf16.msra.mxu0 %v690
    %1114 = vmatprep.subr.bf16.mxu0 %v695
    %1115 = vmatpush1.bf16.msra.mxu0 %v694
    %1116 = vmatprep.subr.bf16.mxu0 %v699
    %1117 = vmatpush1.bf16.msra.mxu0 %v698
    %1118 = vmatprep.subr.bf16.mxu0 %v703
    %1119 = vmatpush1.bf16.msra.mxu0 %v702
    %1120 = vmatprep.subr.bf16.mxu0 %v707
    %1121 = vmatpush1.bf16.msra.mxu0 %v706
    %1122 = vmatprep.subr.bf16.mxu0 %v711
    %1123 = vmatpush1.bf16.msra.mxu0 %v710
    %1124 = vmatprep.subr.bf16.mxu0 %v715
    %1125 = vmatpush1.bf16.msra.mxu0 %v714
    %1126 = vmatprep.subr.bf16.mxu0 %v719
    %1127 = vmatpush1.bf16.msra.mxu0 %v718
    %1128 = vmatprep.subr.bf16.mxu0 0
    %1129 = vmatpush1.bf16.msra.mxu0 0
    %1130 = vmatprep.subr.bf16.mxu0 0
    %1131 = vmatpush1.bf16.msra.mxu0 0
    %1132 = vmatprep.subr.bf16.mxu0 0
    %1133 = vmatpush1.bf16.msra.mxu0 0
    %1134 = vmatprep.subr.bf16.mxu0 0
    %1135 = vmatpush1.bf16.msra.mxu0 0
    %1136 = vmatprep.subr.bf16.mxu0 0
    %1137 = vmatpush1.bf16.msra.mxu0 0
    %1138 = vmatprep.subr.bf16.mxu0 0
    %1139 = vmatpush1.bf16.msra.mxu0 0
    %1140 = vmatprep.subr.bf16.mxu0 0
    %1141 = vmatpush1.bf16.msra.mxu0 0
    %1142 = vmatprep.subr.bf16.mxu0 0
    %1143 = vmatpush1.bf16.msra.mxu0 0
    %1144 = vmatprep.mubr.bf16.mxu0 0
    %1145 = vmatmul.mubr.bf16.gmra.mrb[0].mxu0 %v1066
    %v1146 = vpop.f32.mrb[0].mxu0
    %v1147 = vadd.f32 0.0, %v1146
    %v1148 = vpop.f32.mrb[0].mxu0
    %v1149 = vadd.f32 0.0, %v1148
    %v1150 = vpop.f32.mrb[0].mxu0
    %v1151 = vadd.f32 0.0, %v1150
    %v1152 = vpop.f32.mrb[0].mxu0
    %v1153 = vadd.f32 0.0, %v1152
    %1154 = vdwg.mxu0
    %v1155 = vadd.f32 %v386, %v1104
    %v1156 = vadd.f32 %v388, %v1106
    %v1157 = vadd.f32 %v499, %v1147
    %v1158 = vadd.f32 %v501, %v1149
    %v1159 = vadd.f32 %v390, %v1108
    %v1160 = vadd.f32 %v392, %v1110
    %v1161 = vadd.f32 %v503, %v1151
    %v1162 = vadd.f32 %v505, %v1153
    %v1163 = vxor.u32 %v1155, 2147483648
    %v1164 = vxor.u32 %v1159, 2147483648
    %v1165 = vmul.f32 %v1163, 1.442695
    %v1166 = vpow.pop %v1165
    %v1167 = vmul.f32 %v1164, 1.442695
    %v1168 = vpow.pop %v1167
    %v1169 = vadd.f32 %v1166, 1.0
    %v1170 = vadd.f32 %v1168, 1.0
    %v1171 = vrcp.pop %v1169
    %v1172 = vmul.f32 1.0, %v1171
    %v1173 = vrcp.pop %v1170
    %v1174 = vmul.f32 1.0, %v1173
    %v1175 = vxor.u32 %v1156, 2147483648
    %v1176 = vxor.u32 %v1160, 2147483648
    %v1177 = vmul.f32 %v1175, 1.442695
    %v1178 = vpow.pop %v1177
    %v1179 = vmul.f32 %v1176, 1.442695
    %v1180 = vpow.pop %v1179
    %v1181 = vadd.f32 %v1178, 1.0
    %v1182 = vadd.f32 %v1180, 1.0
    %v1183 = vrcp.pop %v1181
    %v1184 = vmul.f32 1.0, %v1183
    %v1185 = vrcp.pop %v1182
    %v1186 = vmul.f32 1.0, %v1185
    %v1187 = vtanh.pop %v1157
    %v1188 = vtanh.pop %v1161
    %v1189 = vxor.u32 %v1158, 2147483648
    %v1190 = vxor.u32 %v1162, 2147483648
    %v1191 = vmul.f32 %v1189, 1.442695
    %v1192 = vpow.pop %v1191
    %v1193 = vmul.f32 %v1190, 1.442695
    %v1194 = vpow.pop %v1193
    %v1195 = vadd.f32 %v1192, 1.0
    %v1196 = vadd.f32 %v1194, 1.0
    %v1197 = vrcp.pop %v1195
    %v1198 = vmul.f32 1.0, %v1197
    %v1199 = vrcp.pop %v1196
    %v1200 = vmul.f32 1.0, %v1199
    %v1201 = vmul.f32 %v1184, %v1067
    %v1202 = vmul.f32 %v1186, %v1068
    %v1203 = vmul.f32 %v1172, %v1187
    %v1204 = vmul.f32 %v1174, %v1188
    %v1205 = vadd.f32 %v1201, %v1203
    %v1206 = vadd.f32 %v1202, %v1204
    %v1207 = vtanh.pop %v1205
    %v1208 = vtanh.pop %v1206
    %v1209 = vmul.f32 %v1198, %v1207
    %v1210 = vmul.f32 %v1200, %v1208
    %v1211 = vpack.c.bf16 %v1210, %v1209
    %1212 = vst [vmem:[#allocation2] sm:$0xff] %v1211
    %1213 = vst [vmem:[#allocation3] sm:$0xff] %v1205
    %1214 = vst [vmem:[#allocation3 + $0x8] sm:$0xff] %v1206
    %v1216 = vunpack.c.l.b16 %v1211
    %v1217 = vunpack.c.h.b16 %v1211
    %v1218 = vpack.c.b16 %v1216, %v1216
    %v1219 = vpack.c.b16 %v1217, %v1217
    %s1222 = scalar_lea.vmem %s4, 16
    %1223 = vst [vmem:[%s1222] sm:$0xf] %v1218
    %1224 = vst [vmem:[%s1222 + $0x4] sm:$0xf] %v1219
    %v1225 = vld [vmem:[#allocation2] sm:$0xff]
    %v1226 = vld [vmem:[#allocation3] sm:$0xff]
    %v1227 = vld [vmem:[#allocation3 + $0x8] sm:$0xff]
    %1228 = vmatprep.subr.bf16.mxu0 %v689
    %1229 = vmatpush1.bf16.msra.mxu0 %v688
    %1230 = vmatprep.subr.bf16.mxu0 %v693
    %1231 = vmatpush1.bf16.msra.mxu0 %v692
    %1232 = vmatprep.subr.bf16.mxu0 %v697
    %1233 = vmatpush1.bf16.msra.mxu0 %v696
    %1234 = vmatprep.subr.bf16.mxu0 %v701
    %1235 = vmatpush1.bf16.msra.mxu0 %v700
    %1236 = vmatprep.subr.bf16.mxu0 %v705
    %1237 = vmatpush1.bf16.msra.mxu0 %v704
    %1238 = vmatprep.subr.bf16.mxu0 %v709
    %1239 = vmatpush1.bf16.msra.mxu0 %v708
    %1240 = vmatprep.subr.bf16.mxu0 %v713
    %1241 = vmatpush1.bf16.msra.mxu0 %v712
    %1242 = vmatprep.subr.bf16.mxu0 %v717
    %1243 = vmatpush1.bf16.msra.mxu0 %v716
    %1244 = vmatprep.subr.bf16.mxu0 0
    %1245 = vmatpush1.bf16.msra.mxu0 0
    %1246 = vmatprep.subr.bf16.mxu0 0
    %1247 = vmatpush1.bf16.msra.mxu0 0
    %1248 = vmatprep.subr.bf16.mxu0 0
    %1249 = vmatpush1.bf16.msra.mxu0 0
    %1250 = vmatprep.subr.bf16.mxu0 0
    %1251 = vmatpush1.bf16.msra.mxu0 0
    %1252 = vmatprep.subr.bf16.mxu0 0
    %1253 = vmatpush1.bf16.msra.mxu0 0
    %1254 = vmatprep.subr.bf16.mxu0 0
    %1255 = vmatpush1.bf16.msra.mxu0 0
    %1256 = vmatprep.subr.bf16.mxu0 0
    %1257 = vmatpush1.bf16.msra.mxu0 0
    %1258 = vmatprep.subr.bf16.mxu0 0
    %1259 = vmatpush1.bf16.msra.mxu0 0
    %1260 = vmatprep.mubr.bf16.mxu0 0
    %1261 = vmatmul.mubr.bf16.gmra.mrb[0].mxu0 %v1225
    %v1262 = vpop.f32.mrb[0].mxu0
    %v1263 = vadd.f32 0.0, %v1262
    %v1264 = vpop.f32.mrb[0].mxu0
    %v1265 = vadd.f32 0.0, %v1264
    %v1266 = vpop.f32.mrb[0].mxu0
    %v1267 = vadd.f32 0.0, %v1266
    %v1268 = vpop.f32.mrb[0].mxu0
    %v1269 = vadd.f32 0.0, %v1268
    %1270 = vdwg.mxu0
    %1271 = vmatprep.subr.bf16.mxu0 %v691
    %1272 = vmatpush1.bf16.msra.mxu0 %v690
    %1273 = vmatprep.subr.bf16.mxu0 %v695
    %1274 = vmatpush1.bf16.msra.mxu0 %v694
    %1275 = vmatprep.subr.bf16.mxu0 %v699
    %1276 = vmatpush1.bf16.msra.mxu0 %v698
    %1277 = vmatprep.subr.bf16.mxu0 %v703
    %1278 = vmatpush1.bf16.msra.mxu0 %v702
    %1279 = vmatprep.subr.bf16.mxu0 %v707
    %1280 = vmatpush1.bf16.msra.mxu0 %v706
    %1281 = vmatprep.subr.bf16.mxu0 %v711
    %1282 = vmatpush1.bf16.msra.mxu0 %v710
    %1283 = vmatprep.subr.bf16.mxu0 %v715
    %1284 = vmatpush1.bf16.msra.mxu0 %v714
    %1285 = vmatprep.subr.bf16.mxu0 %v719
    %1286 = vmatpush1.bf16.msra.mxu0 %v718
    %1287 = vmatprep.subr.bf16.mxu0 0
    %1288 = vmatpush1.bf16.msra.mxu0 0
    %1289 = vmatprep.subr.bf16.mxu0 0
    %1290 = vmatpush1.bf16.msra.mxu0 0
    %1291 = vmatprep.subr.bf16.mxu0 0
    %1292 = vmatpush1.bf16.msra.mxu0 0
    %1293 = vmatprep.subr.bf16.mxu0 0
    %1294 = vmatpush1.bf16.msra.mxu0 0
    %1295 = vmatprep.subr.bf16.mxu0 0
    %1296 = vmatpush1.bf16.msra.mxu0 0
    %1297 = vmatprep.subr.bf16.mxu0 0
    %1298 = vmatpush1.bf16.msra.mxu0 0
    %1299 = vmatprep.subr.bf16.mxu0 0
    %1300 = vmatpush1.bf16.msra.mxu0 0
    %1301 = vmatprep.subr.bf16.mxu0 0
    %1302 = vmatpush1.bf16.msra.mxu0 0
    %1303 = vmatprep.mubr.bf16.mxu0 0
    %1304 = vmatmul.mubr.bf16.gmra.mrb[0].mxu0 %v1225
    %v1305 = vpop.f32.mrb[0].mxu0
    %v1306 = vadd.f32 0.0, %v1305
    %v1307 = vpop.f32.mrb[0].mxu0
    %v1308 = vadd.f32 0.0, %v1307
    %v1309 = vpop.f32.mrb[0].mxu0
    %v1310 = vadd.f32 0.0, %v1309
    %v1311 = vpop.f32.mrb[0].mxu0
    %v1312 = vadd.f32 0.0, %v1311
    %1313 = vdwg.mxu0
    %v1314 = vadd.f32 %v396, %v1263
    %v1315 = vadd.f32 %v398, %v1265
    %v1316 = vadd.f32 %v509, %v1306
    %v1317 = vadd.f32 %v511, %v1308
    %v1318 = vadd.f32 %v400, %v1267
    %v1319 = vadd.f32 %v402, %v1269
    %v1320 = vadd.f32 %v513, %v1310
    %v1321 = vadd.f32 %v515, %v1312
    %v1322 = vxor.u32 %v1314, 2147483648
    %v1323 = vxor.u32 %v1318, 2147483648
    %v1324 = vmul.f32 %v1322, 1.442695
    %v1325 = vpow.pop %v1324
    %v1326 = vmul.f32 %v1323, 1.442695
    %v1327 = vpow.pop %v1326
    %v1328 = vadd.f32 %v1325, 1.0
    %v1329 = vadd.f32 %v1327, 1.0
    %v1330 = vrcp.pop %v1328
    %v1331 = vmul.f32 1.0, %v1330
    %v1332 = vrcp.pop %v1329
    %v1333 = vmul.f32 1.0, %v1332
    %v1334 = vxor.u32 %v1315, 2147483648
    %v1335 = vxor.u32 %v1319, 2147483648
    %v1336 = vmul.f32 %v1334, 1.442695
    %v1337 = vpow.pop %v1336
    %v1338 = vmul.f32 %v1335, 1.442695
    %v1339 = vpow.pop %v1338
    %v1340 = vadd.f32 %v1337, 1.0
    %v1341 = vadd.f32 %v1339, 1.0
    %v1342 = vrcp.pop %v1340
    %v1343 = vmul.f32 1.0, %v1342
    %v1344 = vrcp.pop %v1341
    %v1345 = vmul.f32 1.0, %v1344
    %v1346 = vtanh.pop %v1316
    %v1347 = vtanh.pop %v1320
    %v1348 = vxor.u32 %v1317, 2147483648
    %v1349 = vxor.u32 %v1321, 2147483648
    %v1350 = vmul.f32 %v1348, 1.442695
    %v1351 = vpow.pop %v1350
    %v1352 = vmul.f32 %v1349, 1.442695
    %v1353 = vpow.pop %v1352
    %v1354 = vadd.f32 %v1351, 1.0
    %v1355 = vadd.f32 %v1353, 1.0
    %v1356 = vrcp.pop %v1354
    %v1357 = vmul.f32 1.0, %v1356
    %v1358 = vrcp.pop %v1355
    %v1359 = vmul.f32 1.0, %v1358
    %v1360 = vmul.f32 %v1343, %v1226
    %v1361 = vmul.f32 %v1345, %v1227
    %v1362 = vmul.f32 %v1331, %v1346
    %v1363 = vmul.f32 %v1333, %v1347
    %v1364 = vadd.f32 %v1360, %v1362
    %v1365 = vadd.f32 %v1361, %v1363
    %v1366 = vtanh.pop %v1364
    %v1367 = vtanh.pop %v1365
    %v1368 = vmul.f32 %v1357, %v1366
    %v1369 = vmul.f32 %v1359, %v1367
    %v1370 = vpack.c.bf16 %v1369, %v1368
    %1371 = vst [vmem:[#allocation2] sm:$0xff] %v1370
    %1372 = vst [vmem:[#allocation3] sm:$0xff] %v1364
    %1373 = vst [vmem:[#allocation3 + $0x8] sm:$0xff] %v1365
    %v1375 = vunpack.c.l.b16 %v1370
    %v1376 = vunpack.c.h.b16 %v1370
    %v1377 = vpack.c.b16 %v1375, %v1375
    %v1378 = vpack.c.b16 %v1376, %v1376
    %s1381 = scalar_lea.vmem %s4, 24
    %1382 = vst [vmem:[%s1381] sm:$0xf] %v1377
    %1383 = vst [vmem:[%s1381 + $0x4] sm:$0xf] %v1378
    %v1384 = vld [vmem:[#allocation2] sm:$0xff]
    %v1385 = vld [vmem:[#allocation3] sm:$0xff]
    %v1386 = vld [vmem:[#allocation3 + $0x8] sm:$0xff]
    %1387 = vmatprep.subr.bf16.mxu0 %v689
    %1388 = vmatpush1.bf16.msra.mxu0 %v688
    %1389 = vmatprep.subr.bf16.mxu0 %v693
    %1390 = vmatpush1.bf16.msra.mxu0 %v692
    %1391 = vmatprep.subr.bf16.mxu0 %v697
    %1392 = vmatpush1.bf16.msra.mxu0 %v696
    %1393 = vmatprep.subr.bf16.mxu0 %v701
    %1394 = vmatpush1.bf16.msra.mxu0 %v700
    %1395 = vmatprep.subr.bf16.mxu0 %v705
    %1396 = vmatpush1.bf16.msra.mxu0 %v704
    %1397 = vmatprep.subr.bf16.mxu0 %v709
    %1398 = vmatpush1.bf16.msra.mxu0 %v708
    %1399 = vmatprep.subr.bf16.mxu0 %v713
    %1400 = vmatpush1.bf16.msra.mxu0 %v712
    %1401 = vmatprep.subr.bf16.mxu0 %v717
    %1402 = vmatpush1.bf16.msra.mxu0 %v716
    %1403 = vmatprep.subr.bf16.mxu0 0
    %1404 = vmatpush1.bf16.msra.mxu0 0
    %1405 = vmatprep.subr.bf16.mxu0 0
    %1406 = vmatpush1.bf16.msra.mxu0 0
    %1407 = vmatprep.subr.bf16.mxu0 0
    %1408 = vmatpush1.bf16.msra.mxu0 0
    %1409 = vmatprep.subr.bf16.mxu0 0
    %1410 = vmatpush1.bf16.msra.mxu0 0
    %1411 = vmatprep.subr.bf16.mxu0 0
    %1412 = vmatpush1.bf16.msra.mxu0 0
    %1413 = vmatprep.subr.bf16.mxu0 0
    %1414 = vmatpush1.bf16.msra.mxu0 0
    %1415 = vmatprep.subr.bf16.mxu0 0
    %1416 = vmatpush1.bf16.msra.mxu0 0
    %1417 = vmatprep.subr.bf16.mxu0 0
    %1418 = vmatpush1.bf16.msra.mxu0 0
    %1419 = vmatprep.mubr.bf16.mxu0 0
    %1420 = vmatmul.mubr.bf16.gmra.mrb[0].mxu0 %v1384
    %v1421 = vpop.f32.mrb[0].mxu0
    %v1422 = vadd.f32 0.0, %v1421
    %v1423 = vpop.f32.mrb[0].mxu0
    %v1424 = vadd.f32 0.0, %v1423
    %v1425 = vpop.f32.mrb[0].mxu0
    %v1426 = vadd.f32 0.0, %v1425
    %v1427 = vpop.f32.mrb[0].mxu0
    %v1428 = vadd.f32 0.0, %v1427
    %1429 = vdwg.mxu0
    %1430 = vmatprep.subr.bf16.mxu0 %v691
    %1431 = vmatpush1.bf16.msra.mxu0 %v690
    %1432 = vmatprep.subr.bf16.mxu0 %v695
    %1433 = vmatpush1.bf16.msra.mxu0 %v694
    %1434 = vmatprep.subr.bf16.mxu0 %v699
    %1435 = vmatpush1.bf16.msra.mxu0 %v698
    %1436 = vmatprep.subr.bf16.mxu0 %v703
    %1437 = vmatpush1.bf16.msra.mxu0 %v702
    %1438 = vmatprep.subr.bf16.mxu0 %v707
    %1439 = vmatpush1.bf16.msra.mxu0 %v706
    %1440 = vmatprep.subr.bf16.mxu0 %v711
    %1441 = vmatpush1.bf16.msra.mxu0 %v710
    %1442 = vmatprep.subr.bf16.mxu0 %v715
    %1443 = vmatpush1.bf16.msra.mxu0 %v714
    %1444 = vmatprep.subr.bf16.mxu0 %v719
    %1445 = vmatpush1.bf16.msra.mxu0 %v718
    %1446 = vmatprep.subr.bf16.mxu0 0
    %1447 = vmatpush1.bf16.msra.mxu0 0
    %1448 = vmatprep.subr.bf16.mxu0 0
    %1449 = vmatpush1.bf16.msra.mxu0 0
    %1450 = vmatprep.subr.bf16.mxu0 0
    %1451 = vmatpush1.bf16.msra.mxu0 0
    %1452 = vmatprep.subr.bf16.mxu0 0
    %1453 = vmatpush1.bf16.msra.mxu0 0
    %1454 = vmatprep.subr.bf16.mxu0 0
    %1455 = vmatpush1.bf16.msra.mxu0 0
    %1456 = vmatprep.subr.bf16.mxu0 0
    %1457 = vmatpush1.bf16.msra.mxu0 0
    %1458 = vmatprep.subr.bf16.mxu0 0
    %1459 = vmatpush1.bf16.msra.mxu0 0
    %1460 = vmatprep.subr.bf16.mxu0 0
    %1461 = vmatpush1.bf16.msra.mxu0 0
    %1462 = vmatprep.mubr.bf16.mxu0 0
    %1463 = vmatmul.mubr.bf16.gmra.mrb[0].mxu0 %v1384
    %v1464 = vpop.f32.mrb[0].mxu0
    %v1465 = vadd.f32 0.0, %v1464
    %v1466 = vpop.f32.mrb[0].mxu0
    %v1467 = vadd.f32 0.0, %v1466
    %v1468 = vpop.f32.mrb[0].mxu0
    %v1469 = vadd.f32 0.0, %v1468
    %v1470 = vpop.f32.mrb[0].mxu0
    %v1471 = vadd.f32 0.0, %v1470
    %1472 = vdwg.mxu0
    %v1473 = vadd.f32 %v406, %v1422
    %v1474 = vadd.f32 %v408, %v1424
    %v1475 = vadd.f32 %v519, %v1465
    %v1476 = vadd.f32 %v521, %v1467
    %v1477 = vadd.f32 %v410, %v1426
    %v1478 = vadd.f32 %v412, %v1428
    %v1479 = vadd.f32 %v523, %v1469
    %v1480 = vadd.f32 %v525, %v1471
    %v1481 = vxor.u32 %v1473, 2147483648
    %v1482 = vxor.u32 %v1477, 2147483648
    %v1483 = vmul.f32 %v1481, 1.442695
    %v1484 = vpow.pop %v1483
    %v1485 = vmul.f32 %v1482, 1.442695
    %v1486 = vpow.pop %v1485
    %v1487 = vadd.f32 %v1484, 1.0
    %v1488 = vadd.f32 %v1486, 1.0
    %v1489 = vrcp.pop %v1487
    %v1490 = vmul.f32 1.0, %v1489
    %v1491 = vrcp.pop %v1488
    %v1492 = vmul.f32 1.0, %v1491
    %v1493 = vxor.u32 %v1474, 2147483648
    %v1494 = vxor.u32 %v1478, 2147483648
    %v1495 = vmul.f32 %v1493, 1.442695
    %v1496 = vpow.pop %v1495
    %v1497 = vmul.f32 %v1494, 1.442695
    %v1498 = vpow.pop %v1497
    %v1499 = vadd.f32 %v1496, 1.0
    %v1500 = vadd.f32 %v1498, 1.0
    %v1501 = vrcp.pop %v1499
    %v1502 = vmul.f32 1.0, %v1501
    %v1503 = vrcp.pop %v1500
    %v1504 = vmul.f32 1.0, %v1503
    %v1505 = vtanh.pop %v1475
    %v1506 = vtanh.pop %v1479
    %v1507 = vxor.u32 %v1476, 2147483648
    %v1508 = vxor.u32 %v1480, 2147483648
    %v1509 = vmul.f32 %v1507, 1.442695
    %v1510 = vpow.pop %v1509
    %v1511 = vmul.f32 %v1508, 1.442695
    %v1512 = vpow.pop %v1511
    %v1513 = vadd.f32 %v1510, 1.0
    %v1514 = vadd.f32 %v1512, 1.0
    %v1515 = vrcp.pop %v1513
    %v1516 = vmul.f32 1.0, %v1515
    %v1517 = vrcp.pop %v1514
    %v1518 = vmul.f32 1.0, %v1517
    %v1519 = vmul.f32 %v1502, %v1385
    %v1520 = vmul.f32 %v1504, %v1386
    %v1521 = vmul.f32 %v1490, %v1505
    %v1522 = vmul.f32 %v1492, %v1506
    %v1523 = vadd.f32 %v1519, %v1521
    %v1524 = vadd.f32 %v1520, %v1522
    %v1525 = vtanh.pop %v1523
    %v1526 = vtanh.pop %v1524
    %v1527 = vmul.f32 %v1516, %v1525
    %v1528 = vmul.f32 %v1518, %v1526
    %v1529 = vpack.c.bf16 %v1528, %v1527
    %1530 = vst [vmem:[#allocation2] sm:$0xff] %v1529
    %1531 = vst [vmem:[#allocation3] sm:$0xff] %v1523
    %1532 = vst [vmem:[#allocation3 + $0x8] sm:$0xff] %v1524
    %v1534 = vunpack.c.l.b16 %v1529
    %v1535 = vunpack.c.h.b16 %v1529
    %v1536 = vpack.c.b16 %v1534, %v1534
    %v1537 = vpack.c.b16 %v1535, %v1535
    %s1540 = scalar_lea.vmem %s4, 32
    %1541 = vst [vmem:[%s1540] sm:$0xf] %v1536
    %1542 = vst [vmem:[%s1540 + $0x4] sm:$0xf] %v1537
    %v1543 = vld [vmem:[#allocation2] sm:$0xff]
    %v1544 = vld [vmem:[#allocation3] sm:$0xff]
    %v1545 = vld [vmem:[#allocation3 + $0x8] sm:$0xff]
    %1546 = vmatprep.subr.bf16.mxu0 %v689
    %1547 = vmatpush1.bf16.msra.mxu0 %v688
    %1548 = vmatprep.subr.bf16.mxu0 %v693
    %1549 = vmatpush1.bf16.msra.mxu0 %v692
    %1550 = vmatprep.subr.bf16.mxu0 %v697
    %1551 = vmatpush1.bf16.msra.mxu0 %v696
    %1552 = vmatprep.subr.bf16.mxu0 %v701
    %1553 = vmatpush1.bf16.msra.mxu0 %v700
    %1554 = vmatprep.subr.bf16.mxu0 %v705
    %1555 = vmatpush1.bf16.msra.mxu0 %v704
    %1556 = vmatprep.subr.bf16.mxu0 %v709
    %1557 = vmatpush1.bf16.msra.mxu0 %v708
    %1558 = vmatprep.subr.bf16.mxu0 %v713
    %1559 = vmatpush1.bf16.msra.mxu0 %v712
    %1560 = vmatprep.subr.bf16.mxu0 %v717
    %1561 = vmatpush1.bf16.msra.mxu0 %v716
    %1562 = vmatprep.subr.bf16.mxu0 0
    %1563 = vmatpush1.bf16.msra.mxu0 0
    %1564 = vmatprep.subr.bf16.mxu0 0
    %1565 = vmatpush1.bf16.msra.mxu0 0
    %1566 = vmatprep.subr.bf16.mxu0 0
    %1567 = vmatpush1.bf16.msra.mxu0 0
    %1568 = vmatprep.subr.bf16.mxu0 0
    %1569 = vmatpush1.bf16.msra.mxu0 0
    %1570 = vmatprep.subr.bf16.mxu0 0
    %1571 = vmatpush1.bf16.msra.mxu0 0
    %1572 = vmatprep.subr.bf16.mxu0 0
    %1573 = vmatpush1.bf16.msra.mxu0 0
    %1574 = vmatprep.subr.bf16.mxu0 0
    %1575 = vmatpush1.bf16.msra.mxu0 0
    %1576 = vmatprep.subr.bf16.mxu0 0
    %1577 = vmatpush1.bf16.msra.mxu0 0
    %1578 = vmatprep.mubr.bf16.mxu0 0
    %1579 = vmatmul.mubr.bf16.gmra.mrb[0].mxu0 %v1543
    %v1580 = vpop.f32.mrb[0].mxu0
    %v1581 = vadd.f32 0.0, %v1580
    %v1582 = vpop.f32.mrb[0].mxu0
    %v1583 = vadd.f32 0.0, %v1582
    %v1584 = vpop.f32.mrb[0].mxu0
    %v1585 = vadd.f32 0.0, %v1584
    %v1586 = vpop.f32.mrb[0].mxu0
    %v1587 = vadd.f32 0.0, %v1586
    %1588 = vdwg.mxu0
    %1589 = vmatprep.subr.bf16.mxu0 %v691
    %1590 = vmatpush1.bf16.msra.mxu0 %v690
    %1591 = vmatprep.subr.bf16.mxu0 %v695
    %1592 = vmatpush1.bf16.msra.mxu0 %v694
    %1593 = vmatprep.subr.bf16.mxu0 %v699
    %1594 = vmatpush1.bf16.msra.mxu0 %v698
    %1595 = vmatprep.subr.bf16.mxu0 %v703
    %1596 = vmatpush1.bf16.msra.mxu0 %v702
    %1597 = vmatprep.subr.bf16.mxu0 %v707
    %1598 = vmatpush1.bf16.msra.mxu0 %v706
    %1599 = vmatprep.subr.bf16.mxu0 %v711
    %1600 = vmatpush1.bf16.msra.mxu0 %v710
    %1601 = vmatprep.subr.bf16.mxu0 %v715
    %1602 = vmatpush1.bf16.msra.mxu0 %v714
    %1603 = vmatprep.subr.bf16.mxu0 %v719
    %1604 = vmatpush1.bf16.msra.mxu0 %v718
    %1605 = vmatprep.subr.bf16.mxu0 0
    %1606 = vmatpush1.bf16.msra.mxu0 0
    %1607 = vmatprep.subr.bf16.mxu0 0
    %1608 = vmatpush1.bf16.msra.mxu0 0
    %1609 = vmatprep.subr.bf16.mxu0 0
    %1610 = vmatpush1.bf16.msra.mxu0 0
    %1611 = vmatprep.subr.bf16.mxu0 0
    %1612 = vmatpush1.bf16.msra.mxu0 0
    %1613 = vmatprep.subr.bf16.mxu0 0
    %1614 = vmatpush1.bf16.msra.mxu0 0
    %1615 = vmatprep.subr.bf16.mxu0 0
    %1616 = vmatpush1.bf16.msra.mxu0 0
    %1617 = vmatprep.subr.bf16.mxu0 0
    %1618 = vmatpush1.bf16.msra.mxu0 0
    %1619 = vmatprep.subr.bf16.mxu0 0
    %1620 = vmatpush1.bf16.msra.mxu0 0
    %1621 = vmatprep.mubr.bf16.mxu0 0
    %1622 = vmatmul.mubr.bf16.gmra.mrb[0].mxu0 %v1543
    %v1623 = vpop.f32.mrb[0].mxu0
    %v1624 = vadd.f32 0.0, %v1623
    %v1625 = vpop.f32.mrb[0].mxu0
    %v1626 = vadd.f32 0.0, %v1625
    %v1627 = vpop.f32.mrb[0].mxu0
    %v1628 = vadd.f32 0.0, %v1627
    %v1629 = vpop.f32.mrb[0].mxu0
    %v1630 = vadd.f32 0.0, %v1629
    %1631 = vdwg.mxu0
    %v1632 = vadd.f32 %v416, %v1581
    %v1633 = vadd.f32 %v418, %v1583
    %v1634 = vadd.f32 %v529, %v1624
    %v1635 = vadd.f32 %v531, %v1626
    %v1636 = vadd.f32 %v420, %v1585
    %v1637 = vadd.f32 %v422, %v1587
    %v1638 = vadd.f32 %v533, %v1628
    %v1639 = vadd.f32 %v535, %v1630
    %v1640 = vxor.u32 %v1632, 2147483648
    %v1641 = vxor.u32 %v1636, 2147483648
    %v1642 = vmul.f32 %v1640, 1.442695
    %v1643 = vpow.pop %v1642
    %v1644 = vmul.f32 %v1641, 1.442695
    %v1645 = vpow.pop %v1644
    %v1646 = vadd.f32 %v1643, 1.0
    %v1647 = vadd.f32 %v1645, 1.0
    %v1648 = vrcp.pop %v1646
    %v1649 = vmul.f32 1.0, %v1648
    %v1650 = vrcp.pop %v1647
    %v1651 = vmul.f32 1.0, %v1650
    %v1652 = vxor.u32 %v1633, 2147483648
    %v1653 = vxor.u32 %v1637, 2147483648
    %v1654 = vmul.f32 %v1652, 1.442695
    %v1655 = vpow.pop %v1654
    %v1656 = vmul.f32 %v1653, 1.442695
    %v1657 = vpow.pop %v1656
    %v1658 = vadd.f32 %v1655, 1.0
    %v1659 = vadd.f32 %v1657, 1.0
    %v1660 = vrcp.pop %v1658
    %v1661 = vmul.f32 1.0, %v1660
    %v1662 = vrcp.pop %v1659
    %v1663 = vmul.f32 1.0, %v1662
    %v1664 = vtanh.pop %v1634
    %v1665 = vtanh.pop %v1638
    %v1666 = vxor.u32 %v1635, 2147483648
    %v1667 = vxor.u32 %v1639, 2147483648
    %v1668 = vmul.f32 %v1666, 1.442695
    %v1669 = vpow.pop %v1668
    %v1670 = vmul.f32 %v1667, 1.442695
    %v1671 = vpow.pop %v1670
    %v1672 = vadd.f32 %v1669, 1.0
    %v1673 = vadd.f32 %v1671, 1.0
    %v1674 = vrcp.pop %v1672
    %v1675 = vmul.f32 1.0, %v1674
    %v1676 = vrcp.pop %v1673
    %v1677 = vmul.f32 1.0, %v1676
    %v1678 = vmul.f32 %v1661, %v1544
    %v1679 = vmul.f32 %v1663, %v1545
    %v1680 = vmul.f32 %v1649, %v1664
    %v1681 = vmul.f32 %v1651, %v1665
    %v1682 = vadd.f32 %v1678, %v1680
    %v1683 = vadd.f32 %v1679, %v1681
    %v1684 = vtanh.pop %v1682
    %v1685 = vtanh.pop %v1683
    %v1686 = vmul.f32 %v1675, %v1684
    %v1687 = vmul.f32 %v1677, %v1685
    %v1688 = vpack.c.bf16 %v1687, %v1686
    %1689 = vst [vmem:[#allocation2] sm:$0xff] %v1688
    %1690 = vst [vmem:[#allocation3] sm:$0xff] %v1682
    %1691 = vst [vmem:[#allocation3 + $0x8] sm:$0xff] %v1683
    %v1693 = vunpack.c.l.b16 %v1688
    %v1694 = vunpack.c.h.b16 %v1688
    %v1695 = vpack.c.b16 %v1693, %v1693
    %v1696 = vpack.c.b16 %v1694, %v1694
    %s1699 = scalar_lea.vmem %s4, 40
    %1700 = vst [vmem:[%s1699] sm:$0xf] %v1695
    %1701 = vst [vmem:[%s1699 + $0x4] sm:$0xf] %v1696
    %v1702 = vld [vmem:[#allocation2] sm:$0xff]
    %v1703 = vld [vmem:[#allocation3] sm:$0xff]
    %v1704 = vld [vmem:[#allocation3 + $0x8] sm:$0xff]
    %1705 = vmatprep.subr.bf16.mxu0 %v689
    %1706 = vmatpush1.bf16.msra.mxu0 %v688
    %1707 = vmatprep.subr.bf16.mxu0 %v693
    %1708 = vmatpush1.bf16.msra.mxu0 %v692
    %1709 = vmatprep.subr.bf16.mxu0 %v697
    %1710 = vmatpush1.bf16.msra.mxu0 %v696
    %1711 = vmatprep.subr.bf16.mxu0 %v701
    %1712 = vmatpush1.bf16.msra.mxu0 %v700
    %1713 = vmatprep.subr.bf16.mxu0 %v705
    %1714 = vmatpush1.bf16.msra.mxu0 %v704
    %1715 = vmatprep.subr.bf16.mxu0 %v709
    %1716 = vmatpush1.bf16.msra.mxu0 %v708
    %1717 = vmatprep.subr.bf16.mxu0 %v713
    %1718 = vmatpush1.bf16.msra.mxu0 %v712
    %1719 = vmatprep.subr.bf16.mxu0 %v717
    %1720 = vmatpush1.bf16.msra.mxu0 %v716
    %1721 = vmatprep.subr.bf16.mxu0 0
    %1722 = vmatpush1.bf16.msra.mxu0 0
    %1723 = vmatprep.subr.bf16.mxu0 0
    %1724 = vmatpush1.bf16.msra.mxu0 0
    %1725 = vmatprep.subr.bf16.mxu0 0
    %1726 = vmatpush1.bf16.msra.mxu0 0
    %1727 = vmatprep.subr.bf16.mxu0 0
    %1728 = vmatpush1.bf16.msra.mxu0 0
    %1729 = vmatprep.subr.bf16.mxu0 0
    %1730 = vmatpush1.bf16.msra.mxu0 0
    %1731 = vmatprep.subr.bf16.mxu0 0
    %1732 = vmatpush1.bf16.msra.mxu0 0
    %1733 = vmatprep.subr.bf16.mxu0 0
    %1734 = vmatpush1.bf16.msra.mxu0 0
    %1735 = vmatprep.subr.bf16.mxu0 0
    %1736 = vmatpush1.bf16.msra.mxu0 0
    %1737 = vmatprep.mubr.bf16.mxu0 0
    %1738 = vmatmul.mubr.bf16.gmra.mrb[0].mxu0 %v1702
    %v1739 = vpop.f32.mrb[0].mxu0
    %v1740 = vadd.f32 0.0, %v1739
    %v1741 = vpop.f32.mrb[0].mxu0
    %v1742 = vadd.f32 0.0, %v1741
    %v1743 = vpop.f32.mrb[0].mxu0
    %v1744 = vadd.f32 0.0, %v1743
    %v1745 = vpop.f32.mrb[0].mxu0
    %v1746 = vadd.f32 0.0, %v1745
    %1747 = vdwg.mxu0
    %1748 = vmatprep.subr.bf16.mxu0 %v691
    %1749 = vmatpush1.bf16.msra.mxu0 %v690
    %1750 = vmatprep.subr.bf16.mxu0 %v695
    %1751 = vmatpush1.bf16.msra.mxu0 %v694
    %1752 = vmatprep.subr.bf16.mxu0 %v699
    %1753 = vmatpush1.bf16.msra.mxu0 %v698
    %1754 = vmatprep.subr.bf16.mxu0 %v703
    %1755 = vmatpush1.bf16.msra.mxu0 %v702
    %1756 = vmatprep.subr.bf16.mxu0 %v707
    %1757 = vmatpush1.bf16.msra.mxu0 %v706
    %1758 = vmatprep.subr.bf16.mxu0 %v711
    %1759 = vmatpush1.bf16.msra.mxu0 %v710
    %1760 = vmatprep.subr.bf16.mxu0 %v715
    %1761 = vmatpush1.bf16.msra.mxu0 %v714
    %1762 = vmatprep.subr.bf16.mxu0 %v719
    %1763 = vmatpush1.bf16.msra.mxu0 %v718
    %1764 = vmatprep.subr.bf16.mxu0 0
    %1765 = vmatpush1.bf16.msra.mxu0 0
    %1766 = vmatprep.subr.bf16.mxu0 0
    %1767 = vmatpush1.bf16.msra.mxu0 0
    %1768 = vmatprep.subr.bf16.mxu0 0
    %1769 = vmatpush1.bf16.msra.mxu0 0
    %1770 = vmatprep.subr.bf16.mxu0 0
    %1771 = vmatpush1.bf16.msra.mxu0 0
    %1772 = vmatprep.subr.bf16.mxu0 0
    %1773 = vmatpush1.bf16.msra.mxu0 0
    %1774 = vmatprep.subr.bf16.mxu0 0
    %1775 = vmatpush1.bf16.msra.mxu0 0
    %1776 = vmatprep.subr.bf16.mxu0 0
    %1777 = vmatpush1.bf16.msra.mxu0 0
    %1778 = vmatprep.subr.bf16.mxu0 0
    %1779 = vmatpush1.bf16.msra.mxu0 0
    %1780 = vmatprep.mubr.bf16.mxu0 0
    %1781 = vmatmul.mubr.bf16.gmra.mrb[0].mxu0 %v1702
    %v1782 = vpop.f32.mrb[0].mxu0
    %v1783 = vadd.f32 0.0, %v1782
    %v1784 = vpop.f32.mrb[0].mxu0
    %v1785 = vadd.f32 0.0, %v1784
    %v1786 = vpop.f32.mrb[0].mxu0
    %v1787 = vadd.f32 0.0, %v1786
    %v1788 = vpop.f32.mrb[0].mxu0
    %v1789 = vadd.f32 0.0, %v1788
    %1790 = vdwg.mxu0
    %v1791 = vadd.f32 %v426, %v1740
    %v1792 = vadd.f32 %v428, %v1742
    %v1793 = vadd.f32 %v539, %v1783
    %v1794 = vadd.f32 %v541, %v1785
    %v1795 = vadd.f32 %v430, %v1744
    %v1796 = vadd.f32 %v432, %v1746
    %v1797 = vadd.f32 %v543, %v1787
    %v1798 = vadd.f32 %v545, %v1789
    %v1799 = vxor.u32 %v1791, 2147483648
    %v1800 = vxor.u32 %v1795, 2147483648
    %v1801 = vmul.f32 %v1799, 1.442695
    %v1802 = vpow.pop %v1801
    %v1803 = vmul.f32 %v1800, 1.442695
    %v1804 = vpow.pop %v1803
    %v1805 = vadd.f32 %v1802, 1.0
    %v1806 = vadd.f32 %v1804, 1.0
    %v1807 = vrcp.pop %v1805
    %v1808 = vmul.f32 1.0, %v1807
    %v1809 = vrcp.pop %v1806
    %v1810 = vmul.f32 1.0, %v1809
    %v1811 = vxor.u32 %v1792, 2147483648
    %v1812 = vxor.u32 %v1796, 2147483648
    %v1813 = vmul.f32 %v1811, 1.442695
    %v1814 = vpow.pop %v1813
    %v1815 = vmul.f32 %v1812, 1.442695
    %v1816 = vpow.pop %v1815
    %v1817 = vadd.f32 %v1814, 1.0
    %v1818 = vadd.f32 %v1816, 1.0
    %v1819 = vrcp.pop %v1817
    %v1820 = vmul.f32 1.0, %v1819
    %v1821 = vrcp.pop %v1818
    %v1822 = vmul.f32 1.0, %v1821
    %v1823 = vtanh.pop %v1793
    %v1824 = vtanh.pop %v1797
    %v1825 = vxor.u32 %v1794, 2147483648
    %v1826 = vxor.u32 %v1798, 2147483648
    %v1827 = vmul.f32 %v1825, 1.442695
    %v1828 = vpow.pop %v1827
    %v1829 = vmul.f32 %v1826, 1.442695
    %v1830 = vpow.pop %v1829
    %v1831 = vadd.f32 %v1828, 1.0
    %v1832 = vadd.f32 %v1830, 1.0
    %v1833 = vrcp.pop %v1831
    %v1834 = vmul.f32 1.0, %v1833
    %v1835 = vrcp.pop %v1832
    %v1836 = vmul.f32 1.0, %v1835
    %v1837 = vmul.f32 %v1820, %v1703
    %v1838 = vmul.f32 %v1822, %v1704
    %v1839 = vmul.f32 %v1808, %v1823
    %v1840 = vmul.f32 %v1810, %v1824
    %v1841 = vadd.f32 %v1837, %v1839
    %v1842 = vadd.f32 %v1838, %v1840
    %v1843 = vtanh.pop %v1841
    %v1844 = vtanh.pop %v1842
    %v1845 = vmul.f32 %v1834, %v1843
    %v1846 = vmul.f32 %v1836, %v1844
    %v1847 = vpack.c.bf16 %v1846, %v1845
    %1848 = vst [vmem:[#allocation2] sm:$0xff] %v1847
    %1849 = vst [vmem:[#allocation3] sm:$0xff] %v1841
    %1850 = vst [vmem:[#allocation3 + $0x8] sm:$0xff] %v1842
    %v1852 = vunpack.c.l.b16 %v1847
    %v1853 = vunpack.c.h.b16 %v1847
    %v1854 = vpack.c.b16 %v1852, %v1852
    %v1855 = vpack.c.b16 %v1853, %v1853
    %s1858 = scalar_lea.vmem %s4, 48
    %1859 = vst [vmem:[%s1858] sm:$0xf] %v1854
    %1860 = vst [vmem:[%s1858 + $0x4] sm:$0xf] %v1855
    %v1861 = vld [vmem:[#allocation2] sm:$0xff]
    %v1862 = vld [vmem:[#allocation3] sm:$0xff]
    %v1863 = vld [vmem:[#allocation3 + $0x8] sm:$0xff]
    %1864 = vmatprep.subr.bf16.mxu0 %v689
    %1865 = vmatpush1.bf16.msra.mxu0 %v688
    %1866 = vmatprep.subr.bf16.mxu0 %v693
    %1867 = vmatpush1.bf16.msra.mxu0 %v692
    %1868 = vmatprep.subr.bf16.mxu0 %v697
    %1869 = vmatpush1.bf16.msra.mxu0 %v696
    %1870 = vmatprep.subr.bf16.mxu0 %v701
    %1871 = vmatpush1.bf16.msra.mxu0 %v700
    %1872 = vmatprep.subr.bf16.mxu0 %v705
    %1873 = vmatpush1.bf16.msra.mxu0 %v704
    %1874 = vmatprep.subr.bf16.mxu0 %v709
    %1875 = vmatpush1.bf16.msra.mxu0 %v708
    %1876 = vmatprep.subr.bf16.mxu0 %v713
    %1877 = vmatpush1.bf16.msra.mxu0 %v712
    %1878 = vmatprep.subr.bf16.mxu0 %v717
    %1879 = vmatpush1.bf16.msra.mxu0 %v716
    %1880 = vmatprep.subr.bf16.mxu0 0
    %1881 = vmatpush1.bf16.msra.mxu0 0
    %1882 = vmatprep.subr.bf16.mxu0 0
    %1883 = vmatpush1.bf16.msra.mxu0 0
    %1884 = vmatprep.subr.bf16.mxu0 0
    %1885 = vmatpush1.bf16.msra.mxu0 0
    %1886 = vmatprep.subr.bf16.mxu0 0
    %1887 = vmatpush1.bf16.msra.mxu0 0
    %1888 = vmatprep.subr.bf16.mxu0 0
    %1889 = vmatpush1.bf16.msra.mxu0 0
    %1890 = vmatprep.subr.bf16.mxu0 0
    %1891 = vmatpush1.bf16.msra.mxu0 0
    %1892 = vmatprep.subr.bf16.mxu0 0
    %1893 = vmatpush1.bf16.msra.mxu0 0
    %1894 = vmatprep.subr.bf16.mxu0 0
    %1895 = vmatpush1.bf16.msra.mxu0 0
    %1896 = vmatprep.mubr.bf16.mxu0 0
    %1897 = vmatmul.mubr.bf16.gmra.mrb[0].mxu0 %v1861
    %v1898 = vpop.f32.mrb[0].mxu0
    %v1899 = vadd.f32 0.0, %v1898
    %v1900 = vpop.f32.mrb[0].mxu0
    %v1901 = vadd.f32 0.0, %v1900
    %v1902 = vpop.f32.mrb[0].mxu0
    %v1903 = vadd.f32 0.0, %v1902
    %v1904 = vpop.f32.mrb[0].mxu0
    %v1905 = vadd.f32 0.0, %v1904
    %1906 = vdwg.mxu0
    %1907 = vmatprep.subr.bf16.mxu0 %v691
    %1908 = vmatpush1.bf16.msra.mxu0 %v690
    %1909 = vmatprep.subr.bf16.mxu0 %v695
    %1910 = vmatpush1.bf16.msra.mxu0 %v694
    %1911 = vmatprep.subr.bf16.mxu0 %v699
    %1912 = vmatpush1.bf16.msra.mxu0 %v698
    %1913 = vmatprep.subr.bf16.mxu0 %v703
    %1914 = vmatpush1.bf16.msra.mxu0 %v702
    %1915 = vmatprep.subr.bf16.mxu0 %v707
    %1916 = vmatpush1.bf16.msra.mxu0 %v706
    %1917 = vmatprep.subr.bf16.mxu0 %v711
    %1918 = vmatpush1.bf16.msra.mxu0 %v710
    %1919 = vmatprep.subr.bf16.mxu0 %v715
    %1920 = vmatpush1.bf16.msra.mxu0 %v714
    %1921 = vmatprep.subr.bf16.mxu0 %v719
    %1922 = vmatpush1.bf16.msra.mxu0 %v718
    %1923 = vmatprep.subr.bf16.mxu0 0
    %1924 = vmatpush1.bf16.msra.mxu0 0
    %1925 = vmatprep.subr.bf16.mxu0 0
    %1926 = vmatpush1.bf16.msra.mxu0 0
    %1927 = vmatprep.subr.bf16.mxu0 0
    %1928 = vmatpush1.bf16.msra.mxu0 0
    %1929 = vmatprep.subr.bf16.mxu0 0
    %1930 = vmatpush1.bf16.msra.mxu0 0
    %1931 = vmatprep.subr.bf16.mxu0 0
    %1932 = vmatpush1.bf16.msra.mxu0 0
    %1933 = vmatprep.subr.bf16.mxu0 0
    %1934 = vmatpush1.bf16.msra.mxu0 0
    %1935 = vmatprep.subr.bf16.mxu0 0
    %1936 = vmatpush1.bf16.msra.mxu0 0
    %1937 = vmatprep.subr.bf16.mxu0 0
    %1938 = vmatpush1.bf16.msra.mxu0 0
    %1939 = vmatprep.mubr.bf16.mxu0 0
    %1940 = vmatmul.mubr.bf16.gmra.mrb[0].mxu0 %v1861
    %v1941 = vpop.f32.mrb[0].mxu0
    %v1942 = vadd.f32 0.0, %v1941
    %v1943 = vpop.f32.mrb[0].mxu0
    %v1944 = vadd.f32 0.0, %v1943
    %v1945 = vpop.f32.mrb[0].mxu0
    %v1946 = vadd.f32 0.0, %v1945
    %v1947 = vpop.f32.mrb[0].mxu0
    %v1948 = vadd.f32 0.0, %v1947
    %1949 = vdwg.mxu0
    %v1950 = vadd.f32 %v436, %v1899
    %v1951 = vadd.f32 %v438, %v1901
    %v1952 = vadd.f32 %v549, %v1942
    %v1953 = vadd.f32 %v551, %v1944
    %v1954 = vadd.f32 %v440, %v1903
    %v1955 = vadd.f32 %v442, %v1905
    %v1956 = vadd.f32 %v553, %v1946
    %v1957 = vadd.f32 %v555, %v1948
    %v1958 = vxor.u32 %v1950, 2147483648
    %v1959 = vxor.u32 %v1954, 2147483648
    %v1960 = vmul.f32 %v1958, 1.442695
    %v1961 = vpow.pop %v1960
    %v1962 = vmul.f32 %v1959, 1.442695
    %v1963 = vpow.pop %v1962
    %v1964 = vadd.f32 %v1961, 1.0
    %v1965 = vadd.f32 %v1963, 1.0
    %v1966 = vrcp.pop %v1964
    %v1967 = vmul.f32 1.0, %v1966
    %v1968 = vrcp.pop %v1965
    %v1969 = vmul.f32 1.0, %v1968
    %v1970 = vxor.u32 %v1951, 2147483648
    %v1971 = vxor.u32 %v1955, 2147483648
    %v1972 = vmul.f32 %v1970, 1.442695
    %v1973 = vpow.pop %v1972
    %v1974 = vmul.f32 %v1971, 1.442695
    %v1975 = vpow.pop %v1974
    %v1976 = vadd.f32 %v1973, 1.0
    %v1977 = vadd.f32 %v1975, 1.0
    %v1978 = vrcp.pop %v1976
    %v1979 = vmul.f32 1.0, %v1978
    %v1980 = vrcp.pop %v1977
    %v1981 = vmul.f32 1.0, %v1980
    %v1982 = vtanh.pop %v1952
    %v1983 = vtanh.pop %v1956
    %v1984 = vxor.u32 %v1953, 2147483648
    %v1985 = vxor.u32 %v1957, 2147483648
    %v1986 = vmul.f32 %v1984, 1.442695
    %v1987 = vpow.pop %v1986
    %v1988 = vmul.f32 %v1985, 1.442695
    %v1989 = vpow.pop %v1988
    %v1990 = vadd.f32 %v1987, 1.0
    %v1991 = vadd.f32 %v1989, 1.0
    %v1992 = vrcp.pop %v1990
    %v1993 = vmul.f32 1.0, %v1992
    %v1994 = vrcp.pop %v1991
    %v1995 = vmul.f32 1.0, %v1994
    %v1996 = vmul.f32 %v1979, %v1862
    %v1997 = vmul.f32 %v1981, %v1863
    %v1998 = vmul.f32 %v1967, %v1982
    %v1999 = vmul.f32 %v1969, %v1983
    %v2000 = vadd.f32 %v1996, %v1998
    %v2001 = vadd.f32 %v1997, %v1999
    %v2002 = vtanh.pop %v2000
    %v2003 = vtanh.pop %v2001
    %v2004 = vmul.f32 %v1993, %v2002
    %v2005 = vmul.f32 %v1995, %v2003
    %v2006 = vpack.c.bf16 %v2005, %v2004
    %2007 = vst [vmem:[#allocation2] sm:$0xff] %v2006
    %2008 = vst [vmem:[#allocation3] sm:$0xff] %v2000
    %2009 = vst [vmem:[#allocation3 + $0x8] sm:$0xff] %v2001
    %v2011 = vunpack.c.l.b16 %v2006
    %v2012 = vunpack.c.h.b16 %v2006
    %v2013 = vpack.c.b16 %v2011, %v2011
    %v2014 = vpack.c.b16 %v2012, %v2012
    %s2017 = scalar_lea.vmem %s4, 56
    %2018 = vst [vmem:[%s2017] sm:$0xf] %v2013
    %2019 = vst [vmem:[%s2017 + $0x4] sm:$0xf] %v2014
    // Predicated region
    $region30: #{lstm_model_forward.3} parent=1 // pred_check
      _
    $region31: #{lstm_model_forward.3} parent=1 // pred_check_branch
      %2021 = sbr.rel (0) target = $region33
    $region32: #{lstm_model_forward.3} parent=1 // pred_region
      _
    $region33: #{lstm_model_forward.3} parent=1 // pred_fallthru
      _
    // Predicated region
    $region34: #{lstm_model_forward.3} parent=1 // pred_check
      _
    $region35: #{lstm_model_forward.3} parent=1 // pred_check_branch
      %2023 = sbr.rel (0) target = $region37
    $region36: #{lstm_model_forward.3} parent=1 // pred_region
      _
    $region37: #{lstm_model_forward.3} parent=1 // pred_fallthru
      _
    %2024 = vsyncpa [#allocation5], 1
    %2025 = vsyncpa [#allocation7], 1

// kernel: lstm_model_forward.4
$region0: #{lstm_model_forward.4}
  #allocation0 [shape = 'u32[]', space=smem, size = 0x4, offset = 0x4, fixed_abs, tag = 'smem constant byte address 0x4 - core index']
  #allocation1 [shape = 'u32[144,128]{1,0:T(1,128)}', space=vmem, size = 0x12000, scoped, tag = 'internal scratch']
  #allocation2 [shape = 'bf16[16,128]{1,0:T(16,128)(2,1)}', space=vmem, size = 0x1000, scoped, tag = 'scratch operand']
  #allocation3 [shape = 'f32[16,128]{1,0:T(8,128)}', space=vmem, size = 0x2000, scoped, tag = 'scratch operand']
  %s0 = inlined_call_operand.vmem [shape: bf16[8,16,128], index: 0, kind: input, shape index: {}]
  %s1 = inlined_call_operand.vmem [shape: bf16[128,512], index: 1, kind: input, shape index: {}]
  %s2 = inlined_call_operand.vmem [shape: f32[1,512], index: 2, kind: input, shape index: {}]
  %s3 = inlined_call_operand.vmem [shape: bf16[128,512], index: 3, kind: input, shape index: {}]
  %s4 = inlined_call_operand.vmem [shape: bf16[16,128], index: 4, kind: output, shape index: {}]
  %s5 = sld [smem:[#allocation0]]
  $region30: #{lstm_model_forward.4} parent=0
    _
  %s7 = ssub.s32 1, %s5
  %s8 = scalar_select 0, %s7, %s5
  // Predicated region
  $region2: #{lstm_model_forward.4} parent=0 // pred_check
    _
  $region3: #{lstm_model_forward.4} parent=0 // pred_check_branch
    %10 = sbr.rel (0) target = $region5
  $region4: #{lstm_model_forward.4} parent=0 // pred_region
    _
  $region5: #{lstm_model_forward.4} parent=0 // pred_fallthru
    _
  // Predicated region
  $region6: #{lstm_model_forward.4} parent=0 // pred_check
    _
  $region7: #{lstm_model_forward.4} parent=0 // pred_check_branch
    %12 = sbr.rel (0) target = $region9
  $region8: #{lstm_model_forward.4} parent=0 // pred_region
    _
  $region9: #{lstm_model_forward.4} parent=0 // pred_fallthru
    _
  // Predicated region
  $region10: #{lstm_model_forward.4} parent=0 // pred_check
    _
  $region11: #{lstm_model_forward.4} parent=0 // pred_check_branch
    %14 = sbr.rel (0) target = $region13
  $region12: #{lstm_model_forward.4} parent=0 // pred_region
    _
  $region13: #{lstm_model_forward.4} parent=0 // pred_fallthru
    _
  // Predicated region
  $region14: #{lstm_model_forward.4} parent=0 // pred_check
    _
  $region15: #{lstm_model_forward.4} parent=0 // pred_check_branch
    %16 = sbr.rel (0) target = $region17
  $region16: #{lstm_model_forward.4} parent=0 // pred_region
    _
  $region17: #{lstm_model_forward.4} parent=0 // pred_fallthru
    _
  %p18 = scmp.eq.s32.totalorder 0, 0
  // Predicated region
  $region18: #{lstm_model_forward.4} parent=0 // pred_check
    %p19 = pneg %p18
  $region19: #{lstm_model_forward.4} parent=0 // pred_check_branch
    %21 = sbr.rel (%p19) target = $region21
  $region20: #{lstm_model_forward.4} parent=0 // pred_region
    %22 = vst [vmem:[#allocation2] sm:$0xff] 0
    %23 = vst [vmem:[#allocation3] sm:$0xff] 0.0
    %24 = vst [vmem:[#allocation3 + $0x8] sm:$0xff] 0.0
  $region21: #{lstm_model_forward.4} parent=0 // pred_fallthru
    _
  %v25 = vld [vmem:[%s0] sm:$0xf]
  %v26 = vld [vmem:[%s0 + $0x4] sm:$0xf]
  %v27 = vld [vmem:[%s0 + $0x8] sm:$0xf]
  %v28 = vld [vmem:[%s0 + $0xc] sm:$0xf]
  %v29 = vld [vmem:[%s0 + $0x10] sm:$0xf]
  %v30 = vld [vmem:[%s0 + $0x14] sm:$0xf]
  %v31 = vld [vmem:[%s0 + $0x18] sm:$0xf]
  %v32 = vld [vmem:[%s0 + $0x1c] sm:$0xf]
  %v33 = vld [vmem:[%s0 + $0x20] sm:$0xf]
  %v34 = vld [vmem:[%s0 + $0x24] sm:$0xf]
  %v35 = vld [vmem:[%s0 + $0x28] sm:$0xf]
  %v36 = vld [vmem:[%s0 + $0x2c] sm:$0xf]
  %v37 = vld [vmem:[%s0 + $0x30] sm:$0xf]
  %v38 = vld [vmem:[%s0 + $0x34] sm:$0xf]
  %v39 = vld [vmem:[%s0 + $0x38] sm:$0xf]
  %v40 = vld [vmem:[%s0 + $0x3c] sm:$0xf]
  %v41 = vld [vmem:[%s1] sm:$0xff]
  %v42 = vld [vmem:[%s1 + $0x8] sm:$0xff]
  %v43 = vld [vmem:[%s1 + $0x10] sm:$0xff]
  %v44 = vld [vmem:[%s1 + $0x18] sm:$0xff]
  %v45 = vld [vmem:[%s1 + $0x20] sm:$0xff]
  %v46 = vld [vmem:[%s1 + $0x28] sm:$0xff]
  %v47 = vld [vmem:[%s1 + $0x30] sm:$0xff]
  %v48 = vld [vmem:[%s1 + $0x38] sm:$0xff]
  %v49 = vld [vmem:[%s1 + $0x40] sm:$0xff]
  %v50 = vld [vmem:[%s1 + $0x48] sm:$0xff]
  %v51 = vld [vmem:[%s1 + $0x50] sm:$0xff]
  %v52 = vld [vmem:[%s1 + $0x58] sm:$0xff]
  %v53 = vld [vmem:[%s1 + $0x60] sm:$0xff]
  %v54 = vld [vmem:[%s1 + $0x68] sm:$0xff]
  %v55 = vld [vmem:[%s1 + $0x70] sm:$0xff]
  %v56 = vld [vmem:[%s1 + $0x78] sm:$0xff]
  %v57 = vld [vmem:[%s1 + $0x80] sm:$0xff]
  %v58 = vld [vmem:[%s1 + $0x88] sm:$0xff]
  %v59 = vld [vmem:[%s1 + $0x90] sm:$0xff]
  %v60 = vld [vmem:[%s1 + $0x98] sm:$0xff]
  %v61 = vld [vmem:[%s1 + $0xa0] sm:$0xff]
  %v62 = vld [vmem:[%s1 + $0xa8] sm:$0xff]
  %v63 = vld [vmem:[%s1 + $0xb0] sm:$0xff]
  %v64 = vld [vmem:[%s1 + $0xb8] sm:$0xff]
  %v65 = vld [vmem:[%s1 + $0xc0] sm:$0xff]
  %v66 = vld [vmem:[%s1 + $0xc8] sm:$0xff]
  %v67 = vld [vmem:[%s1 + $0xd0] sm:$0xff]
  %v68 = vld [vmem:[%s1 + $0xd8] sm:$0xff]
  %v69 = vld [vmem:[%s1 + $0xe0] sm:$0xff]
  %v70 = vld [vmem:[%s1 + $0xe8] sm:$0xff]
  %v71 = vld [vmem:[%s1 + $0xf0] sm:$0xff]
  %v72 = vld [vmem:[%s1 + $0xf8] sm:$0xff]
  %v73 = vld [vmem:[%s2] sm:$0xf]
  %v75 = vlaneseq
  %v76 = vshrl.u32 %v75, 7
  %v77 = vsub.s32 0, %v76
  %v78 = vrot.slane %v73, %v77
  %v79 = vlaneseq
  %v80 = vshrl.u32 %v79, 7
  %v81 = vsub.s32 1, %v80
  %v82 = vrot.slane %v73, %v81
  %v83 = vlaneseq
  %v84 = vshrl.u32 %v83, 7
  %v85 = vsub.s32 2, %v84
  %v86 = vrot.slane %v73, %v85
  %v87 = vlaneseq
  %v88 = vshrl.u32 %v87, 7
  %v89 = vsub.s32 3, %v88
  %v90 = vrot.slane %v73, %v89
  %v111 = vunpack.c.l.b16 %v25
  %v112 = vunpack.c.l.b16 %v26
  %v113 = vunpack.c.l.b16 %v27
  %v114 = vunpack.c.l.b16 %v28
  %v115 = vunpack.c.l.b16 %v29
  %v116 = vunpack.c.l.b16 %v30
  %v117 = vunpack.c.l.b16 %v31
  %v118 = vunpack.c.l.b16 %v32
  %v119 = vunpack.c.l.b16 %v33
  %v120 = vunpack.c.l.b16 %v34
  %v121 = vunpack.c.l.b16 %v35
  %v122 = vunpack.c.l.b16 %v36
  %v123 = vunpack.c.l.b16 %v37
  %v124 = vunpack.c.l.b16 %v38
  %v125 = vunpack.c.l.b16 %v39
  %v126 = vunpack.c.l.b16 %v40
  %v127 = vpack.c.b16 %v112, %v111
  %v128 = vpack.c.b16 %v114, %v113
  %v129 = vpack.c.b16 %v116, %v115
  %v130 = vpack.c.b16 %v118, %v117
  %v131 = vpack.c.b16 %v120, %v119
  %v132 = vpack.c.b16 %v122, %v121
  %v133 = vpack.c.b16 %v124, %v123
  %v134 = vpack.c.b16 %v126, %v125
  %v175 = vunpack.c.l.b16 %v41
  %v176 = vunpack.c.h.b16 %v41
  %v177 = vunpack.c.l.b16 %v42
  %v178 = vunpack.c.h.b16 %v42
  %v179 = vunpack.c.l.b16 %v43
  %v180 = vunpack.c.h.b16 %v43
  %v181 = vunpack.c.l.b16 %v44
  %v182 = vunpack.c.h.b16 %v44
  %v183 = vunpack.c.l.b16 %v45
  %v184 = vunpack.c.h.b16 %v45
  %v185 = vunpack.c.l.b16 %v46
  %v186 = vunpack.c.h.b16 %v46
  %v187 = vunpack.c.l.b16 %v47
  %v188 = vunpack.c.h.b16 %v47
  %v189 = vunpack.c.l.b16 %v48
  %v190 = vunpack.c.h.b16 %v48
  %v191 = vunpack.c.l.b16 %v49
  %v192 = vunpack.c.h.b16 %v49
  %v193 = vunpack.c.l.b16 %v50
  %v194 = vunpack.c.h.b16 %v50
  %v195 = vunpack.c.l.b16 %v51
  %v196 = vunpack.c.h.b16 %v51
  %v197 = vunpack.c.l.b16 %v52
  %v198 = vunpack.c.h.b16 %v52
  %v199 = vunpack.c.l.b16 %v53
  %v200 = vunpack.c.h.b16 %v53
  %v201 = vunpack.c.l.b16 %v54
  %v202 = vunpack.c.h.b16 %v54
  %v203 = vunpack.c.l.b16 %v55
  %v204 = vunpack.c.h.b16 %v55
  %v205 = vunpack.c.l.b16 %v56
  %v206 = vunpack.c.h.b16 %v56
  %v207 = vunpack.c.l.b16 %v57
  %v208 = vunpack.c.h.b16 %v57
  %v209 = vunpack.c.l.b16 %v58
  %v210 = vunpack.c.h.b16 %v58
  %v211 = vunpack.c.l.b16 %v59
  %v212 = vunpack.c.h.b16 %v59
  %v213 = vunpack.c.l.b16 %v60
  %v214 = vunpack.c.h.b16 %v60
  %v215 = vunpack.c.l.b16 %v61
  %v216 = vunpack.c.h.b16 %v61
  %v217 = vunpack.c.l.b16 %v62
  %v218 = vunpack.c.h.b16 %v62
  %v219 = vunpack.c.l.b16 %v63
  %v220 = vunpack.c.h.b16 %v63
  %v221 = vunpack.c.l.b16 %v64
  %v222 = vunpack.c.h.b16 %v64
  %v223 = vunpack.c.l.b16 %v65
  %v224 = vunpack.c.h.b16 %v65
  %v225 = vunpack.c.l.b16 %v66
  %v226 = vunpack.c.h.b16 %v66
  %v227 = vunpack.c.l.b16 %v67
  %v228 = vunpack.c.h.b16 %v67
  %v229 = vunpack.c.l.b16 %v68
  %v230 = vunpack.c.h.b16 %v68
  %v231 = vunpack.c.l.b16 %v69
  %v232 = vunpack.c.h.b16 %v69
  %v233 = vunpack.c.l.b16 %v70
  %v234 = vunpack.c.h.b16 %v70
  %v235 = vunpack.c.l.b16 %v71
  %v236 = vunpack.c.h.b16 %v71
  %v237 = vunpack.c.l.b16 %v72
  %v238 = vunpack.c.h.b16 %v72
  %v239 = vpack.c.b16 %v179, %v175
  %v240 = vpack.c.b16 %v180, %v176
  %v241 = vpack.c.b16 %v181, %v177
  %v242 = vpack.c.b16 %v182, %v178
  %v243 = vpack.c.b16 %v187, %v183
  %v244 = vpack.c.b16 %v188, %v184
  %v245 = vpack.c.b16 %v189, %v185
  %v246 = vpack.c.b16 %v190, %v186
  %v247 = vpack.c.b16 %v195, %v191
  %v248 = vpack.c.b16 %v196, %v192
  %v249 = vpack.c.b16 %v197, %v193
  %v250 = vpack.c.b16 %v198, %v194
  %v251 = vpack.c.b16 %v203, %v199
  %v252 = vpack.c.b16 %v204, %v200
  %v253 = vpack.c.b16 %v205, %v201
  %v254 = vpack.c.b16 %v206, %v202
  %v255 = vpack.c.b16 %v211, %v207
  %v256 = vpack.c.b16 %v212, %v208
  %v257 = vpack.c.b16 %v213, %v209
  %v258 = vpack.c.b16 %v214, %v210
  %v259 = vpack.c.b16 %v219, %v215
  %v260 = vpack.c.b16 %v220, %v216
  %v261 = vpack.c.b16 %v221, %v217
  %v262 = vpack.c.b16 %v222, %v218
  %v263 = vpack.c.b16 %v227, %v223
  %v264 = vpack.c.b16 %v228, %v224
  %v265 = vpack.c.b16 %v229, %v225
  %v266 = vpack.c.b16 %v230, %v226
  %v267 = vpack.c.b16 %v235, %v231
  %v268 = vpack.c.b16 %v236, %v232
  %v269 = vpack.c.b16 %v237, %v233
  %v270 = vpack.c.b16 %v238, %v234
  %303 = vmatprep.subr.bf16.mxu0 %v240
  %304 = vmatpush1.bf16.msra.mxu0 %v239
  %305 = vmatprep.subr.bf16.mxu0 %v244
  %306 = vmatpush1.bf16.msra.mxu0 %v243
  %307 = vmatprep.subr.bf16.mxu0 %v248
  %308 = vmatpush1.bf16.msra.mxu0 %v247
  %309 = vmatprep.subr.bf16.mxu0 %v252
  %310 = vmatpush1.bf16.msra.mxu0 %v251
  %311 = vmatprep.subr.bf16.mxu0 %v256
  %312 = vmatpush1.bf16.msra.mxu0 %v255
  %313 = vmatprep.subr.bf16.mxu0 %v260
  %314 = vmatpush1.bf16.msra.mxu0 %v259
  %315 = vmatprep.subr.bf16.mxu0 %v264
  %316 = vmatpush1.bf16.msra.mxu0 %v263
  %317 = vmatprep.subr.bf16.mxu0 %v268
  %318 = vmatpush1.bf16.msra.mxu0 %v267
  %319 = vmatprep.subr.bf16.mxu0 0
  %320 = vmatpush1.bf16.msra.mxu0 0
  %321 = vmatprep.subr.bf16.mxu0 0
  %322 = vmatpush1.bf16.msra.mxu0 0
  %323 = vmatprep.subr.bf16.mxu0 0
  %324 = vmatpush1.bf16.msra.mxu0 0
  %325 = vmatprep.subr.bf16.mxu0 0
  %326 = vmatpush1.bf16.msra.mxu0 0
  %327 = vmatprep.subr.bf16.mxu0 0
  %328 = vmatpush1.bf16.msra.mxu0 0
  %329 = vmatprep.subr.bf16.mxu0 0
  %330 = vmatpush1.bf16.msra.mxu0 0
  %331 = vmatprep.subr.bf16.mxu0 0
  %332 = vmatpush1.bf16.msra.mxu0 0
  %333 = vmatprep.subr.bf16.mxu0 0
  %334 = vmatpush1.bf16.msra.mxu0 0
  %335 = vmatprep.mubr.bf16.mxu0 0
  %336 = vmatmul.mubr.bf16.gmra.mrb[0].mxu0 %v127
  %v337 = vpop.f32.mrb[0].mxu0
  %v338 = vadd.f32 %v78, %v337
  %v339 = vpop.f32.mrb[0].mxu0
  %v340 = vadd.f32 %v82, %v339
  %v341 = vpop.f32.mrb[0].mxu0
  %v342 = vadd.f32 %v78, %v341
  %v343 = vpop.f32.mrb[0].mxu0
  %v344 = vadd.f32 %v82, %v343
  %345 = vmatprep.mubr.bf16.mxu0 0
  %346 = vmatmul.mubr.bf16.gmra.mrb[0].mxu0 %v128
  %v347 = vpop.f32.mrb[0].mxu0
  %v348 = vadd.f32 %v78, %v347
  %v349 = vpop.f32.mrb[0].mxu0
  %v350 = vadd.f32 %v82, %v349
  %v351 = vpop.f32.mrb[0].mxu0
  %v352 = vadd.f32 %v78, %v351
  %v353 = vpop.f32.mrb[0].mxu0
  %v354 = vadd.f32 %v82, %v353
  %355 = vmatprep.mubr.bf16.mxu0 0
  %356 = vmatmul.mubr.bf16.gmra.mrb[0].mxu0 %v129
  %v357 = vpop.f32.mrb[0].mxu0
  %v358 = vadd.f32 %v78, %v357
  %v359 = vpop.f32.mrb[0].mxu0
  %v360 = vadd.f32 %v82, %v359
  %v361 = vpop.f32.mrb[0].mxu0
  %v362 = vadd.f32 %v78, %v361
  %v363 = vpop.f32.mrb[0].mxu0
  %v364 = vadd.f32 %v82, %v363
  %365 = vmatprep.mubr.bf16.mxu0 0
  %366 = vmatmul.mubr.bf16.gmra.mrb[0].mxu0 %v130
  %v367 = vpop.f32.mrb[0].mxu0
  %v368 = vadd.f32 %v78, %v367
  %v369 = vpop.f32.mrb[0].mxu0
  %v370 = vadd.f32 %v82, %v369
  %v371 = vpop.f32.mrb[0].mxu0
  %v372 = vadd.f32 %v78, %v371
  %v373 = vpop.f32.mrb[0].mxu0
  %v374 = vadd.f32 %v82, %v373
  %375 = vmatprep.mubr.bf16.mxu0 0
  %376 = vmatmul.mubr.bf16.gmra.mrb[0].mxu0 %v131
  %v377 = vpop.f32.mrb[0].mxu0
  %v378 = vadd.f32 %v78, %v377
  %v379 = vpop.f32.mrb[0].mxu0
  %v380 = vadd.f32 %v82, %v379
  %v381 = vpop.f32.mrb[0].mxu0
  %v382 = vadd.f32 %v78, %v381
  %v383 = vpop.f32.mrb[0].mxu0
  %v384 = vadd.f32 %v82, %v383
  %385 = vmatprep.mubr.bf16.mxu0 0
  %386 = vmatmul.mubr.bf16.gmra.mrb[0].mxu0 %v132
  %v387 = vpop.f32.mrb[0].mxu0
  %v388 = vadd.f32 %v78, %v387
  %v389 = vpop.f32.mrb[0].mxu0
  %v390 = vadd.f32 %v82, %v389
  %v391 = vpop.f32.mrb[0].mxu0
  %v392 = vadd.f32 %v78, %v391
  %v393 = vpop.f32.mrb[0].mxu0
  %v394 = vadd.f32 %v82, %v393
  %395 = vmatprep.mubr.bf16.mxu0 0
  %396 = vmatmul.mubr.bf16.gmra.mrb[0].mxu0 %v133
  %v397 = vpop.f32.mrb[0].mxu0
  %v398 = vadd.f32 %v78, %v397
  %v399 = vpop.f32.mrb[0].mxu0
  %v400 = vadd.f32 %v82, %v399
  %v401 = vpop.f32.mrb[0].mxu0
  %v402 = vadd.f32 %v78, %v401
  %v403 = vpop.f32.mrb[0].mxu0
  %v404 = vadd.f32 %v82, %v403
  %405 = vmatprep.mubr.bf16.mxu0 0
  %406 = vmatmul.mubr.bf16.gmra.mrb[0].mxu0 %v134
  %v407 = vpop.f32.mrb[0].mxu0
  %v408 = vadd.f32 %v78, %v407
  %v409 = vpop.f32.mrb[0].mxu0
  %v410 = vadd.f32 %v82, %v409
  %v411 = vpop.f32.mrb[0].mxu0
  %v412 = vadd.f32 %v78, %v411
  %v413 = vpop.f32.mrb[0].mxu0
  %v414 = vadd.f32 %v82, %v413
  %415 = vdwg.mxu0
  %416 = vmatprep.subr.bf16.mxu0 %v242
  %417 = vmatpush1.bf16.msra.mxu0 %v241
  %418 = vmatprep.subr.bf16.mxu0 %v246
  %419 = vmatpush1.bf16.msra.mxu0 %v245
  %420 = vmatprep.subr.bf16.mxu0 %v250
  %421 = vmatpush1.bf16.msra.mxu0 %v249
  %422 = vmatprep.subr.bf16.mxu0 %v254
  %423 = vmatpush1.bf16.msra.mxu0 %v253
  %424 = vmatprep.subr.bf16.mxu0 %v258
  %425 = vmatpush1.bf16.msra.mxu0 %v257
  %426 = vmatprep.subr.bf16.mxu0 %v262
  %427 = vmatpush1.bf16.msra.mxu0 %v261
  %428 = vmatprep.subr.bf16.mxu0 %v266
  %429 = vmatpush1.bf16.msra.mxu0 %v265
  %430 = vmatprep.subr.bf16.mxu0 %v270
  %431 = vmatpush1.bf16.msra.mxu0 %v269
  %432 = vmatprep.subr.bf16.mxu0 0
  %433 = vmatpush1.bf16.msra.mxu0 0
  %434 = vmatprep.subr.bf16.mxu0 0
  %435 = vmatpush1.bf16.msra.mxu0 0
  %436 = vmatprep.subr.bf16.mxu0 0
  %437 = vmatpush1.bf16.msra.mxu0 0
  %438 = vmatprep.subr.bf16.mxu0 0
  %439 = vmatpush1.bf16.msra.mxu0 0
  %440 = vmatprep.subr.bf16.mxu0 0
  %441 = vmatpush1.bf16.msra.mxu0 0
  %442 = vmatprep.subr.bf16.mxu0 0
  %443 = vmatpush1.bf16.msra.mxu0 0
  %444 = vmatprep.subr.bf16.mxu0 0
  %445 = vmatpush1.bf16.msra.mxu0 0
  %446 = vmatprep.subr.bf16.mxu0 0
  %447 = vmatpush1.bf16.msra.mxu0 0
  %448 = vmatprep.mubr.bf16.mxu0 0
  %449 = vmatmul.mubr.bf16.gmra.mrb[0].mxu0 %v127
  %v450 = vpop.f32.mrb[0].mxu0
  %v451 = vadd.f32 %v86, %v450
  %v452 = vpop.f32.mrb[0].mxu0
  %v453 = vadd.f32 %v90, %v452
  %v454 = vpop.f32.mrb[0].mxu0
  %v455 = vadd.f32 %v86, %v454
  %v456 = vpop.f32.mrb[0].mxu0
  %v457 = vadd.f32 %v90, %v456
  %458 = vmatprep.mubr.bf16.mxu0 0
  %459 = vmatmul.mubr.bf16.gmra.mrb[0].mxu0 %v128
  %v460 = vpop.f32.mrb[0].mxu0
  %v461 = vadd.f32 %v86, %v460
  %v462 = vpop.f32.mrb[0].mxu0
  %v463 = vadd.f32 %v90, %v462
  %v464 = vpop.f32.mrb[0].mxu0
  %v465 = vadd.f32 %v86, %v464
  %v466 = vpop.f32.mrb[0].mxu0
  %v467 = vadd.f32 %v90, %v466
  %468 = vmatprep.mubr.bf16.mxu0 0
  %469 = vmatmul.mubr.bf16.gmra.mrb[0].mxu0 %v129
  %v470 = vpop.f32.mrb[0].mxu0
  %v471 = vadd.f32 %v86, %v470
  %v472 = vpop.f32.mrb[0].mxu0
  %v473 = vadd.f32 %v90, %v472
  %v474 = vpop.f32.mrb[0].mxu0
  %v475 = vadd.f32 %v86, %v474
  %v476 = vpop.f32.mrb[0].mxu0
  %v477 = vadd.f32 %v90, %v476
  %478 = vmatprep.mubr.bf16.mxu0 0
  %479 = vmatmul.mubr.bf16.gmra.mrb[0].mxu0 %v130
  %v480 = vpop.f32.mrb[0].mxu0
  %v481 = vadd.f32 %v86, %v480
  %v482 = vpop.f32.mrb[0].mxu0
  %v483 = vadd.f32 %v90, %v482
  %v484 = vpop.f32.mrb[0].mxu0
  %v485 = vadd.f32 %v86, %v484
  %v486 = vpop.f32.mrb[0].mxu0
  %v487 = vadd.f32 %v90, %v486
  %488 = vmatprep.mubr.bf16.mxu0 0
  %489 = vmatmul.mubr.bf16.gmra.mrb[0].mxu0 %v131
  %v490 = vpop.f32.mrb[0].mxu0
  %v491 = vadd.f32 %v86, %v490
  %v492 = vpop.f32.mrb[0].mxu0
  %v493 = vadd.f32 %v90, %v492
  %v494 = vpop.f32.mrb[0].mxu0
  %v495 = vadd.f32 %v86, %v494
  %v496 = vpop.f32.mrb[0].mxu0
  %v497 = vadd.f32 %v90, %v496
  %498 = vmatprep.mubr.bf16.mxu0 0
  %499 = vmatmul.mubr.bf16.gmra.mrb[0].mxu0 %v132
  %v500 = vpop.f32.mrb[0].mxu0
  %v501 = vadd.f32 %v86, %v500
  %v502 = vpop.f32.mrb[0].mxu0
  %v503 = vadd.f32 %v90, %v502
  %v504 = vpop.f32.mrb[0].mxu0
  %v505 = vadd.f32 %v86, %v504
  %v506 = vpop.f32.mrb[0].mxu0
  %v507 = vadd.f32 %v90, %v506
  %508 = vmatprep.mubr.bf16.mxu0 0
  %509 = vmatmul.mubr.bf16.gmra.mrb[0].mxu0 %v133
  %v510 = vpop.f32.mrb[0].mxu0
  %v511 = vadd.f32 %v86, %v510
  %v512 = vpop.f32.mrb[0].mxu0
  %v513 = vadd.f32 %v90, %v512
  %v514 = vpop.f32.mrb[0].mxu0
  %v515 = vadd.f32 %v86, %v514
  %v516 = vpop.f32.mrb[0].mxu0
  %v517 = vadd.f32 %v90, %v516
  %518 = vmatprep.mubr.bf16.mxu0 0
  %519 = vmatmul.mubr.bf16.gmra.mrb[0].mxu0 %v134
  %v520 = vpop.f32.mrb[0].mxu0
  %v521 = vadd.f32 %v86, %v520
  %v522 = vpop.f32.mrb[0].mxu0
  %v523 = vadd.f32 %v90, %v522
  %v524 = vpop.f32.mrb[0].mxu0
  %v525 = vadd.f32 %v86, %v524
  %v526 = vpop.f32.mrb[0].mxu0
  %v527 = vadd.f32 %v90, %v526
  %528 = vdwg.mxu0
  %v529 = vld [vmem:[%s3] sm:$0xff]
  %v530 = vld [vmem:[%s3 + $0x8] sm:$0xff]
  %v531 = vld [vmem:[%s3 + $0x10] sm:$0xff]
  %v532 = vld [vmem:[%s3 + $0x18] sm:$0xff]
  %v533 = vld [vmem:[%s3 + $0x20] sm:$0xff]
  %v534 = vld [vmem:[%s3 + $0x28] sm:$0xff]
  %v535 = vld [vmem:[%s3 + $0x30] sm:$0xff]
  %v536 = vld [vmem:[%s3 + $0x38] sm:$0xff]
  %v537 = vld [vmem:[%s3 + $0x40] sm:$0xff]
  %v538 = vld [vmem:[%s3 + $0x48] sm:$0xff]
  %v539 = vld [vmem:[%s3 + $0x50] sm:$0xff]
  %v540 = vld [vmem:[%s3 + $0x58] sm:$0xff]
  %v541 = vld [vmem:[%s3 + $0x60] sm:$0xff]
  %v542 = vld [vmem:[%s3 + $0x68] sm:$0xff]
  %v543 = vld [vmem:[%s3 + $0x70] sm:$0xff]
  %v544 = vld [vmem:[%s3 + $0x78] sm:$0xff]
  %v545 = vld [vmem:[%s3 + $0x80] sm:$0xff]
  %v546 = vld [vmem:[%s3 + $0x88] sm:$0xff]
  %v547 = vld [vmem:[%s3 + $0x90] sm:$0xff]
  %v548 = vld [vmem:[%s3 + $0x98] sm:$0xff]
  %v549 = vld [vmem:[%s3 + $0xa0] sm:$0xff]
  %v550 = vld [vmem:[%s3 + $0xa8] sm:$0xff]
  %v551 = vld [vmem:[%s3 + $0xb0] sm:$0xff]
  %v552 = vld [vmem:[%s3 + $0xb8] sm:$0xff]
  %v553 = vld [vmem:[%s3 + $0xc0] sm:$0xff]
  %v554 = vld [vmem:[%s3 + $0xc8] sm:$0xff]
  %v555 = vld [vmem:[%s3 + $0xd0] sm:$0xff]
  %v556 = vld [vmem:[%s3 + $0xd8] sm:$0xff]
  %v557 = vld [vmem:[%s3 + $0xe0] sm:$0xff]
  %v558 = vld [vmem:[%s3 + $0xe8] sm:$0xff]
  %v559 = vld [vmem:[%s3 + $0xf0] sm:$0xff]
  %v560 = vld [vmem:[%s3 + $0xf8] sm:$0xff]
  %v561 = vld [vmem:[#allocation2] sm:$0xff]
  %v562 = vld [vmem:[#allocation3] sm:$0xff]
  %v563 = vld [vmem:[#allocation3 + $0x8] sm:$0xff]
  %v596 = vunpack.c.l.b16 %v529
  %v597 = vunpack.c.h.b16 %v529
  %v598 = vunpack.c.l.b16 %v530
  %v599 = vunpack.c.h.b16 %v530
  %v600 = vunpack.c.l.b16 %v531
  %v601 = vunpack.c.h.b16 %v531
  %v602 = vunpack.c.l.b16 %v532
  %v603 = vunpack.c.h.b16 %v532
  %v604 = vunpack.c.l.b16 %v533
  %v605 = vunpack.c.h.b16 %v533
  %v606 = vunpack.c.l.b16 %v534
  %v607 = vunpack.c.h.b16 %v534
  %v608 = vunpack.c.l.b16 %v535
  %v609 = vunpack.c.h.b16 %v535
  %v610 = vunpack.c.l.b16 %v536
  %v611 = vunpack.c.h.b16 %v536
  %v612 = vunpack.c.l.b16 %v537
  %v613 = vunpack.c.h.b16 %v537
  %v614 = vunpack.c.l.b16 %v538
  %v615 = vunpack.c.h.b16 %v538
  %v616 = vunpack.c.l.b16 %v539
  %v617 = vunpack.c.h.b16 %v539
  %v618 = vunpack.c.l.b16 %v540
  %v619 = vunpack.c.h.b16 %v540
  %v620 = vunpack.c.l.b16 %v541
  %v621 = vunpack.c.h.b16 %v541
  %v622 = vunpack.c.l.b16 %v542
  %v623 = vunpack.c.h.b16 %v542
  %v624 = vunpack.c.l.b16 %v543
  %v625 = vunpack.c.h.b16 %v543
  %v626 = vunpack.c.l.b16 %v544
  %v627 = vunpack.c.h.b16 %v544
  %v628 = vunpack.c.l.b16 %v545
  %v629 = vunpack.c.h.b16 %v545
  %v630 = vunpack.c.l.b16 %v546
  %v631 = vunpack.c.h.b16 %v546
  %v632 = vunpack.c.l.b16 %v547
  %v633 = vunpack.c.h.b16 %v547
  %v634 = vunpack.c.l.b16 %v548
  %v635 = vunpack.c.h.b16 %v548
  %v636 = vunpack.c.l.b16 %v549
  %v637 = vunpack.c.h.b16 %v549
  %v638 = vunpack.c.l.b16 %v550
  %v639 = vunpack.c.h.b16 %v550
  %v640 = vunpack.c.l.b16 %v551
  %v641 = vunpack.c.h.b16 %v551
  %v642 = vunpack.c.l.b16 %v552
  %v643 = vunpack.c.h.b16 %v552
  %v644 = vunpack.c.l.b16 %v553
  %v645 = vunpack.c.h.b16 %v553
  %v646 = vunpack.c.l.b16 %v554
  %v647 = vunpack.c.h.b16 %v554
  %v648 = vunpack.c.l.b16 %v555
  %v649 = vunpack.c.h.b16 %v555
  %v650 = vunpack.c.l.b16 %v556
  %v651 = vunpack.c.h.b16 %v556
  %v652 = vunpack.c.l.b16 %v557
  %v653 = vunpack.c.h.b16 %v557
  %v654 = vunpack.c.l.b16 %v558
  %v655 = vunpack.c.h.b16 %v558
  %v656 = vunpack.c.l.b16 %v559
  %v657 = vunpack.c.h.b16 %v559
  %v658 = vunpack.c.l.b16 %v560
  %v659 = vunpack.c.h.b16 %v560
  %v660 = vpack.c.b16 %v600, %v596
  %v661 = vpack.c.b16 %v601, %v597
  %v662 = vpack.c.b16 %v602, %v598
  %v663 = vpack.c.b16 %v603, %v599
  %v664 = vpack.c.b16 %v608, %v604
  %v665 = vpack.c.b16 %v609, %v605
  %v666 = vpack.c.b16 %v610, %v606
  %v667 = vpack.c.b16 %v611, %v607
  %v668 = vpack.c.b16 %v616, %v612
  %v669 = vpack.c.b16 %v617, %v613
  %v670 = vpack.c.b16 %v618, %v614
  %v671 = vpack.c.b16 %v619, %v615
  %v672 = vpack.c.b16 %v624, %v620
  %v673 = vpack.c.b16 %v625, %v621
  %v674 = vpack.c.b16 %v626, %v622
  %v675 = vpack.c.b16 %v627, %v623
  %v676 = vpack.c.b16 %v632, %v628
  %v677 = vpack.c.b16 %v633, %v629
  %v678 = vpack.c.b16 %v634, %v630
  %v679 = vpack.c.b16 %v635, %v631
  %v680 = vpack.c.b16 %v640, %v636
  %v681 = vpack.c.b16 %v641, %v637
  %v682 = vpack.c.b16 %v642, %v638
  %v683 = vpack.c.b16 %v643, %v639
  %v684 = vpack.c.b16 %v648, %v644
  %v685 = vpack.c.b16 %v649, %v645
  %v686 = vpack.c.b16 %v650, %v646
  %v687 = vpack.c.b16 %v651, %v647
  %v688 = vpack.c.b16 %v656, %v652
  %v689 = vpack.c.b16 %v657, %v653
  %v690 = vpack.c.b16 %v658, %v654
  %v691 = vpack.c.b16 %v659, %v655
  %724 = vmatprep.subr.bf16.mxu0 %v661
  %725 = vmatpush1.bf16.msra.mxu0 %v660
  %726 = vmatprep.subr.bf16.mxu0 %v665
  %727 = vmatpush1.bf16.msra.mxu0 %v664
  %728 = vmatprep.subr.bf16.mxu0 %v669
  %729 = vmatpush1.bf16.msra.mxu0 %v668
  %730 = vmatprep.subr.bf16.mxu0 %v673
  %731 = vmatpush1.bf16.msra.mxu0 %v672
  %732 = vmatprep.subr.bf16.mxu0 %v677
  %733 = vmatpush1.bf16.msra.mxu0 %v676
  %734 = vmatprep.subr.bf16.mxu0 %v681
  %735 = vmatpush1.bf16.msra.mxu0 %v680
  %736 = vmatprep.subr.bf16.mxu0 %v685
  %737 = vmatpush1.bf16.msra.mxu0 %v684
  %738 = vmatprep.subr.bf16.mxu0 %v689
  %739 = vmatpush1.bf16.msra.mxu0 %v688
  %740 = vmatprep.subr.bf16.mxu0 0
  %741 = vmatpush1.bf16.msra.mxu0 0
  %742 = vmatprep.subr.bf16.mxu0 0
  %743 = vmatpush1.bf16.msra.mxu0 0
  %744 = vmatprep.subr.bf16.mxu0 0
  %745 = vmatpush1.bf16.msra.mxu0 0
  %746 = vmatprep.subr.bf16.mxu0 0
  %747 = vmatpush1.bf16.msra.mxu0 0
  %748 = vmatprep.subr.bf16.mxu0 0
  %749 = vmatpush1.bf16.msra.mxu0 0
  %750 = vmatprep.subr.bf16.mxu0 0
  %751 = vmatpush1.bf16.msra.mxu0 0
  %752 = vmatprep.subr.bf16.mxu0 0
  %753 = vmatpush1.bf16.msra.mxu0 0
  %754 = vmatprep.subr.bf16.mxu0 0
  %755 = vmatpush1.bf16.msra.mxu0 0
  %756 = vmatprep.mubr.bf16.mxu0 0
  %757 = vmatmul.mubr.bf16.gmra.mrb[0].mxu0 %v561
  %v758 = vpop.f32.mrb[0].mxu0
  %v759 = vadd.f32 0.0, %v758
  %v760 = vpop.f32.mrb[0].mxu0
  %v761 = vadd.f32 0.0, %v760
  %v762 = vpop.f32.mrb[0].mxu0
  %v763 = vadd.f32 0.0, %v762
  %v764 = vpop.f32.mrb[0].mxu0
  %v765 = vadd.f32 0.0, %v764
  %766 = vdwg.mxu0
  %767 = vmatprep.subr.bf16.mxu0 %v663
  %768 = vmatpush1.bf16.msra.mxu0 %v662
  %769 = vmatprep.subr.bf16.mxu0 %v667
  %770 = vmatpush1.bf16.msra.mxu0 %v666
  %771 = vmatprep.subr.bf16.mxu0 %v671
  %772 = vmatpush1.bf16.msra.mxu0 %v670
  %773 = vmatprep.subr.bf16.mxu0 %v675
  %774 = vmatpush1.bf16.msra.mxu0 %v674
  %775 = vmatprep.subr.bf16.mxu0 %v679
  %776 = vmatpush1.bf16.msra.mxu0 %v678
  %777 = vmatprep.subr.bf16.mxu0 %v683
  %778 = vmatpush1.bf16.msra.mxu0 %v682
  %779 = vmatprep.subr.bf16.mxu0 %v687
  %780 = vmatpush1.bf16.msra.mxu0 %v686
  %781 = vmatprep.subr.bf16.mxu0 %v691
  %782 = vmatpush1.bf16.msra.mxu0 %v690
  %783 = vmatprep.subr.bf16.mxu0 0
  %784 = vmatpush1.bf16.msra.mxu0 0
  %785 = vmatprep.subr.bf16.mxu0 0
  %786 = vmatpush1.bf16.msra.mxu0 0
  %787 = vmatprep.subr.bf16.mxu0 0
  %788 = vmatpush1.bf16.msra.mxu0 0
  %789 = vmatprep.subr.bf16.mxu0 0
  %790 = vmatpush1.bf16.msra.mxu0 0
  %791 = vmatprep.subr.bf16.mxu0 0
  %792 = vmatpush1.bf16.msra.mxu0 0
  %793 = vmatprep.subr.bf16.mxu0 0
  %794 = vmatpush1.bf16.msra.mxu0 0
  %795 = vmatprep.subr.bf16.mxu0 0
  %796 = vmatpush1.bf16.msra.mxu0 0
  %797 = vmatprep.subr.bf16.mxu0 0
  %798 = vmatpush1.bf16.msra.mxu0 0
  %799 = vmatprep.mubr.bf16.mxu0 0
  %800 = vmatmul.mubr.bf16.gmra.mrb[0].mxu0 %v561
  %v801 = vpop.f32.mrb[0].mxu0
  %v802 = vadd.f32 0.0, %v801
  %v803 = vpop.f32.mrb[0].mxu0
  %v804 = vadd.f32 0.0, %v803
  %v805 = vpop.f32.mrb[0].mxu0
  %v806 = vadd.f32 0.0, %v805
  %v807 = vpop.f32.mrb[0].mxu0
  %v808 = vadd.f32 0.0, %v807
  %809 = vdwg.mxu0
  %v810 = vadd.f32 %v338, %v759
  %v811 = vadd.f32 %v340, %v761
  %v812 = vadd.f32 %v451, %v802
  %v813 = vadd.f32 %v453, %v804
  %v814 = vadd.f32 %v342, %v763
  %v815 = vadd.f32 %v344, %v765
  %v816 = vadd.f32 %v455, %v806
  %v817 = vadd.f32 %v457, %v808
  %v818 = vxor.u32 %v810, 2147483648
  %v819 = vxor.u32 %v814, 2147483648
  %v820 = vmul.f32 %v818, 1.442695
  %v821 = vpow.pop %v820
  %v822 = vmul.f32 %v819, 1.442695
  %v823 = vpow.pop %v822
  %v824 = vadd.f32 %v821, 1.0
  %v825 = vadd.f32 %v823, 1.0
  %v826 = vrcp.pop %v824
  %v827 = vmul.f32 1.0, %v826
  %v828 = vrcp.pop %v825
  %v829 = vmul.f32 1.0, %v828
  %v830 = vxor.u32 %v811, 2147483648
  %v831 = vxor.u32 %v815, 2147483648
  %v832 = vmul.f32 %v830, 1.442695
  %v833 = vpow.pop %v832
  %v834 = vmul.f32 %v831, 1.442695
  %v835 = vpow.pop %v834
  %v836 = vadd.f32 %v833, 1.0
  %v837 = vadd.f32 %v835, 1.0
  %v838 = vrcp.pop %v836
  %v839 = vmul.f32 1.0, %v838
  %v840 = vrcp.pop %v837
  %v841 = vmul.f32 1.0, %v840
  %v842 = vtanh.pop %v812
  %v843 = vtanh.pop %v816
  %v844 = vxor.u32 %v813, 2147483648
  %v845 = vxor.u32 %v817, 2147483648
  %v846 = vmul.f32 %v844, 1.442695
  %v847 = vpow.pop %v846
  %v848 = vmul.f32 %v845, 1.442695
  %v849 = vpow.pop %v848
  %v850 = vadd.f32 %v847, 1.0
  %v851 = vadd.f32 %v849, 1.0
  %v852 = vrcp.pop %v850
  %v853 = vmul.f32 1.0, %v852
  %v854 = vrcp.pop %v851
  %v855 = vmul.f32 1.0, %v854
  %v856 = vmul.f32 %v839, %v562
  %v857 = vmul.f32 %v841, %v563
  %v858 = vmul.f32 %v827, %v842
  %v859 = vmul.f32 %v829, %v843
  %v860 = vadd.f32 %v856, %v858
  %v861 = vadd.f32 %v857, %v859
  %v862 = vtanh.pop %v860
  %v863 = vtanh.pop %v861
  %v864 = vmul.f32 %v853, %v862
  %v865 = vmul.f32 %v855, %v863
  %v866 = vpack.c.bf16 %v865, %v864
  %867 = vst [vmem:[#allocation2] sm:$0xff] %v866
  %868 = vst [vmem:[#allocation3] sm:$0xff] %v860
  %869 = vst [vmem:[#allocation3 + $0x8] sm:$0xff] %v861
  %v870 = vld [vmem:[#allocation2] sm:$0xff]
  %v871 = vld [vmem:[#allocation3] sm:$0xff]
  %v872 = vld [vmem:[#allocation3 + $0x8] sm:$0xff]
  %873 = vmatprep.subr.bf16.mxu0 %v661
  %874 = vmatpush1.bf16.msra.mxu0 %v660
  %875 = vmatprep.subr.bf16.mxu0 %v665
  %876 = vmatpush1.bf16.msra.mxu0 %v664
  %877 = vmatprep.subr.bf16.mxu0 %v669
  %878 = vmatpush1.bf16.msra.mxu0 %v668
  %879 = vmatprep.subr.bf16.mxu0 %v673
  %880 = vmatpush1.bf16.msra.mxu0 %v672
  %881 = vmatprep.subr.bf16.mxu0 %v677
  %882 = vmatpush1.bf16.msra.mxu0 %v676
  %883 = vmatprep.subr.bf16.mxu0 %v681
  %884 = vmatpush1.bf16.msra.mxu0 %v680
  %885 = vmatprep.subr.bf16.mxu0 %v685
  %886 = vmatpush1.bf16.msra.mxu0 %v684
  %887 = vmatprep.subr.bf16.mxu0 %v689
  %888 = vmatpush1.bf16.msra.mxu0 %v688
  %889 = vmatprep.subr.bf16.mxu0 0
  %890 = vmatpush1.bf16.msra.mxu0 0
  %891 = vmatprep.subr.bf16.mxu0 0
  %892 = vmatpush1.bf16.msra.mxu0 0
  %893 = vmatprep.subr.bf16.mxu0 0
  %894 = vmatpush1.bf16.msra.mxu0 0
  %895 = vmatprep.subr.bf16.mxu0 0
  %896 = vmatpush1.bf16.msra.mxu0 0
  %897 = vmatprep.subr.bf16.mxu0 0
  %898 = vmatpush1.bf16.msra.mxu0 0
  %899 = vmatprep.subr.bf16.mxu0 0
  %900 = vmatpush1.bf16.msra.mxu0 0
  %901 = vmatprep.subr.bf16.mxu0 0
  %902 = vmatpush1.bf16.msra.mxu0 0
  %903 = vmatprep.subr.bf16.mxu0 0
  %904 = vmatpush1.bf16.msra.mxu0 0
  %905 = vmatprep.mubr.bf16.mxu0 0
  %906 = vmatmul.mubr.bf16.gmra.mrb[0].mxu0 %v870
  %v907 = vpop.f32.mrb[0].mxu0
  %v908 = vadd.f32 0.0, %v907
  %v909 = vpop.f32.mrb[0].mxu0
  %v910 = vadd.f32 0.0, %v909
  %v911 = vpop.f32.mrb[0].mxu0
  %v912 = vadd.f32 0.0, %v911
  %v913 = vpop.f32.mrb[0].mxu0
  %v914 = vadd.f32 0.0, %v913
  %915 = vdwg.mxu0
  %916 = vmatprep.subr.bf16.mxu0 %v663
  %917 = vmatpush1.bf16.msra.mxu0 %v662
  %918 = vmatprep.subr.bf16.mxu0 %v667
  %919 = vmatpush1.bf16.msra.mxu0 %v666
  %920 = vmatprep.subr.bf16.mxu0 %v671
  %921 = vmatpush1.bf16.msra.mxu0 %v670
  %922 = vmatprep.subr.bf16.mxu0 %v675
  %923 = vmatpush1.bf16.msra.mxu0 %v674
  %924 = vmatprep.subr.bf16.mxu0 %v679
  %925 = vmatpush1.bf16.msra.mxu0 %v678
  %926 = vmatprep.subr.bf16.mxu0 %v683
  %927 = vmatpush1.bf16.msra.mxu0 %v682
  %928 = vmatprep.subr.bf16.mxu0 %v687
  %929 = vmatpush1.bf16.msra.mxu0 %v686
  %930 = vmatprep.subr.bf16.mxu0 %v691
  %931 = vmatpush1.bf16.msra.mxu0 %v690
  %932 = vmatprep.subr.bf16.mxu0 0
  %933 = vmatpush1.bf16.msra.mxu0 0
  %934 = vmatprep.subr.bf16.mxu0 0
  %935 = vmatpush1.bf16.msra.mxu0 0
  %936 = vmatprep.subr.bf16.mxu0 0
  %937 = vmatpush1.bf16.msra.mxu0 0
  %938 = vmatprep.subr.bf16.mxu0 0
  %939 = vmatpush1.bf16.msra.mxu0 0
  %940 = vmatprep.subr.bf16.mxu0 0
  %941 = vmatpush1.bf16.msra.mxu0 0
  %942 = vmatprep.subr.bf16.mxu0 0
  %943 = vmatpush1.bf16.msra.mxu0 0
  %944 = vmatprep.subr.bf16.mxu0 0
  %945 = vmatpush1.bf16.msra.mxu0 0
  %946 = vmatprep.subr.bf16.mxu0 0
  %947 = vmatpush1.bf16.msra.mxu0 0
  %948 = vmatprep.mubr.bf16.mxu0 0
  %949 = vmatmul.mubr.bf16.gmra.mrb[0].mxu0 %v870
  %v950 = vpop.f32.mrb[0].mxu0
  %v951 = vadd.f32 0.0, %v950
  %v952 = vpop.f32.mrb[0].mxu0
  %v953 = vadd.f32 0.0, %v952
  %v954 = vpop.f32.mrb[0].mxu0
  %v955 = vadd.f32 0.0, %v954
  %v956 = vpop.f32.mrb[0].mxu0
  %v957 = vadd.f32 0.0, %v956
  %958 = vdwg.mxu0
  %v959 = vadd.f32 %v348, %v908
  %v960 = vadd.f32 %v350, %v910
  %v961 = vadd.f32 %v461, %v951
  %v962 = vadd.f32 %v463, %v953
  %v963 = vadd.f32 %v352, %v912
  %v964 = vadd.f32 %v354, %v914
  %v965 = vadd.f32 %v465, %v955
  %v966 = vadd.f32 %v467, %v957
  %v967 = vxor.u32 %v959, 2147483648
  %v968 = vxor.u32 %v963, 2147483648
  %v969 = vmul.f32 %v967, 1.442695
  %v970 = vpow.pop %v969
  %v971 = vmul.f32 %v968, 1.442695
  %v972 = vpow.pop %v971
  %v973 = vadd.f32 %v970, 1.0
  %v974 = vadd.f32 %v972, 1.0
  %v975 = vrcp.pop %v973
  %v976 = vmul.f32 1.0, %v975
  %v977 = vrcp.pop %v974
  %v978 = vmul.f32 1.0, %v977
  %v979 = vxor.u32 %v960, 2147483648
  %v980 = vxor.u32 %v964, 2147483648
  %v981 = vmul.f32 %v979, 1.442695
  %v982 = vpow.pop %v981
  %v983 = vmul.f32 %v980, 1.442695
  %v984 = vpow.pop %v983
  %v985 = vadd.f32 %v982, 1.0
  %v986 = vadd.f32 %v984, 1.0
  %v987 = vrcp.pop %v985
  %v988 = vmul.f32 1.0, %v987
  %v989 = vrcp.pop %v986
  %v990 = vmul.f32 1.0, %v989
  %v991 = vtanh.pop %v961
  %v992 = vtanh.pop %v965
  %v993 = vxor.u32 %v962, 2147483648
  %v994 = vxor.u32 %v966, 2147483648
  %v995 = vmul.f32 %v993, 1.442695
  %v996 = vpow.pop %v995
  %v997 = vmul.f32 %v994, 1.442695
  %v998 = vpow.pop %v997
  %v999 = vadd.f32 %v996, 1.0
  %v1000 = vadd.f32 %v998, 1.0
  %v1001 = vrcp.pop %v999
  %v1002 = vmul.f32 1.0, %v1001
  %v1003 = vrcp.pop %v1000
  %v1004 = vmul.f32 1.0, %v1003
  %v1005 = vmul.f32 %v988, %v871
  %v1006 = vmul.f32 %v990, %v872
  %v1007 = vmul.f32 %v976, %v991
  %v1008 = vmul.f32 %v978, %v992
  %v1009 = vadd.f32 %v1005, %v1007
  %v1010 = vadd.f32 %v1006, %v1008
  %v1011 = vtanh.pop %v1009
  %v1012 = vtanh.pop %v1010
  %v1013 = vmul.f32 %v1002, %v1011
  %v1014 = vmul.f32 %v1004, %v1012
  %v1015 = vpack.c.bf16 %v1014, %v1013
  %1016 = vst [vmem:[#allocation2] sm:$0xff] %v1015
  %1017 = vst [vmem:[#allocation3] sm:$0xff] %v1009
  %1018 = vst [vmem:[#allocation3 + $0x8] sm:$0xff] %v1010
  %v1019 = vld [vmem:[#allocation2] sm:$0xff]
  %v1020 = vld [vmem:[#allocation3] sm:$0xff]
  %v1021 = vld [vmem:[#allocation3 + $0x8] sm:$0xff]
  %1022 = vmatprep.subr.bf16.mxu0 %v661
  %1023 = vmatpush1.bf16.msra.mxu0 %v660
  %1024 = vmatprep.subr.bf16.mxu0 %v665
  %1025 = vmatpush1.bf16.msra.mxu0 %v664
  %1026 = vmatprep.subr.bf16.mxu0 %v669
  %1027 = vmatpush1.bf16.msra.mxu0 %v668
  %1028 = vmatprep.subr.bf16.mxu0 %v673
  %1029 = vmatpush1.bf16.msra.mxu0 %v672
  %1030 = vmatprep.subr.bf16.mxu0 %v677
  %1031 = vmatpush1.bf16.msra.mxu0 %v676
  %1032 = vmatprep.subr.bf16.mxu0 %v681
  %1033 = vmatpush1.bf16.msra.mxu0 %v680
  %1034 = vmatprep.subr.bf16.mxu0 %v685
  %1035 = vmatpush1.bf16.msra.mxu0 %v684
  %1036 = vmatprep.subr.bf16.mxu0 %v689
  %1037 = vmatpush1.bf16.msra.mxu0 %v688
  %1038 = vmatprep.subr.bf16.mxu0 0
  %1039 = vmatpush1.bf16.msra.mxu0 0
  %1040 = vmatprep.subr.bf16.mxu0 0
  %1041 = vmatpush1.bf16.msra.mxu0 0
  %1042 = vmatprep.subr.bf16.mxu0 0
  %1043 = vmatpush1.bf16.msra.mxu0 0
  %1044 = vmatprep.subr.bf16.mxu0 0
  %1045 = vmatpush1.bf16.msra.mxu0 0
  %1046 = vmatprep.subr.bf16.mxu0 0
  %1047 = vmatpush1.bf16.msra.mxu0 0
  %1048 = vmatprep.subr.bf16.mxu0 0
  %1049 = vmatpush1.bf16.msra.mxu0 0
  %1050 = vmatprep.subr.bf16.mxu0 0
  %1051 = vmatpush1.bf16.msra.mxu0 0
  %1052 = vmatprep.subr.bf16.mxu0 0
  %1053 = vmatpush1.bf16.msra.mxu0 0
  %1054 = vmatprep.mubr.bf16.mxu0 0
  %1055 = vmatmul.mubr.bf16.gmra.mrb[0].mxu0 %v1019
  %v1056 = vpop.f32.mrb[0].mxu0
  %v1057 = vadd.f32 0.0, %v1056
  %v1058 = vpop.f32.mrb[0].mxu0
  %v1059 = vadd.f32 0.0, %v1058
  %v1060 = vpop.f32.mrb[0].mxu0
  %v1061 = vadd.f32 0.0, %v1060
  %v1062 = vpop.f32.mrb[0].mxu0
  %v1063 = vadd.f32 0.0, %v1062
  %1064 = vdwg.mxu0
  %1065 = vmatprep.subr.bf16.mxu0 %v663
  %1066 = vmatpush1.bf16.msra.mxu0 %v662
  %1067 = vmatprep.subr.bf16.mxu0 %v667
  %1068 = vmatpush1.bf16.msra.mxu0 %v666
  %1069 = vmatprep.subr.bf16.mxu0 %v671
  %1070 = vmatpush1.bf16.msra.mxu0 %v670
  %1071 = vmatprep.subr.bf16.mxu0 %v675
  %1072 = vmatpush1.bf16.msra.mxu0 %v674
  %1073 = vmatprep.subr.bf16.mxu0 %v679
  %1074 = vmatpush1.bf16.msra.mxu0 %v678
  %1075 = vmatprep.subr.bf16.mxu0 %v683
  %1076 = vmatpush1.bf16.msra.mxu0 %v682
  %1077 = vmatprep.subr.bf16.mxu0 %v687
  %1078 = vmatpush1.bf16.msra.mxu0 %v686
  %1079 = vmatprep.subr.bf16.mxu0 %v691
  %1080 = vmatpush1.bf16.msra.mxu0 %v690
  %1081 = vmatprep.subr.bf16.mxu0 0
  %1082 = vmatpush1.bf16.msra.mxu0 0
  %1083 = vmatprep.subr.bf16.mxu0 0
  %1084 = vmatpush1.bf16.msra.mxu0 0
  %1085 = vmatprep.subr.bf16.mxu0 0
  %1086 = vmatpush1.bf16.msra.mxu0 0
  %1087 = vmatprep.subr.bf16.mxu0 0
  %1088 = vmatpush1.bf16.msra.mxu0 0
  %1089 = vmatprep.subr.bf16.mxu0 0
  %1090 = vmatpush1.bf16.msra.mxu0 0
  %1091 = vmatprep.subr.bf16.mxu0 0
  %1092 = vmatpush1.bf16.msra.mxu0 0
  %1093 = vmatprep.subr.bf16.mxu0 0
  %1094 = vmatpush1.bf16.msra.mxu0 0
  %1095 = vmatprep.subr.bf16.mxu0 0
  %1096 = vmatpush1.bf16.msra.mxu0 0
  %1097 = vmatprep.mubr.bf16.mxu0 0
  %1098 = vmatmul.mubr.bf16.gmra.mrb[0].mxu0 %v1019
  %v1099 = vpop.f32.mrb[0].mxu0
  %v1100 = vadd.f32 0.0, %v1099
  %v1101 = vpop.f32.mrb[0].mxu0
  %v1102 = vadd.f32 0.0, %v1101
  %v1103 = vpop.f32.mrb[0].mxu0
  %v1104 = vadd.f32 0.0, %v1103
  %v1105 = vpop.f32.mrb[0].mxu0
  %v1106 = vadd.f32 0.0, %v1105
  %1107 = vdwg.mxu0
  %v1108 = vadd.f32 %v358, %v1057
  %v1109 = vadd.f32 %v360, %v1059
  %v1110 = vadd.f32 %v471, %v1100
  %v1111 = vadd.f32 %v473, %v1102
  %v1112 = vadd.f32 %v362, %v1061
  %v1113 = vadd.f32 %v364, %v1063
  %v1114 = vadd.f32 %v475, %v1104
  %v1115 = vadd.f32 %v477, %v1106
  %v1116 = vxor.u32 %v1108, 2147483648
  %v1117 = vxor.u32 %v1112, 2147483648
  %v1118 = vmul.f32 %v1116, 1.442695
  %v1119 = vpow.pop %v1118
  %v1120 = vmul.f32 %v1117, 1.442695
  %v1121 = vpow.pop %v1120
  %v1122 = vadd.f32 %v1119, 1.0
  %v1123 = vadd.f32 %v1121, 1.0
  %v1124 = vrcp.pop %v1122
  %v1125 = vmul.f32 1.0, %v1124
  %v1126 = vrcp.pop %v1123
  %v1127 = vmul.f32 1.0, %v1126
  %v1128 = vxor.u32 %v1109, 2147483648
  %v1129 = vxor.u32 %v1113, 2147483648
  %v1130 = vmul.f32 %v1128, 1.442695
  %v1131 = vpow.pop %v1130
  %v1132 = vmul.f32 %v1129, 1.442695
  %v1133 = vpow.pop %v1132
  %v1134 = vadd.f32 %v1131, 1.0
  %v1135 = vadd.f32 %v1133, 1.0
  %v1136 = vrcp.pop %v1134
  %v1137 = vmul.f32 1.0, %v1136
  %v1138 = vrcp.pop %v1135
  %v1139 = vmul.f32 1.0, %v1138
  %v1140 = vtanh.pop %v1110
  %v1141 = vtanh.pop %v1114
  %v1142 = vxor.u32 %v1111, 2147483648
  %v1143 = vxor.u32 %v1115, 2147483648
  %v1144 = vmul.f32 %v1142, 1.442695
  %v1145 = vpow.pop %v1144
  %v1146 = vmul.f32 %v1143, 1.442695
  %v1147 = vpow.pop %v1146
  %v1148 = vadd.f32 %v1145, 1.0
  %v1149 = vadd.f32 %v1147, 1.0
  %v1150 = vrcp.pop %v1148
  %v1151 = vmul.f32 1.0, %v1150
  %v1152 = vrcp.pop %v1149
  %v1153 = vmul.f32 1.0, %v1152
  %v1154 = vmul.f32 %v1137, %v1020
  %v1155 = vmul.f32 %v1139, %v1021
  %v1156 = vmul.f32 %v1125, %v1140
  %v1157 = vmul.f32 %v1127, %v1141
  %v1158 = vadd.f32 %v1154, %v1156
  %v1159 = vadd.f32 %v1155, %v1157
  %v1160 = vtanh.pop %v1158
  %v1161 = vtanh.pop %v1159
  %v1162 = vmul.f32 %v1151, %v1160
  %v1163 = vmul.f32 %v1153, %v1161
  %v1164 = vpack.c.bf16 %v1163, %v1162
  %1165 = vst [vmem:[#allocation2] sm:$0xff] %v1164
  %1166 = vst [vmem:[#allocation3] sm:$0xff] %v1158
  %1167 = vst [vmem:[#allocation3 + $0x8] sm:$0xff] %v1159
  %v1168 = vld [vmem:[#allocation2] sm:$0xff]
  %v1169 = vld [vmem:[#allocation3] sm:$0xff]
  %v1170 = vld [vmem:[#allocation3 + $0x8] sm:$0xff]
  %1171 = vmatprep.subr.bf16.mxu0 %v661
  %1172 = vmatpush1.bf16.msra.mxu0 %v660
  %1173 = vmatprep.subr.bf16.mxu0 %v665
  %1174 = vmatpush1.bf16.msra.mxu0 %v664
  %1175 = vmatprep.subr.bf16.mxu0 %v669
  %1176 = vmatpush1.bf16.msra.mxu0 %v668
  %1177 = vmatprep.subr.bf16.mxu0 %v673
  %1178 = vmatpush1.bf16.msra.mxu0 %v672
  %1179 = vmatprep.subr.bf16.mxu0 %v677
  %1180 = vmatpush1.bf16.msra.mxu0 %v676
  %1181 = vmatprep.subr.bf16.mxu0 %v681
  %1182 = vmatpush1.bf16.msra.mxu0 %v680
  %1183 = vmatprep.subr.bf16.mxu0 %v685
  %1184 = vmatpush1.bf16.msra.mxu0 %v684
  %1185 = vmatprep.subr.bf16.mxu0 %v689
  %1186 = vmatpush1.bf16.msra.mxu0 %v688
  %1187 = vmatprep.subr.bf16.mxu0 0
  %1188 = vmatpush1.bf16.msra.mxu0 0
  %1189 = vmatprep.subr.bf16.mxu0 0
  %1190 = vmatpush1.bf16.msra.mxu0 0
  %1191 = vmatprep.subr.bf16.mxu0 0
  %1192 = vmatpush1.bf16.msra.mxu0 0
  %1193 = vmatprep.subr.bf16.mxu0 0
  %1194 = vmatpush1.bf16.msra.mxu0 0
  %1195 = vmatprep.subr.bf16.mxu0 0
  %1196 = vmatpush1.bf16.msra.mxu0 0
  %1197 = vmatprep.subr.bf16.mxu0 0
  %1198 = vmatpush1.bf16.msra.mxu0 0
  %1199 = vmatprep.subr.bf16.mxu0 0
  %1200 = vmatpush1.bf16.msra.mxu0 0
  %1201 = vmatprep.subr.bf16.mxu0 0
  %1202 = vmatpush1.bf16.msra.mxu0 0
  %1203 = vmatprep.mubr.bf16.mxu0 0
  %1204 = vmatmul.mubr.bf16.gmra.mrb[0].mxu0 %v1168
  %v1205 = vpop.f32.mrb[0].mxu0
  %v1206 = vadd.f32 0.0, %v1205
  %v1207 = vpop.f32.mrb[0].mxu0
  %v1208 = vadd.f32 0.0, %v1207
  %v1209 = vpop.f32.mrb[0].mxu0
  %v1210 = vadd.f32 0.0, %v1209
  %v1211 = vpop.f32.mrb[0].mxu0
  %v1212 = vadd.f32 0.0, %v1211
  %1213 = vdwg.mxu0
  %1214 = vmatprep.subr.bf16.mxu0 %v663
  %1215 = vmatpush1.bf16.msra.mxu0 %v662
  %1216 = vmatprep.subr.bf16.mxu0 %v667
  %1217 = vmatpush1.bf16.msra.mxu0 %v666
  %1218 = vmatprep.subr.bf16.mxu0 %v671
  %1219 = vmatpush1.bf16.msra.mxu0 %v670
  %1220 = vmatprep.subr.bf16.mxu0 %v675
  %1221 = vmatpush1.bf16.msra.mxu0 %v674
  %1222 = vmatprep.subr.bf16.mxu0 %v679
  %1223 = vmatpush1.bf16.msra.mxu0 %v678
  %1224 = vmatprep.subr.bf16.mxu0 %v683
  %1225 = vmatpush1.bf16.msra.mxu0 %v682
  %1226 = vmatprep.subr.bf16.mxu0 %v687
  %1227 = vmatpush1.bf16.msra.mxu0 %v686
  %1228 = vmatprep.subr.bf16.mxu0 %v691
  %1229 = vmatpush1.bf16.msra.mxu0 %v690
  %1230 = vmatprep.subr.bf16.mxu0 0
  %1231 = vmatpush1.bf16.msra.mxu0 0
  %1232 = vmatprep.subr.bf16.mxu0 0
  %1233 = vmatpush1.bf16.msra.mxu0 0
  %1234 = vmatprep.subr.bf16.mxu0 0
  %1235 = vmatpush1.bf16.msra.mxu0 0
  %1236 = vmatprep.subr.bf16.mxu0 0
  %1237 = vmatpush1.bf16.msra.mxu0 0
  %1238 = vmatprep.subr.bf16.mxu0 0
  %1239 = vmatpush1.bf16.msra.mxu0 0
  %1240 = vmatprep.subr.bf16.mxu0 0
  %1241 = vmatpush1.bf16.msra.mxu0 0
  %1242 = vmatprep.subr.bf16.mxu0 0
  %1243 = vmatpush1.bf16.msra.mxu0 0
  %1244 = vmatprep.subr.bf16.mxu0 0
  %1245 = vmatpush1.bf16.msra.mxu0 0
  %1246 = vmatprep.mubr.bf16.mxu0 0
  %1247 = vmatmul.mubr.bf16.gmra.mrb[0].mxu0 %v1168
  %v1248 = vpop.f32.mrb[0].mxu0
  %v1249 = vadd.f32 0.0, %v1248
  %v1250 = vpop.f32.mrb[0].mxu0
  %v1251 = vadd.f32 0.0, %v1250
  %v1252 = vpop.f32.mrb[0].mxu0
  %v1253 = vadd.f32 0.0, %v1252
  %v1254 = vpop.f32.mrb[0].mxu0
  %v1255 = vadd.f32 0.0, %v1254
  %1256 = vdwg.mxu0
  %v1257 = vadd.f32 %v368, %v1206
  %v1258 = vadd.f32 %v370, %v1208
  %v1259 = vadd.f32 %v481, %v1249
  %v1260 = vadd.f32 %v483, %v1251
  %v1261 = vadd.f32 %v372, %v1210
  %v1262 = vadd.f32 %v374, %v1212
  %v1263 = vadd.f32 %v485, %v1253
  %v1264 = vadd.f32 %v487, %v1255
  %v1265 = vxor.u32 %v1257, 2147483648
  %v1266 = vxor.u32 %v1261, 2147483648
  %v1267 = vmul.f32 %v1265, 1.442695
  %v1268 = vpow.pop %v1267
  %v1269 = vmul.f32 %v1266, 1.442695
  %v1270 = vpow.pop %v1269
  %v1271 = vadd.f32 %v1268, 1.0
  %v1272 = vadd.f32 %v1270, 1.0
  %v1273 = vrcp.pop %v1271
  %v1274 = vmul.f32 1.0, %v1273
  %v1275 = vrcp.pop %v1272
  %v1276 = vmul.f32 1.0, %v1275
  %v1277 = vxor.u32 %v1258, 2147483648
  %v1278 = vxor.u32 %v1262, 2147483648
  %v1279 = vmul.f32 %v1277, 1.442695
  %v1280 = vpow.pop %v1279
  %v1281 = vmul.f32 %v1278, 1.442695
  %v1282 = vpow.pop %v1281
  %v1283 = vadd.f32 %v1280, 1.0
  %v1284 = vadd.f32 %v1282, 1.0
  %v1285 = vrcp.pop %v1283
  %v1286 = vmul.f32 1.0, %v1285
  %v1287 = vrcp.pop %v1284
  %v1288 = vmul.f32 1.0, %v1287
  %v1289 = vtanh.pop %v1259
  %v1290 = vtanh.pop %v1263
  %v1291 = vxor.u32 %v1260, 2147483648
  %v1292 = vxor.u32 %v1264, 2147483648
  %v1293 = vmul.f32 %v1291, 1.442695
  %v1294 = vpow.pop %v1293
  %v1295 = vmul.f32 %v1292, 1.442695
  %v1296 = vpow.pop %v1295
  %v1297 = vadd.f32 %v1294, 1.0
  %v1298 = vadd.f32 %v1296, 1.0
  %v1299 = vrcp.pop %v1297
  %v1300 = vmul.f32 1.0, %v1299
  %v1301 = vrcp.pop %v1298
  %v1302 = vmul.f32 1.0, %v1301
  %v1303 = vmul.f32 %v1286, %v1169
  %v1304 = vmul.f32 %v1288, %v1170
  %v1305 = vmul.f32 %v1274, %v1289
  %v1306 = vmul.f32 %v1276, %v1290
  %v1307 = vadd.f32 %v1303, %v1305
  %v1308 = vadd.f32 %v1304, %v1306
  %v1309 = vtanh.pop %v1307
  %v1310 = vtanh.pop %v1308
  %v1311 = vmul.f32 %v1300, %v1309
  %v1312 = vmul.f32 %v1302, %v1310
  %v1313 = vpack.c.bf16 %v1312, %v1311
  %1314 = vst [vmem:[#allocation2] sm:$0xff] %v1313
  %1315 = vst [vmem:[#allocation3] sm:$0xff] %v1307
  %1316 = vst [vmem:[#allocation3 + $0x8] sm:$0xff] %v1308
  %v1317 = vld [vmem:[#allocation2] sm:$0xff]
  %v1318 = vld [vmem:[#allocation3] sm:$0xff]
  %v1319 = vld [vmem:[#allocation3 + $0x8] sm:$0xff]
  %1320 = vmatprep.subr.bf16.mxu0 %v661
  %1321 = vmatpush1.bf16.msra.mxu0 %v660
  %1322 = vmatprep.subr.bf16.mxu0 %v665
  %1323 = vmatpush1.bf16.msra.mxu0 %v664
  %1324 = vmatprep.subr.bf16.mxu0 %v669
  %1325 = vmatpush1.bf16.msra.mxu0 %v668
  %1326 = vmatprep.subr.bf16.mxu0 %v673
  %1327 = vmatpush1.bf16.msra.mxu0 %v672
  %1328 = vmatprep.subr.bf16.mxu0 %v677
  %1329 = vmatpush1.bf16.msra.mxu0 %v676
  %1330 = vmatprep.subr.bf16.mxu0 %v681
  %1331 = vmatpush1.bf16.msra.mxu0 %v680
  %1332 = vmatprep.subr.bf16.mxu0 %v685
  %1333 = vmatpush1.bf16.msra.mxu0 %v684
  %1334 = vmatprep.subr.bf16.mxu0 %v689
  %1335 = vmatpush1.bf16.msra.mxu0 %v688
  %1336 = vmatprep.subr.bf16.mxu0 0
  %1337 = vmatpush1.bf16.msra.mxu0 0
  %1338 = vmatprep.subr.bf16.mxu0 0
  %1339 = vmatpush1.bf16.msra.mxu0 0
  %1340 = vmatprep.subr.bf16.mxu0 0
  %1341 = vmatpush1.bf16.msra.mxu0 0
  %1342 = vmatprep.subr.bf16.mxu0 0
  %1343 = vmatpush1.bf16.msra.mxu0 0
  %1344 = vmatprep.subr.bf16.mxu0 0
  %1345 = vmatpush1.bf16.msra.mxu0 0
  %1346 = vmatprep.subr.bf16.mxu0 0
  %1347 = vmatpush1.bf16.msra.mxu0 0
  %1348 = vmatprep.subr.bf16.mxu0 0
  %1349 = vmatpush1.bf16.msra.mxu0 0
  %1350 = vmatprep.subr.bf16.mxu0 0
  %1351 = vmatpush1.bf16.msra.mxu0 0
  %1352 = vmatprep.mubr.bf16.mxu0 0
  %1353 = vmatmul.mubr.bf16.gmra.mrb[0].mxu0 %v1317
  %v1354 = vpop.f32.mrb[0].mxu0
  %v1355 = vadd.f32 0.0, %v1354
  %v1356 = vpop.f32.mrb[0].mxu0
  %v1357 = vadd.f32 0.0, %v1356
  %v1358 = vpop.f32.mrb[0].mxu0
  %v1359 = vadd.f32 0.0, %v1358
  %v1360 = vpop.f32.mrb[0].mxu0
  %v1361 = vadd.f32 0.0, %v1360
  %1362 = vdwg.mxu0
  %1363 = vmatprep.subr.bf16.mxu0 %v663
  %1364 = vmatpush1.bf16.msra.mxu0 %v662
  %1365 = vmatprep.subr.bf16.mxu0 %v667
  %1366 = vmatpush1.bf16.msra.mxu0 %v666
  %1367 = vmatprep.subr.bf16.mxu0 %v671
  %1368 = vmatpush1.bf16.msra.mxu0 %v670
  %1369 = vmatprep.subr.bf16.mxu0 %v675
  %1370 = vmatpush1.bf16.msra.mxu0 %v674
  %1371 = vmatprep.subr.bf16.mxu0 %v679
  %1372 = vmatpush1.bf16.msra.mxu0 %v678
  %1373 = vmatprep.subr.bf16.mxu0 %v683
  %1374 = vmatpush1.bf16.msra.mxu0 %v682
  %1375 = vmatprep.subr.bf16.mxu0 %v687
  %1376 = vmatpush1.bf16.msra.mxu0 %v686
  %1377 = vmatprep.subr.bf16.mxu0 %v691
  %1378 = vmatpush1.bf16.msra.mxu0 %v690
  %1379 = vmatprep.subr.bf16.mxu0 0
  %1380 = vmatpush1.bf16.msra.mxu0 0
  %1381 = vmatprep.subr.bf16.mxu0 0
  %1382 = vmatpush1.bf16.msra.mxu0 0
  %1383 = vmatprep.subr.bf16.mxu0 0
  %1384 = vmatpush1.bf16.msra.mxu0 0
  %1385 = vmatprep.subr.bf16.mxu0 0
  %1386 = vmatpush1.bf16.msra.mxu0 0
  %1387 = vmatprep.subr.bf16.mxu0 0
  %1388 = vmatpush1.bf16.msra.mxu0 0
  %1389 = vmatprep.subr.bf16.mxu0 0
  %1390 = vmatpush1.bf16.msra.mxu0 0
  %1391 = vmatprep.subr.bf16.mxu0 0
  %1392 = vmatpush1.bf16.msra.mxu0 0
  %1393 = vmatprep.subr.bf16.mxu0 0
  %1394 = vmatpush1.bf16.msra.mxu0 0
  %1395 = vmatprep.mubr.bf16.mxu0 0
  %1396 = vmatmul.mubr.bf16.gmra.mrb[0].mxu0 %v1317
  %v1397 = vpop.f32.mrb[0].mxu0
  %v1398 = vadd.f32 0.0, %v1397
  %v1399 = vpop.f32.mrb[0].mxu0
  %v1400 = vadd.f32 0.0, %v1399
  %v1401 = vpop.f32.mrb[0].mxu0
  %v1402 = vadd.f32 0.0, %v1401
  %v1403 = vpop.f32.mrb[0].mxu0
  %v1404 = vadd.f32 0.0, %v1403
  %1405 = vdwg.mxu0
  %v1406 = vadd.f32 %v378, %v1355
  %v1407 = vadd.f32 %v380, %v1357
  %v1408 = vadd.f32 %v491, %v1398
  %v1409 = vadd.f32 %v493, %v1400
  %v1410 = vadd.f32 %v382, %v1359
  %v1411 = vadd.f32 %v384, %v1361
  %v1412 = vadd.f32 %v495, %v1402
  %v1413 = vadd.f32 %v497, %v1404
  %v1414 = vxor.u32 %v1406, 2147483648
  %v1415 = vxor.u32 %v1410, 2147483648
  %v1416 = vmul.f32 %v1414, 1.442695
  %v1417 = vpow.pop %v1416
  %v1418 = vmul.f32 %v1415, 1.442695
  %v1419 = vpow.pop %v1418
  %v1420 = vadd.f32 %v1417, 1.0
  %v1421 = vadd.f32 %v1419, 1.0
  %v1422 = vrcp.pop %v1420
  %v1423 = vmul.f32 1.0, %v1422
  %v1424 = vrcp.pop %v1421
  %v1425 = vmul.f32 1.0, %v1424
  %v1426 = vxor.u32 %v1407, 2147483648
  %v1427 = vxor.u32 %v1411, 2147483648
  %v1428 = vmul.f32 %v1426, 1.442695
  %v1429 = vpow.pop %v1428
  %v1430 = vmul.f32 %v1427, 1.442695
  %v1431 = vpow.pop %v1430
  %v1432 = vadd.f32 %v1429, 1.0
  %v1433 = vadd.f32 %v1431, 1.0
  %v1434 = vrcp.pop %v1432
  %v1435 = vmul.f32 1.0, %v1434
  %v1436 = vrcp.pop %v1433
  %v1437 = vmul.f32 1.0, %v1436
  %v1438 = vtanh.pop %v1408
  %v1439 = vtanh.pop %v1412
  %v1440 = vxor.u32 %v1409, 2147483648
  %v1441 = vxor.u32 %v1413, 2147483648
  %v1442 = vmul.f32 %v1440, 1.442695
  %v1443 = vpow.pop %v1442
  %v1444 = vmul.f32 %v1441, 1.442695
  %v1445 = vpow.pop %v1444
  %v1446 = vadd.f32 %v1443, 1.0
  %v1447 = vadd.f32 %v1445, 1.0
  %v1448 = vrcp.pop %v1446
  %v1449 = vmul.f32 1.0, %v1448
  %v1450 = vrcp.pop %v1447
  %v1451 = vmul.f32 1.0, %v1450
  %v1452 = vmul.f32 %v1435, %v1318
  %v1453 = vmul.f32 %v1437, %v1319
  %v1454 = vmul.f32 %v1423, %v1438
  %v1455 = vmul.f32 %v1425, %v1439
  %v1456 = vadd.f32 %v1452, %v1454
  %v1457 = vadd.f32 %v1453, %v1455
  %v1458 = vtanh.pop %v1456
  %v1459 = vtanh.pop %v1457
  %v1460 = vmul.f32 %v1449, %v1458
  %v1461 = vmul.f32 %v1451, %v1459
  %v1462 = vpack.c.bf16 %v1461, %v1460
  %1463 = vst [vmem:[#allocation2] sm:$0xff] %v1462
  %1464 = vst [vmem:[#allocation3] sm:$0xff] %v1456
  %1465 = vst [vmem:[#allocation3 + $0x8] sm:$0xff] %v1457
  %v1466 = vld [vmem:[#allocation2] sm:$0xff]
  %v1467 = vld [vmem:[#allocation3] sm:$0xff]
  %v1468 = vld [vmem:[#allocation3 + $0x8] sm:$0xff]
  %1469 = vmatprep.subr.bf16.mxu0 %v661
  %1470 = vmatpush1.bf16.msra.mxu0 %v660
  %1471 = vmatprep.subr.bf16.mxu0 %v665
  %1472 = vmatpush1.bf16.msra.mxu0 %v664
  %1473 = vmatprep.subr.bf16.mxu0 %v669
  %1474 = vmatpush1.bf16.msra.mxu0 %v668
  %1475 = vmatprep.subr.bf16.mxu0 %v673
  %1476 = vmatpush1.bf16.msra.mxu0 %v672
  %1477 = vmatprep.subr.bf16.mxu0 %v677
  %1478 = vmatpush1.bf16.msra.mxu0 %v676
  %1479 = vmatprep.subr.bf16.mxu0 %v681
  %1480 = vmatpush1.bf16.msra.mxu0 %v680
  %1481 = vmatprep.subr.bf16.mxu0 %v685
  %1482 = vmatpush1.bf16.msra.mxu0 %v684
  %1483 = vmatprep.subr.bf16.mxu0 %v689
  %1484 = vmatpush1.bf16.msra.mxu0 %v688
  %1485 = vmatprep.subr.bf16.mxu0 0
  %1486 = vmatpush1.bf16.msra.mxu0 0
  %1487 = vmatprep.subr.bf16.mxu0 0
  %1488 = vmatpush1.bf16.msra.mxu0 0
  %1489 = vmatprep.subr.bf16.mxu0 0
  %1490 = vmatpush1.bf16.msra.mxu0 0
  %1491 = vmatprep.subr.bf16.mxu0 0
  %1492 = vmatpush1.bf16.msra.mxu0 0
  %1493 = vmatprep.subr.bf16.mxu0 0
  %1494 = vmatpush1.bf16.msra.mxu0 0
  %1495 = vmatprep.subr.bf16.mxu0 0
  %1496 = vmatpush1.bf16.msra.mxu0 0
  %1497 = vmatprep.subr.bf16.mxu0 0
  %1498 = vmatpush1.bf16.msra.mxu0 0
  %1499 = vmatprep.subr.bf16.mxu0 0
  %1500 = vmatpush1.bf16.msra.mxu0 0
  %1501 = vmatprep.mubr.bf16.mxu0 0
  %1502 = vmatmul.mubr.bf16.gmra.mrb[0].mxu0 %v1466
  %v1503 = vpop.f32.mrb[0].mxu0
  %v1504 = vadd.f32 0.0, %v1503
  %v1505 = vpop.f32.mrb[0].mxu0
  %v1506 = vadd.f32 0.0, %v1505
  %v1507 = vpop.f32.mrb[0].mxu0
  %v1508 = vadd.f32 0.0, %v1507
  %v1509 = vpop.f32.mrb[0].mxu0
  %v1510 = vadd.f32 0.0, %v1509
  %1511 = vdwg.mxu0
  %1512 = vmatprep.subr.bf16.mxu0 %v663
  %1513 = vmatpush1.bf16.msra.mxu0 %v662
  %1514 = vmatprep.subr.bf16.mxu0 %v667
  %1515 = vmatpush1.bf16.msra.mxu0 %v666
  %1516 = vmatprep.subr.bf16.mxu0 %v671
  %1517 = vmatpush1.bf16.msra.mxu0 %v670
  %1518 = vmatprep.subr.bf16.mxu0 %v675
  %1519 = vmatpush1.bf16.msra.mxu0 %v674
  %1520 = vmatprep.subr.bf16.mxu0 %v679
  %1521 = vmatpush1.bf16.msra.mxu0 %v678
  %1522 = vmatprep.subr.bf16.mxu0 %v683
  %1523 = vmatpush1.bf16.msra.mxu0 %v682
  %1524 = vmatprep.subr.bf16.mxu0 %v687
  %1525 = vmatpush1.bf16.msra.mxu0 %v686
  %1526 = vmatprep.subr.bf16.mxu0 %v691
  %1527 = vmatpush1.bf16.msra.mxu0 %v690
  %1528 = vmatprep.subr.bf16.mxu0 0
  %1529 = vmatpush1.bf16.msra.mxu0 0
  %1530 = vmatprep.subr.bf16.mxu0 0
  %1531 = vmatpush1.bf16.msra.mxu0 0
  %1532 = vmatprep.subr.bf16.mxu0 0
  %1533 = vmatpush1.bf16.msra.mxu0 0
  %1534 = vmatprep.subr.bf16.mxu0 0
  %1535 = vmatpush1.bf16.msra.mxu0 0
  %1536 = vmatprep.subr.bf16.mxu0 0
  %1537 = vmatpush1.bf16.msra.mxu0 0
  %1538 = vmatprep.subr.bf16.mxu0 0
  %1539 = vmatpush1.bf16.msra.mxu0 0
  %1540 = vmatprep.subr.bf16.mxu0 0
  %1541 = vmatpush1.bf16.msra.mxu0 0
  %1542 = vmatprep.subr.bf16.mxu0 0
  %1543 = vmatpush1.bf16.msra.mxu0 0
  %1544 = vmatprep.mubr.bf16.mxu0 0
  %1545 = vmatmul.mubr.bf16.gmra.mrb[0].mxu0 %v1466
  %v1546 = vpop.f32.mrb[0].mxu0
  %v1547 = vadd.f32 0.0, %v1546
  %v1548 = vpop.f32.mrb[0].mxu0
  %v1549 = vadd.f32 0.0, %v1548
  %v1550 = vpop.f32.mrb[0].mxu0
  %v1551 = vadd.f32 0.0, %v1550
  %v1552 = vpop.f32.mrb[0].mxu0
  %v1553 = vadd.f32 0.0, %v1552
  %1554 = vdwg.mxu0
  %v1555 = vadd.f32 %v388, %v1504
  %v1556 = vadd.f32 %v390, %v1506
  %v1557 = vadd.f32 %v501, %v1547
  %v1558 = vadd.f32 %v503, %v1549
  %v1559 = vadd.f32 %v392, %v1508
  %v1560 = vadd.f32 %v394, %v1510
  %v1561 = vadd.f32 %v505, %v1551
  %v1562 = vadd.f32 %v507, %v1553
  %v1563 = vxor.u32 %v1555, 2147483648
  %v1564 = vxor.u32 %v1559, 2147483648
  %v1565 = vmul.f32 %v1563, 1.442695
  %v1566 = vpow.pop %v1565
  %v1567 = vmul.f32 %v1564, 1.442695
  %v1568 = vpow.pop %v1567
  %v1569 = vadd.f32 %v1566, 1.0
  %v1570 = vadd.f32 %v1568, 1.0
  %v1571 = vrcp.pop %v1569
  %v1572 = vmul.f32 1.0, %v1571
  %v1573 = vrcp.pop %v1570
  %v1574 = vmul.f32 1.0, %v1573
  %v1575 = vxor.u32 %v1556, 2147483648
  %v1576 = vxor.u32 %v1560, 2147483648
  %v1577 = vmul.f32 %v1575, 1.442695
  %v1578 = vpow.pop %v1577
  %v1579 = vmul.f32 %v1576, 1.442695
  %v1580 = vpow.pop %v1579
  %v1581 = vadd.f32 %v1578, 1.0
  %v1582 = vadd.f32 %v1580, 1.0
  %v1583 = vrcp.pop %v1581
  %v1584 = vmul.f32 1.0, %v1583
  %v1585 = vrcp.pop %v1582
  %v1586 = vmul.f32 1.0, %v1585
  %v1587 = vtanh.pop %v1557
  %v1588 = vtanh.pop %v1561
  %v1589 = vxor.u32 %v1558, 2147483648
  %v1590 = vxor.u32 %v1562, 2147483648
  %v1591 = vmul.f32 %v1589, 1.442695
  %v1592 = vpow.pop %v1591
  %v1593 = vmul.f32 %v1590, 1.442695
  %v1594 = vpow.pop %v1593
  %v1595 = vadd.f32 %v1592, 1.0
  %v1596 = vadd.f32 %v1594, 1.0
  %v1597 = vrcp.pop %v1595
  %v1598 = vmul.f32 1.0, %v1597
  %v1599 = vrcp.pop %v1596
  %v1600 = vmul.f32 1.0, %v1599
  %v1601 = vmul.f32 %v1584, %v1467
  %v1602 = vmul.f32 %v1586, %v1468
  %v1603 = vmul.f32 %v1572, %v1587
  %v1604 = vmul.f32 %v1574, %v1588
  %v1605 = vadd.f32 %v1601, %v1603
  %v1606 = vadd.f32 %v1602, %v1604
  %v1607 = vtanh.pop %v1605
  %v1608 = vtanh.pop %v1606
  %v1609 = vmul.f32 %v1598, %v1607
  %v1610 = vmul.f32 %v1600, %v1608
  %v1611 = vpack.c.bf16 %v1610, %v1609
  %1612 = vst [vmem:[#allocation2] sm:$0xff] %v1611
  %1613 = vst [vmem:[#allocation3] sm:$0xff] %v1605
  %1614 = vst [vmem:[#allocation3 + $0x8] sm:$0xff] %v1606
  %v1615 = vld [vmem:[#allocation2] sm:$0xff]
  %v1616 = vld [vmem:[#allocation3] sm:$0xff]
  %v1617 = vld [vmem:[#allocation3 + $0x8] sm:$0xff]
  %1618 = vmatprep.subr.bf16.mxu0 %v661
  %1619 = vmatpush1.bf16.msra.mxu0 %v660
  %1620 = vmatprep.subr.bf16.mxu0 %v665
  %1621 = vmatpush1.bf16.msra.mxu0 %v664
  %1622 = vmatprep.subr.bf16.mxu0 %v669
  %1623 = vmatpush1.bf16.msra.mxu0 %v668
  %1624 = vmatprep.subr.bf16.mxu0 %v673
  %1625 = vmatpush1.bf16.msra.mxu0 %v672
  %1626 = vmatprep.subr.bf16.mxu0 %v677
  %1627 = vmatpush1.bf16.msra.mxu0 %v676
  %1628 = vmatprep.subr.bf16.mxu0 %v681
  %1629 = vmatpush1.bf16.msra.mxu0 %v680
  %1630 = vmatprep.subr.bf16.mxu0 %v685
  %1631 = vmatpush1.bf16.msra.mxu0 %v684
  %1632 = vmatprep.subr.bf16.mxu0 %v689
  %1633 = vmatpush1.bf16.msra.mxu0 %v688
  %1634 = vmatprep.subr.bf16.mxu0 0
  %1635 = vmatpush1.bf16.msra.mxu0 0
  %1636 = vmatprep.subr.bf16.mxu0 0
  %1637 = vmatpush1.bf16.msra.mxu0 0
  %1638 = vmatprep.subr.bf16.mxu0 0
  %1639 = vmatpush1.bf16.msra.mxu0 0
  %1640 = vmatprep.subr.bf16.mxu0 0
  %1641 = vmatpush1.bf16.msra.mxu0 0
  %1642 = vmatprep.subr.bf16.mxu0 0
  %1643 = vmatpush1.bf16.msra.mxu0 0
  %1644 = vmatprep.subr.bf16.mxu0 0
  %1645 = vmatpush1.bf16.msra.mxu0 0
  %1646 = vmatprep.subr.bf16.mxu0 0
  %1647 = vmatpush1.bf16.msra.mxu0 0
  %1648 = vmatprep.subr.bf16.mxu0 0
  %1649 = vmatpush1.bf16.msra.mxu0 0
  %1650 = vmatprep.mubr.bf16.mxu0 0
  %1651 = vmatmul.mubr.bf16.gmra.mrb[0].mxu0 %v1615
  %v1652 = vpop.f32.mrb[0].mxu0
  %v1653 = vadd.f32 0.0, %v1652
  %v1654 = vpop.f32.mrb[0].mxu0
  %v1655 = vadd.f32 0.0, %v1654
  %v1656 = vpop.f32.mrb[0].mxu0
  %v1657 = vadd.f32 0.0, %v1656
  %v1658 = vpop.f32.mrb[0].mxu0
  %v1659 = vadd.f32 0.0, %v1658
  %1660 = vdwg.mxu0
  %1661 = vmatprep.subr.bf16.mxu0 %v663
  %1662 = vmatpush1.bf16.msra.mxu0 %v662
  %1663 = vmatprep.subr.bf16.mxu0 %v667
  %1664 = vmatpush1.bf16.msra.mxu0 %v666
  %1665 = vmatprep.subr.bf16.mxu0 %v671
  %1666 = vmatpush1.bf16.msra.mxu0 %v670
  %1667 = vmatprep.subr.bf16.mxu0 %v675
  %1668 = vmatpush1.bf16.msra.mxu0 %v674
  %1669 = vmatprep.subr.bf16.mxu0 %v679
  %1670 = vmatpush1.bf16.msra.mxu0 %v678
  %1671 = vmatprep.subr.bf16.mxu0 %v683
  %1672 = vmatpush1.bf16.msra.mxu0 %v682
  %1673 = vmatprep.subr.bf16.mxu0 %v687
  %1674 = vmatpush1.bf16.msra.mxu0 %v686
  %1675 = vmatprep.subr.bf16.mxu0 %v691
  %1676 = vmatpush1.bf16.msra.mxu0 %v690
  %1677 = vmatprep.subr.bf16.mxu0 0
  %1678 = vmatpush1.bf16.msra.mxu0 0
  %1679 = vmatprep.subr.bf16.mxu0 0
  %1680 = vmatpush1.bf16.msra.mxu0 0
  %1681 = vmatprep.subr.bf16.mxu0 0
  %1682 = vmatpush1.bf16.msra.mxu0 0
  %1683 = vmatprep.subr.bf16.mxu0 0
  %1684 = vmatpush1.bf16.msra.mxu0 0
  %1685 = vmatprep.subr.bf16.mxu0 0
  %1686 = vmatpush1.bf16.msra.mxu0 0
  %1687 = vmatprep.subr.bf16.mxu0 0
  %1688 = vmatpush1.bf16.msra.mxu0 0
  %1689 = vmatprep.subr.bf16.mxu0 0
  %1690 = vmatpush1.bf16.msra.mxu0 0
  %1691 = vmatprep.subr.bf16.mxu0 0
  %1692 = vmatpush1.bf16.msra.mxu0 0
  %1693 = vmatprep.mubr.bf16.mxu0 0
  %1694 = vmatmul.mubr.bf16.gmra.mrb[0].mxu0 %v1615
  %v1695 = vpop.f32.mrb[0].mxu0
  %v1696 = vadd.f32 0.0, %v1695
  %v1697 = vpop.f32.mrb[0].mxu0
  %v1698 = vadd.f32 0.0, %v1697
  %v1699 = vpop.f32.mrb[0].mxu0
  %v1700 = vadd.f32 0.0, %v1699
  %v1701 = vpop.f32.mrb[0].mxu0
  %v1702 = vadd.f32 0.0, %v1701
  %1703 = vdwg.mxu0
  %v1704 = vadd.f32 %v398, %v1653
  %v1705 = vadd.f32 %v400, %v1655
  %v1706 = vadd.f32 %v511, %v1696
  %v1707 = vadd.f32 %v513, %v1698
  %v1708 = vadd.f32 %v402, %v1657
  %v1709 = vadd.f32 %v404, %v1659
  %v1710 = vadd.f32 %v515, %v1700
  %v1711 = vadd.f32 %v517, %v1702
  %v1712 = vxor.u32 %v1704, 2147483648
  %v1713 = vxor.u32 %v1708, 2147483648
  %v1714 = vmul.f32 %v1712, 1.442695
  %v1715 = vpow.pop %v1714
  %v1716 = vmul.f32 %v1713, 1.442695
  %v1717 = vpow.pop %v1716
  %v1718 = vadd.f32 %v1715, 1.0
  %v1719 = vadd.f32 %v1717, 1.0
  %v1720 = vrcp.pop %v1718
  %v1721 = vmul.f32 1.0, %v1720
  %v1722 = vrcp.pop %v1719
  %v1723 = vmul.f32 1.0, %v1722
  %v1724 = vxor.u32 %v1705, 2147483648
  %v1725 = vxor.u32 %v1709, 2147483648
  %v1726 = vmul.f32 %v1724, 1.442695
  %v1727 = vpow.pop %v1726
  %v1728 = vmul.f32 %v1725, 1.442695
  %v1729 = vpow.pop %v1728
  %v1730 = vadd.f32 %v1727, 1.0
  %v1731 = vadd.f32 %v1729, 1.0
  %v1732 = vrcp.pop %v1730
  %v1733 = vmul.f32 1.0, %v1732
  %v1734 = vrcp.pop %v1731
  %v1735 = vmul.f32 1.0, %v1734
  %v1736 = vtanh.pop %v1706
  %v1737 = vtanh.pop %v1710
  %v1738 = vxor.u32 %v1707, 2147483648
  %v1739 = vxor.u32 %v1711, 2147483648
  %v1740 = vmul.f32 %v1738, 1.442695
  %v1741 = vpow.pop %v1740
  %v1742 = vmul.f32 %v1739, 1.442695
  %v1743 = vpow.pop %v1742
  %v1744 = vadd.f32 %v1741, 1.0
  %v1745 = vadd.f32 %v1743, 1.0
  %v1746 = vrcp.pop %v1744
  %v1747 = vmul.f32 1.0, %v1746
  %v1748 = vrcp.pop %v1745
  %v1749 = vmul.f32 1.0, %v1748
  %v1750 = vmul.f32 %v1733, %v1616
  %v1751 = vmul.f32 %v1735, %v1617
  %v1752 = vmul.f32 %v1721, %v1736
  %v1753 = vmul.f32 %v1723, %v1737
  %v1754 = vadd.f32 %v1750, %v1752
  %v1755 = vadd.f32 %v1751, %v1753
  %v1756 = vtanh.pop %v1754
  %v1757 = vtanh.pop %v1755
  %v1758 = vmul.f32 %v1747, %v1756
  %v1759 = vmul.f32 %v1749, %v1757
  %v1760 = vpack.c.bf16 %v1759, %v1758
  %1761 = vst [vmem:[#allocation2] sm:$0xff] %v1760
  %1762 = vst [vmem:[#allocation3] sm:$0xff] %v1754
  %1763 = vst [vmem:[#allocation3 + $0x8] sm:$0xff] %v1755
  %v1764 = vld [vmem:[#allocation2] sm:$0xff]
  %v1765 = vld [vmem:[#allocation3] sm:$0xff]
  %v1766 = vld [vmem:[#allocation3 + $0x8] sm:$0xff]
  %1767 = vmatprep.subr.bf16.mxu0 %v661
  %1768 = vmatpush1.bf16.msra.mxu0 %v660
  %1769 = vmatprep.subr.bf16.mxu0 %v665
  %1770 = vmatpush1.bf16.msra.mxu0 %v664
  %1771 = vmatprep.subr.bf16.mxu0 %v669
  %1772 = vmatpush1.bf16.msra.mxu0 %v668
  %1773 = vmatprep.subr.bf16.mxu0 %v673
  %1774 = vmatpush1.bf16.msra.mxu0 %v672
  %1775 = vmatprep.subr.bf16.mxu0 %v677
  %1776 = vmatpush1.bf16.msra.mxu0 %v676
  %1777 = vmatprep.subr.bf16.mxu0 %v681
  %1778 = vmatpush1.bf16.msra.mxu0 %v680
  %1779 = vmatprep.subr.bf16.mxu0 %v685
  %1780 = vmatpush1.bf16.msra.mxu0 %v684
  %1781 = vmatprep.subr.bf16.mxu0 %v689
  %1782 = vmatpush1.bf16.msra.mxu0 %v688
  %1783 = vmatprep.subr.bf16.mxu0 0
  %1784 = vmatpush1.bf16.msra.mxu0 0
  %1785 = vmatprep.subr.bf16.mxu0 0
  %1786 = vmatpush1.bf16.msra.mxu0 0
  %1787 = vmatprep.subr.bf16.mxu0 0
  %1788 = vmatpush1.bf16.msra.mxu0 0
  %1789 = vmatprep.subr.bf16.mxu0 0
  %1790 = vmatpush1.bf16.msra.mxu0 0
  %1791 = vmatprep.subr.bf16.mxu0 0
  %1792 = vmatpush1.bf16.msra.mxu0 0
  %1793 = vmatprep.subr.bf16.mxu0 0
  %1794 = vmatpush1.bf16.msra.mxu0 0
  %1795 = vmatprep.subr.bf16.mxu0 0
  %1796 = vmatpush1.bf16.msra.mxu0 0
  %1797 = vmatprep.subr.bf16.mxu0 0
  %1798 = vmatpush1.bf16.msra.mxu0 0
  %1799 = vmatprep.mubr.bf16.mxu0 0
  %1800 = vmatmul.mubr.bf16.gmra.mrb[0].mxu0 %v1764
  %v1801 = vpop.f32.mrb[0].mxu0
  %v1802 = vadd.f32 0.0, %v1801
  %v1803 = vpop.f32.mrb[0].mxu0
  %v1804 = vadd.f32 0.0, %v1803
  %v1805 = vpop.f32.mrb[0].mxu0
  %v1806 = vadd.f32 0.0, %v1805
  %v1807 = vpop.f32.mrb[0].mxu0
  %v1808 = vadd.f32 0.0, %v1807
  %1809 = vdwg.mxu0
  %1810 = vmatprep.subr.bf16.mxu0 %v663
  %1811 = vmatpush1.bf16.msra.mxu0 %v662
  %1812 = vmatprep.subr.bf16.mxu0 %v667
  %1813 = vmatpush1.bf16.msra.mxu0 %v666
  %1814 = vmatprep.subr.bf16.mxu0 %v671
  %1815 = vmatpush1.bf16.msra.mxu0 %v670
  %1816 = vmatprep.subr.bf16.mxu0 %v675
  %1817 = vmatpush1.bf16.msra.mxu0 %v674
  %1818 = vmatprep.subr.bf16.mxu0 %v679
  %1819 = vmatpush1.bf16.msra.mxu0 %v678
  %1820 = vmatprep.subr.bf16.mxu0 %v683
  %1821 = vmatpush1.bf16.msra.mxu0 %v682
  %1822 = vmatprep.subr.bf16.mxu0 %v687
  %1823 = vmatpush1.bf16.msra.mxu0 %v686
  %1824 = vmatprep.subr.bf16.mxu0 %v691
  %1825 = vmatpush1.bf16.msra.mxu0 %v690
  %1826 = vmatprep.subr.bf16.mxu0 0
  %1827 = vmatpush1.bf16.msra.mxu0 0
  %1828 = vmatprep.subr.bf16.mxu0 0
  %1829 = vmatpush1.bf16.msra.mxu0 0
  %1830 = vmatprep.subr.bf16.mxu0 0
  %1831 = vmatpush1.bf16.msra.mxu0 0
  %1832 = vmatprep.subr.bf16.mxu0 0
  %1833 = vmatpush1.bf16.msra.mxu0 0
  %1834 = vmatprep.subr.bf16.mxu0 0
  %1835 = vmatpush1.bf16.msra.mxu0 0
  %1836 = vmatprep.subr.bf16.mxu0 0
  %1837 = vmatpush1.bf16.msra.mxu0 0
  %1838 = vmatprep.subr.bf16.mxu0 0
  %1839 = vmatpush1.bf16.msra.mxu0 0
  %1840 = vmatprep.subr.bf16.mxu0 0
  %1841 = vmatpush1.bf16.msra.mxu0 0
  %1842 = vmatprep.mubr.bf16.mxu0 0
  %1843 = vmatmul.mubr.bf16.gmra.mrb[0].mxu0 %v1764
  %v1844 = vpop.f32.mrb[0].mxu0
  %v1845 = vadd.f32 0.0, %v1844
  %v1846 = vpop.f32.mrb[0].mxu0
  %v1847 = vadd.f32 0.0, %v1846
  %v1848 = vpop.f32.mrb[0].mxu0
  %v1849 = vadd.f32 0.0, %v1848
  %v1850 = vpop.f32.mrb[0].mxu0
  %v1851 = vadd.f32 0.0, %v1850
  %1852 = vdwg.mxu0
  %v1853 = vadd.f32 %v408, %v1802
  %v1854 = vadd.f32 %v410, %v1804
  %v1855 = vadd.f32 %v521, %v1845
  %v1856 = vadd.f32 %v523, %v1847
  %v1857 = vadd.f32 %v412, %v1806
  %v1858 = vadd.f32 %v414, %v1808
  %v1859 = vadd.f32 %v525, %v1849
  %v1860 = vadd.f32 %v527, %v1851
  %v1861 = vxor.u32 %v1853, 2147483648
  %v1862 = vxor.u32 %v1857, 2147483648
  %v1863 = vmul.f32 %v1861, 1.442695
  %v1864 = vpow.pop %v1863
  %v1865 = vmul.f32 %v1862, 1.442695
  %v1866 = vpow.pop %v1865
  %v1867 = vadd.f32 %v1864, 1.0
  %v1868 = vadd.f32 %v1866, 1.0
  %v1869 = vrcp.pop %v1867
  %v1870 = vmul.f32 1.0, %v1869
  %v1871 = vrcp.pop %v1868
  %v1872 = vmul.f32 1.0, %v1871
  %v1873 = vxor.u32 %v1854, 2147483648
  %v1874 = vxor.u32 %v1858, 2147483648
  %v1875 = vmul.f32 %v1873, 1.442695
  %v1876 = vpow.pop %v1875
  %v1877 = vmul.f32 %v1874, 1.442695
  %v1878 = vpow.pop %v1877
  %v1879 = vadd.f32 %v1876, 1.0
  %v1880 = vadd.f32 %v1878, 1.0
  %v1881 = vrcp.pop %v1879
  %v1882 = vmul.f32 1.0, %v1881
  %v1883 = vrcp.pop %v1880
  %v1884 = vmul.f32 1.0, %v1883
  %v1885 = vtanh.pop %v1855
  %v1886 = vtanh.pop %v1859
  %v1887 = vxor.u32 %v1856, 2147483648
  %v1888 = vxor.u32 %v1860, 2147483648
  %v1889 = vmul.f32 %v1887, 1.442695
  %v1890 = vpow.pop %v1889
  %v1891 = vmul.f32 %v1888, 1.442695
  %v1892 = vpow.pop %v1891
  %v1893 = vadd.f32 %v1890, 1.0
  %v1894 = vadd.f32 %v1892, 1.0
  %v1895 = vrcp.pop %v1893
  %v1896 = vmul.f32 1.0, %v1895
  %v1897 = vrcp.pop %v1894
  %v1898 = vmul.f32 1.0, %v1897
  %v1899 = vmul.f32 %v1882, %v1765
  %v1900 = vmul.f32 %v1884, %v1766
  %v1901 = vmul.f32 %v1870, %v1885
  %v1902 = vmul.f32 %v1872, %v1886
  %v1903 = vadd.f32 %v1899, %v1901
  %v1904 = vadd.f32 %v1900, %v1902
  %v1905 = vtanh.pop %v1903
  %v1906 = vtanh.pop %v1904
  %v1907 = vmul.f32 %v1896, %v1905
  %v1908 = vmul.f32 %v1898, %v1906
  %v1909 = vpack.c.bf16 %v1908, %v1907
  %1910 = vst [vmem:[#allocation2] sm:$0xff] %v1909
  %1911 = vst [vmem:[#allocation3] sm:$0xff] %v1903
  %1912 = vst [vmem:[#allocation3 + $0x8] sm:$0xff] %v1904
  %v1913 = vld [vmem:[#allocation2] sm:$0xff]
  %v1915 = vunpack.c.l.b16 %v1913
  %v1916 = vunpack.c.h.b16 %v1913
  %v1917 = vpack.c.b16 %v1915, %v1915
  %v1918 = vpack.c.b16 %v1916, %v1916
  %1921 = vst [vmem:[%s4] sm:$0xf] %v1917
  %1922 = vst [vmem:[%s4 + $0x4] sm:$0xf] %v1918
  // Predicated region
  $region22: #{lstm_model_forward.4} parent=0 // pred_check
    _
  $region23: #{lstm_model_forward.4} parent=0 // pred_check_branch
    %1924 = sbr.rel (0) target = $region25
  $region24: #{lstm_model_forward.4} parent=0 // pred_region
    _
  $region25: #{lstm_model_forward.4} parent=0 // pred_fallthru
    _
  // Predicated region
  $region26: #{lstm_model_forward.4} parent=0 // pred_check
    _
  $region27: #{lstm_model_forward.4} parent=0 // pred_check_branch
    %1926 = sbr.rel (0) target = $region29
  $region28: #{lstm_model_forward.4} parent=0 // pred_region
    _
  $region29: #{lstm_model_forward.4} parent=0 // pred_fallthru
    _

</llo_original>
